<compile_context>
chip_gen: v7x
topology: tpu7x:2x2x1
jax: 0.10.0
libtpu: 0.0.40
codegen_flags: <defaults>
</compile_context>

<pallas_src>
import jax
import jax.numpy as jnp
from jax import lax
from jax.experimental import pallas as pl
from jax.experimental.pallas import tpu as pltpu

# ----------------------------- model sizes ---------------------------------
B = 2                  # batch
S = 16                 # sequence length
BS = B * S
H = 32                 # hidden size
NUM_HEADS = 4
HEAD_DIM = H // NUM_HEADS
FF = 4 * H             # FFN intermediate (=128)
VOCAB = 100
NUM_LAYERS = 2
NUM_HEADERS_PER_EX = 3
TOTAL_HEADERS = B * NUM_HEADERS_PER_EX

# column layout of the lane-dense (B*S, 128) kernel output
OUT_LANES = 128
AGG_OFF, AGG_OUT = 0, 7
COND_OFF, COND_OUT = 7, 5
CONN_OFF, CONN_OUT = 12, 3

# ---- packed vector slab (f32, (V_ROWS, 128)) row layout ----
VR_ELN_G, VR_ELN_B = 0, 1          # embedding LayerNorm gamma / beta (lanes 0:H)
VR_B2C = 2                         # packed 2nd-linear biases of the 3 heads (128 lanes)
VR_BH1 = 3                         # [pool_b | agg_b1 | cond_b1]  (lanes 0:3H)
VR_BCONN = 4                       # conn_b1 (lanes 0:H)
VR_LAYER = 5                       # then 8 rows per layer:
#   +0 bqkv(3H) +1 b1(FF) +2 bo +3 ln1_g +4 ln1_b +5 b2 +6 ln2_g +7 ln2_b
V_ROWS = 24

# ---- bf16 weight slab row offsets ----
W96_HEADS = NUM_LAYERS * H                 # rows 64:96  -> merged [pool|agg|cond] first Linear
W128_W2AC = NUM_LAYERS * H                 # rows 64:128 -> block-diag [agg_w2; cond_w2]
W128_W2CONN = W128_W2AC + 2 * H            # rows 128:160-> block-diag conn_w2
W32_W2 = NUM_LAYERS * H                    # rows 64:320 -> FFN w2 per layer
W32_CONN1 = W32_W2 + NUM_LAYERS * FF       # rows 320:352-> conn first Linear


# -------------------- Pallas kernel: fused forward pass ---------------------
def _m1_fused_kernel(ids_ref, amask_ref, emb_ref, vec_ref,
                     w96_ref, w128_ref, w32_ref, out_ref):
    """Single launch: embeddings -> emb-LN -> 2 encoder layers -> pooler + 3 heads.

    ids_ref:   (B*S, 2) int32   col0 word id, col1 token-type id
    amask_ref: (B, S)   f32     attention mask (1 keep / 0 pad)
    emb_ref:   (VOCAB+BS+2, H)  f32  [word_emb ; pos_emb tiled per token ; type_emb]
    vec_ref:   (V_ROWS, 128)    f32  packed biases / LayerNorm params (see layout above)
    w96_ref:   (96, 96)   bf16  [wqkv(l0); wqkv(l1); merged pool|agg|cond first Linear]
    w128_ref:  (160, 128) bf16  [w1(l0); w1(l1); block-diag agg/cond w2; block-diag conn w2]
    w32_ref:   (352, 32)  bf16  [wo(l0); wo(l1); w2(l0); w2(l1); conn first Linear]
    out_ref:   (B*S, 128) f32   lane-dense output (agg 0:7 | cond 7:12 | conn 12:15)
    """
    f32 = jnp.float32

    def bf(v):
        return v.astype(jnp.bfloat16)

    def layer_norm(h, g, b):
        mu = jnp.mean(h, axis=-1, keepdims=True)
        var = jnp.mean((h - mu) ** 2, axis=-1, keepdims=True)
        return (h - mu) * lax.rsqrt(var + 1e-12) * g + b

    vecs = vec_ref[...]                                           # (24,128) f32, tiny

    # ---------------- embeddings (fused in-kernel) ----------------
    ids = ids_ref[...]                                            # (BS,2) int32
    wid = ids[:, 0:1]                                             # (BS,1)
    tt = ids[:, 1:2].astype(f32)                                  # (BS,1)
    onehot = (wid == lax.broadcasted_iota(jnp.int32, (BS, VOCAB), 1)).astype(f32)
    x = jnp.dot(onehot, emb_ref[0:VOCAB, :], preferred_element_type=f32)   # exact word gather
    x = x + emb_ref[VOCAB:VOCAB + BS, :]                          # position (pre-tiled per token)
    t0 = emb_ref[VOCAB + BS:VOCAB + BS + 1, :]
    t1 = emb_ref[VOCAB + BS + 1:VOCAB + BS + 2, :]
    x = x + t0 * (1.0 - tt) + t1 * tt                             # token-type
    x = layer_norm(x, vecs[VR_ELN_G:VR_ELN_G + 1, 0:H], vecs[VR_ELN_B:VR_ELN_B + 1, 0:H])

    # additive attention mask, broadcast ONCE (not per layer/head)
    add_mask = (amask_ref[...] - 1.0) * 1e9                       # (B,S)
    add_mask_b = jnp.broadcast_to(add_mask[:, None, :], (B, S, S))

    scale = 1.0 / (HEAD_DIM ** 0.5)
    for l in range(NUM_LAYERS):                                   # static loop
        vr = VR_LAYER + 8 * l
        # merged QKV projection: one (BS,H) @ (H,3H) bf16 matmul
        qkv = jnp.dot(bf(x), w96_ref[l * H:(l + 1) * H, :],
                      preferred_element_type=f32) + vecs[vr:vr + 1, 0:3 * H]
        qkv3 = qkv.reshape(B, S, 3 * H)

        # attention: static head loop, each head batched over B
        heads = []
        for h in range(NUM_HEADS):
            lo = h * HEAD_DIM
            qh = qkv3[:, :, lo:lo + HEAD_DIM]
            kh = qkv3[:, :, H + lo:H + lo + HEAD_DIM]
            vh = qkv3[:, :, 2 * H + lo:2 * H + lo + HEAD_DIM]
            s = jnp.einsum('bqd,bkd->bqk', bf(qh), bf(kh),
                           preferred_element_type=f32) * scale
            s = s + add_mask_b
            s = s - jnp.max(s, axis=-1, keepdims=True)
            p = jnp.exp(s)
            p = p / jnp.sum(p, axis=-1, keepdims=True)            # exact softmax
            heads.append(jnp.einsum('bqk,bkd->bqd', bf(p), bf(vh),
                                    preferred_element_type=f32))
        ctx = jnp.concatenate(heads, axis=-1).reshape(BS, H)
        attn = jnp.dot(bf(ctx), w32_ref[l * H:(l + 1) * H, :],
                       preferred_element_type=f32) + vecs[vr + 2:vr + 3, 0:H]
        h1 = layer_norm(x + attn, vecs[vr + 3:vr + 4, 0:H], vecs[vr + 4:vr + 5, 0:H])

        # FFN
        f = jnp.dot(bf(h1), w128_ref[l * H:(l + 1) * H, :],
                    preferred_element_type=f32) + vecs[vr + 1:vr + 2, 0:FF]
        f = jax.nn.gelu(f)  # TODO(synk): HF BERT uses exact erf GELU; tanh approximation used here.
        f = jnp.dot(bf(f), w32_ref[W32_W2 + l * FF:W32_W2 + (l + 1) * FF, :],
                    preferred_element_type=f32) + vecs[vr + 5:vr + 6, 0:H]
        x = layer_norm(h1 + f, vecs[vr + 6:vr + 7, 0:H], vecs[vr + 7:vr + 8, 0:H])

    # ---- pooler + decoder heads for EVERY token (Dropout = identity at eval) ----
    # merged [pooler | agg | cond] first Linear: one (BS,H) @ (H,3H) matmul
    h3 = jnp.dot(bf(x), w96_ref[W96_HEADS:W96_HEADS + H, :],
                 preferred_element_type=f32) + vecs[VR_BH1:VR_BH1 + 1, 0:3 * H]
    cls_all = jnp.tanh(h3[:, 0:H])                                # pooler output per row
    h_ac = jnp.maximum(h3[:, H:3 * H], 0.0)                       # [agg | cond] hidden, lane-contiguous
    h_conn = jnp.maximum(
        jnp.dot(bf(cls_all), w32_ref[W32_CONN1:W32_CONN1 + H, :],
                preferred_element_type=f32) + vecs[VR_BCONN:VR_BCONN + 1, 0:H], 0.0)
    # block-diagonal second Linears: two dots summed (no lane concat needed)
    out = (jnp.dot(bf(h_ac), w128_ref[W128_W2AC:W128_W2AC + 2 * H, :],
                   preferred_element_type=f32)
           + jnp.dot(bf(h_conn), w128_ref[W128_W2CONN:W128_W2CONN + H, :],
                     preferred_element_type=f32)
           + vecs[VR_B2C:VR_B2C + 1, :])
    out_ref[...] = out.astype(out_ref.dtype)                      # lane-dense (BS,128) store


# ------------------------------ parameters ----------------------------------
def _dense(key, shape, scale=0.02):
    return scale * jax.random.normal(key, shape, jnp.float32)


def init_params(key):
    """Natural (per-module) parameterization mirroring the torch model."""
    keys = iter(jax.random.split(key, 64))
    params = {
        "word_emb": _dense(next(keys), (VOCAB, H)),
        "pos_emb": _dense(next(keys), (S, H)),
        "type_emb": _dense(next(keys), (2, H)),
        "emb_ln_g": jnp.ones((H,), jnp.float32),
        "emb_ln_b": jnp.zeros((H,), jnp.float32),
        "pool_w": _dense(next(keys), (H, H)),
        "pool_b": jnp.zeros((1, H), jnp.float32),
    }
    layers = []
    for _ in range(NUM_LAYERS):
        layers.append(dict(
            wq=_dense(next(keys), (H, H)), bq=jnp.zeros((1, H), jnp.float32),
            wk=_dense(next(keys), (H, H)), bk=jnp.zeros((1, H), jnp.float32),
            wv=_dense(next(keys), (H, H)), bv=jnp.zeros((1, H), jnp.float32),
            wo=_dense(next(keys), (H, H)), bo=jnp.zeros((1, H), jnp.float32),
            ln1_g=jnp.ones((1, H), jnp.float32), ln1_b=jnp.zeros((1, H), jnp.float32),
            w1=_dense(next(keys), (H, FF)), b1=jnp.zeros((1, FF), jnp.float32),
            w2=_dense(next(keys), (FF, H)), b2=jnp.zeros((1, H), jnp.float32),
            ln2_g=jnp.ones((1, H), jnp.float32), ln2_b=jnp.zeros((1, H), jnp.float32),
        ))
    params["layers"] = layers
    # decoder heads: Linear(H,H) -> ReLU -> Linear(H, out)
    params["conn"] = (_dense(next(keys), (H, H)), jnp.zeros((1, H), jnp.float32),
                      _dense(next(keys), (H, 3)), jnp.zeros((1, 3), jnp.float32))
    params["agg"] = (_dense(next(keys), (H, H)), jnp.zeros((1, H), jnp.float32),
                     _dense(next(keys), (H, 7)), jnp.zeros((1, 7), jnp.float32))
    params["cond"] = (_dense(next(keys), (H, H)), jnp.zeros((1, H), jnp.float32),
                      _dense(next(keys), (H, 5)), jnp.zeros((1, 5), jnp.float32))
    return params


def pack_params(p):
    """Pack params into the consolidated slabs the fused kernel expects."""
    layers = p["layers"]
    f32, bf16 = jnp.float32, jnp.bfloat16

    # ---- bf16 matmul-weight slabs grouped by lane width ----
    w96 = jnp.zeros((3 * H, 3 * H), f32)                       # (96, 96)
    for l, lay in enumerate(layers):
        w96 = w96.at[l * H:(l + 1) * H, :].set(
            jnp.concatenate([lay["wq"], lay["wk"], lay["wv"]], axis=1))
    w96 = w96.at[W96_HEADS:W96_HEADS + H, :].set(
        jnp.concatenate([p["pool_w"], p["agg"][0], p["cond"][0]], axis=1))

    w128 = jnp.zeros((W128_W2CONN + H, FF), f32)               # (160, 128)
    for l, lay in enumerate(layers):
        w128 = w128.at[l * H:(l + 1) * H, :].set(lay["w1"])
    # block-diagonal second Linears of the heads, lane-padded to 128
    w128 = w128.at[W128_W2AC:W128_W2AC + H,
                   AGG_OFF:AGG_OFF + AGG_OUT].set(p["agg"][2])
    w128 = w128.at[W128_W2AC + H:W128_W2AC + 2 * H,
                   COND_OFF:COND_OFF + COND_OUT].set(p["cond"][2])
    w128 = w128.at[W128_W2CONN:W128_W2CONN + H,
                   CONN_OFF:CONN_OFF + CONN_OUT].set(p["conn"][2])

    w32 = jnp.zeros((W32_CONN1 + H, H), f32)                   # (352, 32)
    for l, lay in enumerate(layers):
        w32 = w32.at[l * H:(l + 1) * H, :].set(lay["wo"])
        w32 = w32.at[W32_W2 + l * FF:W32_W2 + (l + 1) * FF, :].set(lay["w2"])
    w32 = w32.at[W32_CONN1:W32_CONN1 + H, :].set(p["conn"][0])

    # ---- f32 vector slab (biases / LayerNorm params), 128-lane padded rows ----
    vecs = jnp.zeros((V_ROWS, OUT_LANES), f32)

    def setrow(v, r, x):
        x = x.reshape(-1)
        return v.at[r, :x.shape[0]].set(x)

    vecs = setrow(vecs, VR_ELN_G, p["emb_ln_g"])
    vecs = setrow(vecs, VR_ELN_B, p["emb_ln_b"])
    b2c = jnp.zeros((OUT_LANES,), f32)
    b2c = b2c.at[AGG_OFF:AGG_OFF + AGG_OUT].set(p["agg"][3].reshape(-1))
    b2c = b2c.at[COND_OFF:COND_OFF + COND_OUT].set(p["cond"][3].reshape(-1))
    b2c = b2c.at[CONN_OFF:CONN_OFF + CONN_OUT].set(p["conn"][3].reshape(-1))
    vecs = vecs.at[VR_B2C, :].set(b2c)
    vecs = setrow(vecs, VR_BH1,
                  jnp.concatenate([p["pool_b"], p["agg"][1], p["cond"][1]], axis=1))
    vecs = setrow(vecs, VR_BCONN, p["conn"][1])
    for l, lay in enumerate(layers):
        r = VR_LAYER + 8 * l
        vecs = setrow(vecs, r + 0,
                      jnp.concatenate([lay["bq"], lay["bk"], lay["bv"]], axis=1))
        vecs = setrow(vecs, r + 1, lay["b1"])
        vecs = setrow(vecs, r + 2, lay["bo"])
        vecs = setrow(vecs, r + 3, lay["ln1_g"])
        vecs = setrow(vecs, r + 4, lay["ln1_b"])
        vecs = setrow(vecs, r + 5, lay["b2"])
        vecs = setrow(vecs, r + 6, lay["ln2_g"])
        vecs = setrow(vecs, r + 7, lay["ln2_b"])

    # ---- f32 embedding slab: word, position (pre-tiled per token), token-type ----
    emb = jnp.concatenate([p["word_emb"],
                           jnp.tile(p["pos_emb"], (B, 1)),
                           p["type_emb"]], axis=0)             # (VOCAB+BS+2, H)

    return {"w96": w96.astype(bf16), "w128": w128.astype(bf16),
            "w32": w32.astype(bf16), "vecs": vecs, "emb": emb}


# -------------------------------- forward -----------------------------------
def forward(packed, input_ids, attention_mask, token_type_ids, header_idx):
    # per-call inputs packed into two tiny operands
    ids2 = jnp.stack([input_ids.reshape(-1), token_type_ids.reshape(-1)],
                     axis=1).astype(jnp.int32)                    # (B*S, 2)
    amask = attention_mask.astype(jnp.float32)                    # (B, S)

    vmem = pl.BlockSpec(memory_space=pltpu.MemorySpace.VMEM)
    out = pl.pallas_call(
        _m1_fused_kernel,
        out_shape=jax.ShapeDtypeStruct((BS, OUT_LANES), jnp.float32),
        in_specs=[vmem, vmem, vmem, vmem, vmem, vmem, vmem],
        out_specs=vmem,
    )(ids2, amask, packed["emb"], packed["vecs"],
      packed["w96"], packed["w128"], packed["w32"])

    # conn decoder consumes the pooled CLS token => row 0 of every example.
    cond_conn_op = out.reshape(B, S, OUT_LANES)[:, 0, CONN_OFF:CONN_OFF + CONN_OUT]

    # hiddens[header_idx == 1]: static-size boolean gather (row-major order matches torch).
    # NOTE: pads with index 0 if fewer than TOTAL_HEADERS headers are present.
    sel = jnp.nonzero(header_idx.reshape(-1) == 1, size=TOTAL_HEADERS)[0]
    header_rows = out[sel]                                        # (N, 128)
    agg = header_rows[:, AGG_OFF:AGG_OFF + AGG_OUT]               # (N, 7)
    cond_op = header_rows[:, COND_OFF:COND_OFF + COND_OUT]        # (N, 5)
    return cond_conn_op, cond_op, agg


# ---------------------------------- main -------------------------------------
if __name__ == "__main__":
    key = jax.random.PRNGKey(0)
    k_ids, k_params = jax.random.split(key)

    input_ids = jax.random.randint(k_ids, (B, S), 0, VOCAB, dtype=jnp.int32)
    attention_mask = jnp.ones((B, S), jnp.float32).at[1, S - 2:].set(0.0)
    token_type_ids = jnp.concatenate(
        [jnp.zeros((B, S // 2), jnp.int32), jnp.ones((B, S // 2), jnp.int32)],
        axis=1)
    header_idx = jnp.zeros((B, S), jnp.int32)
    for pos in (2, 6, 10):                      # 3 header tokens per example
        header_idx = header_idx.at[:, pos].set(1)

    params = init_params(k_params)
    packed = pack_params(params)                # packed once, reused every call

    fwd = jax.jit(forward)
    cond_conn_op, cond_op, agg = fwd(packed, input_ids, attention_mask,
                                     token_type_ids, header_idx)
    jax.block_until_ready((cond_conn_op, cond_op, agg))

    assert cond_conn_op.shape == (B, 3)
    assert cond_op.shape == (TOTAL_HEADERS, 5)
    assert agg.shape == (TOTAL_HEADERS, 7)
    print("KERNEL_OK")
</pallas_src>

<mosaic_0001>
module attributes {stable_mosaic.version = 11 : i64} {
  func.func private @main(%arg0: i32) attributes {dimension_semantics = [#tpu.dimension_semantics<core_parallel>], iteration_bounds = array<i64: 2>, tpu.core_type = #tpu.core_type<sc_scalar_subcore>, window_params = []} {
    return
  }
}

module attributes {stable_mosaic.version = 11 : i64} {
  func.func private @main(%arg0: i32) attributes {dimension_semantics = [#tpu.dimension_semantics<core_parallel>], iteration_bounds = array<i64: 2>, tpu.core_type = #tpu.core_type<sc_scalar_subcore>, window_params = []} {
    return
  }
}

module attributes {stable_mosaic.version = 11 : i64} {
  func.func @_m1_fused_kernel(%arg0: memref<32x2xi32, #tpu.memory_space<vmem>>, %arg1: memref<2x16xf32, #tpu.memory_space<vmem>>, %arg2: memref<134x32xf32, #tpu.memory_space<vmem>>, %arg3: memref<24x128xf32, #tpu.memory_space<vmem>>, %arg4: memref<96x96xbf16, #tpu.memory_space<vmem>>, %arg5: memref<160x128xbf16, #tpu.memory_space<vmem>>, %arg6: memref<352x32xbf16, #tpu.memory_space<vmem>>, %arg7: memref<32x128xf32, #tpu.memory_space<vmem>>) attributes {dimension_semantics = [], scalar_prefetch = 0 : i64, scratch_operands = 0 : i64, tpu.core_type = #tpu.core_type<tc>} {
    %c0 = arith.constant 0 : index
    %c0_0 = arith.constant 0 : index
    %0 = vector.load %arg3[%c0, %c0_0] : memref<24x128xf32, #tpu.memory_space<vmem>>, vector<24x128xf32>
    %c0_1 = arith.constant 0 : index
    %c0_2 = arith.constant 0 : index
    %1 = vector.load %arg0[%c0_1, %c0_2] : memref<32x2xi32, #tpu.memory_space<vmem>>, vector<32x2xi32>
    %2 = vector.extract_strided_slice %1 {offsets = [0, 0], sizes = [32, 1], strides = [1, 1]} : vector<32x2xi32> to vector<32x1xi32>
    %3 = vector.extract_strided_slice %1 {offsets = [0, 1], sizes = [32, 1], strides = [1, 1]} : vector<32x2xi32> to vector<32x1xi32>
    %4 = arith.sitofp %3 : vector<32x1xi32> to vector<32x1xf32>
    %5 = tpu.iota {dimensions = array<i32: 1>} : vector<32x100xi32>
    %6 = vector.broadcast %2 : vector<32x1xi32> to vector<32x100xi32>
    %7 = arith.cmpi eq, %6, %5 : vector<32x100xi32>
    %8 = arith.extui %7 : vector<32x100xi1> to vector<32x100xi32>
    %9 = arith.sitofp %8 : vector<32x100xi32> to vector<32x100xf32>
    %c0_3 = arith.constant 0 : index
    %c0_4 = arith.constant 0 : index
    %10 = vector.load %arg2[%c0_3, %c0_4] : memref<134x32xf32, #tpu.memory_space<vmem>>, vector<100x32xf32>
    %cst = arith.constant dense<0.000000e+00> : vector<32x32xf32>
    %11 = tpu.matmul %9, %10, %cst {dimension_numbers = #tpu.dot_dimension_numbers<[1], [0], [0], [1], [0, 0, 1, 1], [], []>} : vector<32x100xf32>, vector<100x32xf32>, vector<32x32xf32> -> vector<32x32xf32>
    %c100 = arith.constant 100 : index
    %c0_5 = arith.constant 0 : index
    %12 = vector.load %arg2[%c100, %c0_5] : memref<134x32xf32, #tpu.memory_space<vmem>>, vector<32x32xf32>
    %13 = arith.addf %11, %12 : vector<32x32xf32>
    %c132 = arith.constant 132 : index
    %c0_6 = arith.constant 0 : index
    %14 = vector.load %arg2[%c132, %c0_6] : memref<134x32xf32, #tpu.memory_space<vmem>>, vector<1x32xf32>
    %c133 = arith.constant 133 : index
    %c0_7 = arith.constant 0 : index
    %15 = vector.load %arg2[%c133, %c0_7] : memref<134x32xf32, #tpu.memory_space<vmem>>, vector<1x32xf32>
    %cst_8 = arith.constant 1.000000e+00 : f32
    %16 = vector.broadcast %cst_8 : f32 to vector<32x1xf32>
    %17 = arith.subf %16, %4 : vector<32x1xf32>
    %18 = vector.broadcast %14 : vector<1x32xf32> to vector<32x32xf32>
    %19 = vector.broadcast %17 : vector<32x1xf32> to vector<32x32xf32>
    %20 = arith.mulf %18, %19 : vector<32x32xf32>
    %21 = arith.addf %13, %20 : vector<32x32xf32>
    %22 = vector.broadcast %15 : vector<1x32xf32> to vector<32x32xf32>
    %23 = vector.broadcast %4 : vector<32x1xf32> to vector<32x32xf32>
    %24 = arith.mulf %22, %23 : vector<32x32xf32>
    %25 = arith.addf %21, %24 : vector<32x32xf32>
    %26 = vector.extract_strided_slice %0 {offsets = [0, 0], sizes = [1, 32], strides = [1, 1]} : vector<24x128xf32> to vector<1x32xf32>
    %27 = vector.extract_strided_slice %0 {offsets = [1, 0], sizes = [1, 32], strides = [1, 1]} : vector<24x128xf32> to vector<1x32xf32>
    %cst_9 = arith.constant dense<0.000000e+00> : vector<32xf32>
    %28 = vector.multi_reduction <add>, %25, %cst_9 [1] : vector<32x32xf32> to vector<32xf32>
    %29 = vector.shape_cast %28 : vector<32xf32> to vector<32x1xf32>
    %cst_10 = arith.constant 3.200000e+01 : f32
    %30 = vector.broadcast %cst_10 : f32 to vector<32x1xf32>
    %31 = arith.divf %29, %30 : vector<32x1xf32>
    %32 = vector.broadcast %31 : vector<32x1xf32> to vector<32x32xf32>
    %33 = arith.subf %25, %32 : vector<32x32xf32>
    %34 = arith.mulf %33, %33 : vector<32x32xf32>
    %cst_11 = arith.constant dense<0.000000e+00> : vector<32xf32>
    %35 = vector.multi_reduction <add>, %34, %cst_11 [1] : vector<32x32xf32> to vector<32xf32>
    %36 = vector.shape_cast %35 : vector<32xf32> to vector<32x1xf32>
    %cst_12 = arith.constant 3.200000e+01 : f32
    %37 = vector.broadcast %cst_12 : f32 to vector<32x1xf32>
    %38 = arith.divf %36, %37 : vector<32x1xf32>
    %39 = vector.broadcast %31 : vector<32x1xf32> to vector<32x32xf32>
    %40 = arith.subf %25, %39 : vector<32x32xf32>
    %cst_13 = arith.constant 9.99999996E-13 : f32
    %41 = vector.broadcast %cst_13 : f32 to vector<32x1xf32>
    %42 = arith.addf %38, %41 : vector<32x1xf32>
    %43 = math.rsqrt %42 : vector<32x1xf32>
    %44 = vector.broadcast %43 : vector<32x1xf32> to vector<32x32xf32>
    %45 = arith.mulf %40, %44 : vector<32x32xf32>
    %46 = vector.broadcast %26 : vector<1x32xf32> to vector<32x32xf32>
    %47 = arith.mulf %45, %46 : vector<32x32xf32>
    %48 = vector.broadcast %27 : vector<1x32xf32> to vector<32x32xf32>
    %49 = arith.addf %47, %48 : vector<32x32xf32>
    %c0_14 = arith.constant 0 : index
    %c0_15 = arith.constant 0 : index
    %50 = vector.load %arg1[%c0_14, %c0_15] : memref<2x16xf32, #tpu.memory_space<vmem>>, vector<2x16xf32>
    %cst_16 = arith.constant 1.000000e+00 : f32
    %51 = vector.broadcast %cst_16 : f32 to vector<2x16xf32>
    %52 = arith.subf %50, %51 : vector<2x16xf32>
    %cst_17 = arith.constant 1.000000e+09 : f32
    %53 = vector.broadcast %cst_17 : f32 to vector<2x16xf32>
    %54 = arith.mulf %52, %53 : vector<2x16xf32>
    %55 = vector.shape_cast %54 : vector<2x16xf32> to vector<2x1x16xf32>
    %56 = vector.shape_cast %55 : vector<2x1x16xf32> to vector<2x1x16xf32>
    %57 = vector.broadcast %56 : vector<2x1x16xf32> to vector<2x16x16xf32>
    %58 = arith.truncf %49 : vector<32x32xf32> to vector<32x32xbf16>
    %c0_18 = arith.constant 0 : index
    %c0_19 = arith.constant 0 : index
    %59 = vector.load %arg4[%c0_18, %c0_19] : memref<96x96xbf16, #tpu.memory_space<vmem>>, vector<32x96xbf16>
    %cst_20 = arith.constant dense<0.000000e+00> : vector<32x96xf32>
    %60 = tpu.matmul %58, %59, %cst_20 {dimension_numbers = #tpu.dot_dimension_numbers<[1], [0], [0], [1], [0, 0, 1, 1], [], []>} : vector<32x32xbf16>, vector<32x96xbf16>, vector<32x96xf32> -> vector<32x96xf32>
    %61 = vector.extract_strided_slice %0 {offsets = [5, 0], sizes = [1, 96], strides = [1, 1]} : vector<24x128xf32> to vector<1x96xf32>
    %62 = vector.broadcast %61 : vector<1x96xf32> to vector<32x96xf32>
    %63 = arith.addf %60, %62 : vector<32x96xf32>
    %64 = vector.shape_cast %63 : vector<32x96xf32> to vector<2x16x96xf32>
    %65 = vector.extract_strided_slice %64 {offsets = [0, 0, 0], sizes = [2, 16, 8], strides = [1, 1, 1]} : vector<2x16x96xf32> to vector<2x16x8xf32>
    %66 = vector.extract_strided_slice %64 {offsets = [0, 0, 32], sizes = [2, 16, 8], strides = [1, 1, 1]} : vector<2x16x96xf32> to vector<2x16x8xf32>
    %67 = vector.extract_strided_slice %64 {offsets = [0, 0, 64], sizes = [2, 16, 8], strides = [1, 1, 1]} : vector<2x16x96xf32> to vector<2x16x8xf32>
    %68 = arith.truncf %65 : vector<2x16x8xf32> to vector<2x16x8xbf16>
    %69 = arith.truncf %66 : vector<2x16x8xf32> to vector<2x16x8xbf16>
    "tpu.trace_start"() <{level = 10 : i32, message = "bqd,bkd->bqk"}> : () -> ()
    %cst_21 = arith.constant dense<0.000000e+00> : vector<2x16x16xf32>
    %70 = tpu.matmul %68, %69, %cst_21 {dimension_numbers = #tpu.dot_dimension_numbers<[2], [2], [1], [1], [0, 0, 0, 1, 1, 1], [0], [0]>} : vector<2x16x8xbf16>, vector<2x16x8xbf16>, vector<2x16x16xf32> -> vector<2x16x16xf32>
    "tpu.trace_stop"() : () -> ()
    %cst_22 = arith.constant 0.353553385 : f32
    %71 = vector.broadcast %cst_22 : f32 to vector<2x16x16xf32>
    %72 = arith.mulf %70, %71 : vector<2x16x16xf32>
    %73 = arith.addf %72, %57 : vector<2x16x16xf32>
    %cst_23 = arith.constant dense<0xFF800000> : vector<2x16xf32>
    %74 = vector.multi_reduction <maximumf>, %73, %cst_23 [2] : vector<2x16x16xf32> to vector<2x16xf32>
    %75 = vector.shape_cast %74 : vector<2x16xf32> to vector<2x16x1xf32>
    %76 = vector.broadcast %75 : vector<2x16x1xf32> to vector<2x16x16xf32>
    %77 = arith.subf %73, %76 : vector<2x16x16xf32>
    %78 = math.exp %77 : vector<2x16x16xf32>
    %cst_24 = arith.constant dense<0.000000e+00> : vector<2x16xf32>
    %79 = vector.multi_reduction <add>, %78, %cst_24 [2] : vector<2x16x16xf32> to vector<2x16xf32>
    %80 = vector.shape_cast %79 : vector<2x16xf32> to vector<2x16x1xf32>
    %81 = vector.broadcast %80 : vector<2x16x1xf32> to vector<2x16x16xf32>
    %82 = arith.divf %78, %81 : vector<2x16x16xf32>
    %83 = arith.truncf %82 : vector<2x16x16xf32> to vector<2x16x16xbf16>
    %84 = arith.truncf %67 : vector<2x16x8xf32> to vector<2x16x8xbf16>
    "tpu.trace_start"() <{level = 10 : i32, message = "bqk,bkd->bqd"}> : () -> ()
    %cst_25 = arith.constant dense<0.000000e+00> : vector<2x16x8xf32>
    %85 = tpu.matmul %83, %84, %cst_25 {dimension_numbers = #tpu.dot_dimension_numbers<[2], [1], [1], [2], [0, 0, 0, 1, 1, 2], [0], [0]>} : vector<2x16x16xbf16>, vector<2x16x8xbf16>, vector<2x16x8xf32> -> vector<2x16x8xf32>
    "tpu.trace_stop"() : () -> ()
    %86 = vector.extract_strided_slice %64 {offsets = [0, 0, 8], sizes = [2, 16, 8], strides = [1, 1, 1]} : vector<2x16x96xf32> to vector<2x16x8xf32>
    %87 = vector.extract_strided_slice %64 {offsets = [0, 0, 40], sizes = [2, 16, 8], strides = [1, 1, 1]} : vector<2x16x96xf32> to vector<2x16x8xf32>
    %88 = vector.extract_strided_slice %64 {offsets = [0, 0, 72], sizes = [2, 16, 8], strides = [1, 1, 1]} : vector<2x16x96xf32> to vector<2x16x8xf32>
    %89 = arith.truncf %86 : vector<2x16x8xf32> to vector<2x16x8xbf16>
    %90 = arith.truncf %87 : vector<2x16x8xf32> to vector<2x16x8xbf16>
    "tpu.trace_start"() <{level = 10 : i32, message = "bqd,bkd->bqk"}> : () -> ()
    %cst_26 = arith.constant dense<0.000000e+00> : vector<2x16x16xf32>
    %91 = tpu.matmul %89, %90, %cst_26 {dimension_numbers = #tpu.dot_dimension_numbers<[2], [2], [1], [1], [0, 0, 0, 1, 1, 1], [0], [0]>} : vector<2x16x8xbf16>, vector<2x16x8xbf16>, vector<2x16x16xf32> -> vector<2x16x16xf32>
    "tpu.trace_stop"() : () -> ()
    %cst_27 = arith.constant 0.353553385 : f32
    %92 = vector.broadcast %cst_27 : f32 to vector<2x16x16xf32>
    %93 = arith.mulf %91, %92 : vector<2x16x16xf32>
    %94 = arith.addf %93, %57 : vector<2x16x16xf32>
    %cst_28 = arith.constant dense<0xFF800000> : vector<2x16xf32>
    %95 = vector.multi_reduction <maximumf>, %94, %cst_28 [2] : vector<2x16x16xf32> to vector<2x16xf32>
    %96 = vector.shape_cast %95 : vector<2x16xf32> to vector<2x16x1xf32>
    %97 = vector.broadcast %96 : vector<2x16x1xf32> to vector<2x16x16xf32>
    %98 = arith.subf %94, %97 : vector<2x16x16xf32>
    %99 = math.exp %98 : vector<2x16x16xf32>
    %cst_29 = arith.constant dense<0.000000e+00> : vector<2x16xf32>
    %100 = vector.multi_reduction <add>, %99, %cst_29 [2] : vector<2x16x16xf32> to vector<2x16xf32>
    %101 = vector.shape_cast %100 : vector<2x16xf32> to vector<2x16x1xf32>
    %102 = vector.broadcast %101 : vector<2x16x1xf32> to vector<2x16x16xf32>
    %103 = arith.divf %99, %102 : vector<2x16x16xf32>
    %104 = arith.truncf %103 : vector<2x16x16xf32> to vector<2x16x16xbf16>
    %105 = arith.truncf %88 : vector<2x16x8xf32> to vector<2x16x8xbf16>
    "tpu.trace_start"() <{level = 10 : i32, message = "bqk,bkd->bqd"}> : () -> ()
    %cst_30 = arith.constant dense<0.000000e+00> : vector<2x16x8xf32>
    %106 = tpu.matmul %104, %105, %cst_30 {dimension_numbers = #tpu.dot_dimension_numbers<[2], [1], [1], [2], [0, 0, 0, 1, 1, 2], [0], [0]>} : vector<2x16x16xbf16>, vector<2x16x8xbf16>, vector<2x16x8xf32> -> vector<2x16x8xf32>
    "tpu.trace_stop"() : () -> ()
    %107 = vector.extract_strided_slice %64 {offsets = [0, 0, 16], sizes = [2, 16, 8], strides = [1, 1, 1]} : vector<2x16x96xf32> to vector<2x16x8xf32>
    %108 = vector.extract_strided_slice %64 {offsets = [0, 0, 48], sizes = [2, 16, 8], strides = [1, 1, 1]} : vector<2x16x96xf32> to vector<2x16x8xf32>
    %109 = vector.extract_strided_slice %64 {offsets = [0, 0, 80], sizes = [2, 16, 8], strides = [1, 1, 1]} : vector<2x16x96xf32> to vector<2x16x8xf32>
    %110 = arith.truncf %107 : vector<2x16x8xf32> to vector<2x16x8xbf16>
    %111 = arith.truncf %108 : vector<2x16x8xf32> to vector<2x16x8xbf16>
    "tpu.trace_start"() <{level = 10 : i32, message = "bqd,bkd->bqk"}> : () -> ()
    %cst_31 = arith.constant dense<0.000000e+00> : vector<2x16x16xf32>
    %112 = tpu.matmul %110, %111, %cst_31 {dimension_numbers = #tpu.dot_dimension_numbers<[2], [2], [1], [1], [0, 0, 0, 1, 1, 1], [0], [0]>} : vector<2x16x8xbf16>, vector<2x16x8xbf16>, vector<2x16x16xf32> -> vector<2x16x16xf32>
    "tpu.trace_stop"() : () -> ()
    %cst_32 = arith.constant 0.353553385 : f32
    %113 = vector.broadcast %cst_32 : f32 to vector<2x16x16xf32>
    %114 = arith.mulf %112, %113 : vector<2x16x16xf32>
    %115 = arith.addf %114, %57 : vector<2x16x16xf32>
    %cst_33 = arith.constant dense<0xFF800000> : vector<2x16xf32>
    %116 = vector.multi_reduction <maximumf>, %115, %cst_33 [2] : vector<2x16x16xf32> to vector<2x16xf32>
    %117 = vector.shape_cast %116 : vector<2x16xf32> to vector<2x16x1xf32>
    %118 = vector.broadcast %117 : vector<2x16x1xf32> to vector<2x16x16xf32>
    %119 = arith.subf %115, %118 : vector<2x16x16xf32>
    %120 = math.exp %119 : vector<2x16x16xf32>
    %cst_34 = arith.constant dense<0.000000e+00> : vector<2x16xf32>
    %121 = vector.multi_reduction <add>, %120, %cst_34 [2] : vector<2x16x16xf32> to vector<2x16xf32>
    %122 = vector.shape_cast %121 : vector<2x16xf32> to vector<2x16x1xf32>
    %123 = vector.broadcast %122 : vector<2x16x1xf32> to vector<2x16x16xf32>
    %124 = arith.divf %120, %123 : vector<2x16x16xf32>
    %125 = arith.truncf %124 : vector<2x16x16xf32> to vector<2x16x16xbf16>
    %126 = arith.truncf %109 : vector<2x16x8xf32> to vector<2x16x8xbf16>
    "tpu.trace_start"() <{level = 10 : i32, message = "bqk,bkd->bqd"}> : () -> ()
    %cst_35 = arith.constant dense<0.000000e+00> : vector<2x16x8xf32>
    %127 = tpu.matmul %125, %126, %cst_35 {dimension_numbers = #tpu.dot_dimension_numbers<[2], [1], [1], [2], [0, 0, 0, 1, 1, 2], [0], [0]>} : vector<2x16x16xbf16>, vector<2x16x8xbf16>, vector<2x16x8xf32> -> vector<2x16x8xf32>
    "tpu.trace_stop"() : () -> ()
    %128 = vector.extract_strided_slice %64 {offsets = [0, 0, 24], sizes = [2, 16, 8], strides = [1, 1, 1]} : vector<2x16x96xf32> to vector<2x16x8xf32>
    %129 = vector.extract_strided_slice %64 {offsets = [0, 0, 56], sizes = [2, 16, 8], strides = [1, 1, 1]} : vector<2x16x96xf32> to vector<2x16x8xf32>
    %130 = vector.extract_strided_slice %64 {offsets = [0, 0, 88], sizes = [2, 16, 8], strides = [1, 1, 1]} : vector<2x16x96xf32> to vector<2x16x8xf32>
    %131 = arith.truncf %128 : vector<2x16x8xf32> to vector<2x16x8xbf16>
    %132 = arith.truncf %129 : vector<2x16x8xf32> to vector<2x16x8xbf16>
    "tpu.trace_start"() <{level = 10 : i32, message = "bqd,bkd->bqk"}> : () -> ()
    %cst_36 = arith.constant dense<0.000000e+00> : vector<2x16x16xf32>
    %133 = tpu.matmul %131, %132, %cst_36 {dimension_numbers = #tpu.dot_dimension_numbers<[2], [2], [1], [1], [0, 0, 0, 1, 1, 1], [0], [0]>} : vector<2x16x8xbf16>, vector<2x16x8xbf16>, vector<2x16x16xf32> -> vector<2x16x16xf32>
    "tpu.trace_stop"() : () -> ()
    %cst_37 = arith.constant 0.353553385 : f32
    %134 = vector.broadcast %cst_37 : f32 to vector<2x16x16xf32>
    %135 = arith.mulf %133, %134 : vector<2x16x16xf32>
    %136 = arith.addf %135, %57 : vector<2x16x16xf32>
    %cst_38 = arith.constant dense<0xFF800000> : vector<2x16xf32>
    %137 = vector.multi_reduction <maximumf>, %136, %cst_38 [2] : vector<2x16x16xf32> to vector<2x16xf32>
    %138 = vector.shape_cast %137 : vector<2x16xf32> to vector<2x16x1xf32>
    %139 = vector.broadcast %138 : vector<2x16x1xf32> to vector<2x16x16xf32>
    %140 = arith.subf %136, %139 : vector<2x16x16xf32>
    %141 = math.exp %140 : vector<2x16x16xf32>
    %cst_39 = arith.constant dense<0.000000e+00> : vector<2x16xf32>
    %142 = vector.multi_reduction <add>, %141, %cst_39 [2] : vector<2x16x16xf32> to vector<2x16xf32>
    %143 = vector.shape_cast %142 : vector<2x16xf32> to vector<2x16x1xf32>
    %144 = vector.broadcast %143 : vector<2x16x1xf32> to vector<2x16x16xf32>
    %145 = arith.divf %141, %144 : vector<2x16x16xf32>
    %146 = arith.truncf %145 : vector<2x16x16xf32> to vector<2x16x16xbf16>
    %147 = arith.truncf %130 : vector<2x16x8xf32> to vector<2x16x8xbf16>
    "tpu.trace_start"() <{level = 10 : i32, message = "bqk,bkd->bqd"}> : () -> ()
    %cst_40 = arith.constant dense<0.000000e+00> : vector<2x16x8xf32>
    %148 = tpu.matmul %146, %147, %cst_40 {dimension_numbers = #tpu.dot_dimension_numbers<[2], [1], [1], [2], [0, 0, 0, 1, 1, 2], [0], [0]>} : vector<2x16x16xbf16>, vector<2x16x8xbf16>, vector<2x16x8xf32> -> vector<2x16x8xf32>
    "tpu.trace_stop"() : () -> ()
    %149 = tpu.concatenate %85, %106, %127, %148 in 2 : vector<2x16x8xf32>, vector<2x16x8xf32>, vector<2x16x8xf32>, vector<2x16x8xf32> -> vector<2x16x32xf32>
    %150 = vector.shape_cast %149 : vector<2x16x32xf32> to vector<32x32xf32>
    %151 = arith.truncf %150 : vector<32x32xf32> to vector<32x32xbf16>
    %c0_41 = arith.constant 0 : index
    %c0_42 = arith.constant 0 : index
    %152 = vector.load %arg6[%c0_41, %c0_42] : memref<352x32xbf16, #tpu.memory_space<vmem>>, vector<32x32xbf16>
    %cst_43 = arith.constant dense<0.000000e+00> : vector<32x32xf32>
    %153 = tpu.matmul %151, %152, %cst_43 {dimension_numbers = #tpu.dot_dimension_numbers<[1], [0], [0], [1], [0, 0, 1, 1], [], []>} : vector<32x32xbf16>, vector<32x32xbf16>, vector<32x32xf32> -> vector<32x32xf32>
    %154 = vector.extract_strided_slice %0 {offsets = [7, 0], sizes = [1, 32], strides = [1, 1]} : vector<24x128xf32> to vector<1x32xf32>
    %155 = vector.broadcast %154 : vector<1x32xf32> to vector<32x32xf32>
    %156 = arith.addf %153, %155 : vector<32x32xf32>
    %157 = arith.addf %49, %156 : vector<32x32xf32>
    %158 = vector.extract_strided_slice %0 {offsets = [8, 0], sizes = [1, 32], strides = [1, 1]} : vector<24x128xf32> to vector<1x32xf32>
    %159 = vector.extract_strided_slice %0 {offsets = [9, 0], sizes = [1, 32], strides = [1, 1]} : vector<24x128xf32> to vector<1x32xf32>
    %cst_44 = arith.constant dense<0.000000e+00> : vector<32xf32>
    %160 = vector.multi_reduction <add>, %157, %cst_44 [1] : vector<32x32xf32> to vector<32xf32>
    %161 = vector.shape_cast %160 : vector<32xf32> to vector<32x1xf32>
    %cst_45 = arith.constant 3.200000e+01 : f32
    %162 = vector.broadcast %cst_45 : f32 to vector<32x1xf32>
    %163 = arith.divf %161, %162 : vector<32x1xf32>
    %164 = vector.broadcast %163 : vector<32x1xf32> to vector<32x32xf32>
    %165 = arith.subf %157, %164 : vector<32x32xf32>
    %166 = arith.mulf %165, %165 : vector<32x32xf32>
    %cst_46 = arith.constant dense<0.000000e+00> : vector<32xf32>
    %167 = vector.multi_reduction <add>, %166, %cst_46 [1] : vector<32x32xf32> to vector<32xf32>
    %168 = vector.shape_cast %167 : vector<32xf32> to vector<32x1xf32>
    %cst_47 = arith.constant 3.200000e+01 : f32
    %169 = vector.broadcast %cst_47 : f32 to vector<32x1xf32>
    %170 = arith.divf %168, %169 : vector<32x1xf32>
    %171 = vector.broadcast %163 : vector<32x1xf32> to vector<32x32xf32>
    %172 = arith.subf %157, %171 : vector<32x32xf32>
    %cst_48 = arith.constant 9.99999996E-13 : f32
    %173 = vector.broadcast %cst_48 : f32 to vector<32x1xf32>
    %174 = arith.addf %170, %173 : vector<32x1xf32>
    %175 = math.rsqrt %174 : vector<32x1xf32>
    %176 = vector.broadcast %175 : vector<32x1xf32> to vector<32x32xf32>
    %177 = arith.mulf %172, %176 : vector<32x32xf32>
    %178 = vector.broadcast %158 : vector<1x32xf32> to vector<32x32xf32>
    %179 = arith.mulf %177, %178 : vector<32x32xf32>
    %180 = vector.broadcast %159 : vector<1x32xf32> to vector<32x32xf32>
    %181 = arith.addf %179, %180 : vector<32x32xf32>
    %182 = arith.truncf %181 : vector<32x32xf32> to vector<32x32xbf16>
    %c0_49 = arith.constant 0 : index
    %c0_50 = arith.constant 0 : index
    %183 = vector.load %arg5[%c0_49, %c0_50] : memref<160x128xbf16, #tpu.memory_space<vmem>>, vector<32x128xbf16>
    %cst_51 = arith.constant dense<0.000000e+00> : vector<32x128xf32>
    %184 = tpu.matmul %182, %183, %cst_51 {dimension_numbers = #tpu.dot_dimension_numbers<[1], [0], [0], [1], [0, 0, 1, 1], [], []>} : vector<32x32xbf16>, vector<32x128xbf16>, vector<32x128xf32> -> vector<32x128xf32>
    %185 = vector.extract_strided_slice %0 {offsets = [6, 0], sizes = [1, 128], strides = [1, 1]} : vector<24x128xf32> to vector<1x128xf32>
    %186 = vector.broadcast %185 : vector<1x128xf32> to vector<32x128xf32>
    %187 = arith.addf %184, %186 : vector<32x128xf32>
    %188 = arith.mulf %187, %187 : vector<32x128xf32>
    %189 = arith.mulf %187, %188 : vector<32x128xf32>
    %cst_52 = arith.constant 4.471500e-02 : f32
    %190 = vector.broadcast %cst_52 : f32 to vector<32x128xf32>
    %191 = arith.mulf %190, %189 : vector<32x128xf32>
    %192 = arith.addf %187, %191 : vector<32x128xf32>
    %cst_53 = arith.constant 0.797884583 : f32
    %193 = vector.broadcast %cst_53 : f32 to vector<32x128xf32>
    %194 = arith.mulf %193, %192 : vector<32x128xf32>
    %195 = math.tanh %194 : vector<32x128xf32>
    %cst_54 = arith.constant 1.000000e+00 : f32
    %196 = vector.broadcast %cst_54 : f32 to vector<32x128xf32>
    %197 = arith.addf %196, %195 : vector<32x128xf32>
    %cst_55 = arith.constant 5.000000e-01 : f32
    %198 = vector.broadcast %cst_55 : f32 to vector<32x128xf32>
    %199 = arith.mulf %198, %197 : vector<32x128xf32>
    %200 = arith.mulf %187, %199 : vector<32x128xf32>
    %201 = arith.truncf %200 : vector<32x128xf32> to vector<32x128xbf16>
    %c64 = arith.constant 64 : index
    %c0_56 = arith.constant 0 : index
    %202 = vector.load %arg6[%c64, %c0_56] : memref<352x32xbf16, #tpu.memory_space<vmem>>, vector<128x32xbf16>
    %cst_57 = arith.constant dense<0.000000e+00> : vector<32x32xf32>
    %203 = tpu.matmul %201, %202, %cst_57 {dimension_numbers = #tpu.dot_dimension_numbers<[1], [0], [0], [1], [0, 0, 1, 1], [], []>} : vector<32x128xbf16>, vector<128x32xbf16>, vector<32x32xf32> -> vector<32x32xf32>
    %204 = vector.extract_strided_slice %0 {offsets = [10, 0], sizes = [1, 32], strides = [1, 1]} : vector<24x128xf32> to vector<1x32xf32>
    %205 = vector.broadcast %204 : vector<1x32xf32> to vector<32x32xf32>
    %206 = arith.addf %203, %205 : vector<32x32xf32>
    %207 = arith.addf %181, %206 : vector<32x32xf32>
    %208 = vector.extract_strided_slice %0 {offsets = [11, 0], sizes = [1, 32], strides = [1, 1]} : vector<24x128xf32> to vector<1x32xf32>
    %209 = vector.extract_strided_slice %0 {offsets = [12, 0], sizes = [1, 32], strides = [1, 1]} : vector<24x128xf32> to vector<1x32xf32>
    %cst_58 = arith.constant dense<0.000000e+00> : vector<32xf32>
    %210 = vector.multi_reduction <add>, %207, %cst_58 [1] : vector<32x32xf32> to vector<32xf32>
    %211 = vector.shape_cast %210 : vector<32xf32> to vector<32x1xf32>
    %cst_59 = arith.constant 3.200000e+01 : f32
    %212 = vector.broadcast %cst_59 : f32 to vector<32x1xf32>
    %213 = arith.divf %211, %212 : vector<32x1xf32>
    %214 = vector.broadcast %213 : vector<32x1xf32> to vector<32x32xf32>
    %215 = arith.subf %207, %214 : vector<32x32xf32>
    %216 = arith.mulf %215, %215 : vector<32x32xf32>
    %cst_60 = arith.constant dense<0.000000e+00> : vector<32xf32>
    %217 = vector.multi_reduction <add>, %216, %cst_60 [1] : vector<32x32xf32> to vector<32xf32>
    %218 = vector.shape_cast %217 : vector<32xf32> to vector<32x1xf32>
    %cst_61 = arith.constant 3.200000e+01 : f32
    %219 = vector.broadcast %cst_61 : f32 to vector<32x1xf32>
    %220 = arith.divf %218, %219 : vector<32x1xf32>
    %221 = vector.broadcast %213 : vector<32x1xf32> to vector<32x32xf32>
    %222 = arith.subf %207, %221 : vector<32x32xf32>
    %cst_62 = arith.constant 9.99999996E-13 : f32
    %223 = vector.broadcast %cst_62 : f32 to vector<32x1xf32>
    %224 = arith.addf %220, %223 : vector<32x1xf32>
    %225 = math.rsqrt %224 : vector<32x1xf32>
    %226 = vector.broadcast %225 : vector<32x1xf32> to vector<32x32xf32>
    %227 = arith.mulf %222, %226 : vector<32x32xf32>
    %228 = vector.broadcast %208 : vector<1x32xf32> to vector<32x32xf32>
    %229 = arith.mulf %227, %228 : vector<32x32xf32>
    %230 = vector.broadcast %209 : vector<1x32xf32> to vector<32x32xf32>
    %231 = arith.addf %229, %230 : vector<32x32xf32>
    %232 = arith.truncf %231 : vector<32x32xf32> to vector<32x32xbf16>
    %c32 = arith.constant 32 : index
    %c0_63 = arith.constant 0 : index
    %233 = vector.load %arg4[%c32, %c0_63] : memref<96x96xbf16, #tpu.memory_space<vmem>>, vector<32x96xbf16>
    %cst_64 = arith.constant dense<0.000000e+00> : vector<32x96xf32>
    %234 = tpu.matmul %232, %233, %cst_64 {dimension_numbers = #tpu.dot_dimension_numbers<[1], [0], [0], [1], [0, 0, 1, 1], [], []>} : vector<32x32xbf16>, vector<32x96xbf16>, vector<32x96xf32> -> vector<32x96xf32>
    %235 = vector.extract_strided_slice %0 {offsets = [13, 0], sizes = [1, 96], strides = [1, 1]} : vector<24x128xf32> to vector<1x96xf32>
    %236 = vector.broadcast %235 : vector<1x96xf32> to vector<32x96xf32>
    %237 = arith.addf %234, %236 : vector<32x96xf32>
    %238 = vector.shape_cast %237 : vector<32x96xf32> to vector<2x16x96xf32>
    %239 = vector.extract_strided_slice %238 {offsets = [0, 0, 0], sizes = [2, 16, 8], strides = [1, 1, 1]} : vector<2x16x96xf32> to vector<2x16x8xf32>
    %240 = vector.extract_strided_slice %238 {offsets = [0, 0, 32], sizes = [2, 16, 8], strides = [1, 1, 1]} : vector<2x16x96xf32> to vector<2x16x8xf32>
    %241 = vector.extract_strided_slice %238 {offsets = [0, 0, 64], sizes = [2, 16, 8], strides = [1, 1, 1]} : vector<2x16x96xf32> to vector<2x16x8xf32>
    %242 = arith.truncf %239 : vector<2x16x8xf32> to vector<2x16x8xbf16>
    %243 = arith.truncf %240 : vector<2x16x8xf32> to vector<2x16x8xbf16>
    "tpu.trace_start"() <{level = 10 : i32, message = "bqd,bkd->bqk"}> : () -> ()
    %cst_65 = arith.constant dense<0.000000e+00> : vector<2x16x16xf32>
    %244 = tpu.matmul %242, %243, %cst_65 {dimension_numbers = #tpu.dot_dimension_numbers<[2], [2], [1], [1], [0, 0, 0, 1, 1, 1], [0], [0]>} : vector<2x16x8xbf16>, vector<2x16x8xbf16>, vector<2x16x16xf32> -> vector<2x16x16xf32>
    "tpu.trace_stop"() : () -> ()
    %cst_66 = arith.constant 0.353553385 : f32
    %245 = vector.broadcast %cst_66 : f32 to vector<2x16x16xf32>
    %246 = arith.mulf %244, %245 : vector<2x16x16xf32>
    %247 = arith.addf %246, %57 : vector<2x16x16xf32>
    %cst_67 = arith.constant dense<0xFF800000> : vector<2x16xf32>
    %248 = vector.multi_reduction <maximumf>, %247, %cst_67 [2] : vector<2x16x16xf32> to vector<2x16xf32>
    %249 = vector.shape_cast %248 : vector<2x16xf32> to vector<2x16x1xf32>
    %250 = vector.broadcast %249 : vector<2x16x1xf32> to vector<2x16x16xf32>
    %251 = arith.subf %247, %250 : vector<2x16x16xf32>
    %252 = math.exp %251 : vector<2x16x16xf32>
    %cst_68 = arith.constant dense<0.000000e+00> : vector<2x16xf32>
    %253 = vector.multi_reduction <add>, %252, %cst_68 [2] : vector<2x16x16xf32> to vector<2x16xf32>
    %254 = vector.shape_cast %253 : vector<2x16xf32> to vector<2x16x1xf32>
    %255 = vector.broadcast %254 : vector<2x16x1xf32> to vector<2x16x16xf32>
    %256 = arith.divf %252, %255 : vector<2x16x16xf32>
    %257 = arith.truncf %256 : vector<2x16x16xf32> to vector<2x16x16xbf16>
    %258 = arith.truncf %241 : vector<2x16x8xf32> to vector<2x16x8xbf16>
    "tpu.trace_start"() <{level = 10 : i32, message = "bqk,bkd->bqd"}> : () -> ()
    %cst_69 = arith.constant dense<0.000000e+00> : vector<2x16x8xf32>
    %259 = tpu.matmul %257, %258, %cst_69 {dimension_numbers = #tpu.dot_dimension_numbers<[2], [1], [1], [2], [0, 0, 0, 1, 1, 2], [0], [0]>} : vector<2x16x16xbf16>, vector<2x16x8xbf16>, vector<2x16x8xf32> -> vector<2x16x8xf32>
    "tpu.trace_stop"() : () -> ()
    %260 = vector.extract_strided_slice %238 {offsets = [0, 0, 8], sizes = [2, 16, 8], strides = [1, 1, 1]} : vector<2x16x96xf32> to vector<2x16x8xf32>
    %261 = vector.extract_strided_slice %238 {offsets = [0, 0, 40], sizes = [2, 16, 8], strides = [1, 1, 1]} : vector<2x16x96xf32> to vector<2x16x8xf32>
    %262 = vector.extract_strided_slice %238 {offsets = [0, 0, 72], sizes = [2, 16, 8], strides = [1, 1, 1]} : vector<2x16x96xf32> to vector<2x16x8xf32>
    %263 = arith.truncf %260 : vector<2x16x8xf32> to vector<2x16x8xbf16>
    %264 = arith.truncf %261 : vector<2x16x8xf32> to vector<2x16x8xbf16>
    "tpu.trace_start"() <{level = 10 : i32, message = "bqd,bkd->bqk"}> : () -> ()
    %cst_70 = arith.constant dense<0.000000e+00> : vector<2x16x16xf32>
    %265 = tpu.matmul %263, %264, %cst_70 {dimension_numbers = #tpu.dot_dimension_numbers<[2], [2], [1], [1], [0, 0, 0, 1, 1, 1], [0], [0]>} : vector<2x16x8xbf16>, vector<2x16x8xbf16>, vector<2x16x16xf32> -> vector<2x16x16xf32>
    "tpu.trace_stop"() : () -> ()
    %cst_71 = arith.constant 0.353553385 : f32
    %266 = vector.broadcast %cst_71 : f32 to vector<2x16x16xf32>
    %267 = arith.mulf %265, %266 : vector<2x16x16xf32>
    %268 = arith.addf %267, %57 : vector<2x16x16xf32>
    %cst_72 = arith.constant dense<0xFF800000> : vector<2x16xf32>
    %269 = vector.multi_reduction <maximumf>, %268, %cst_72 [2] : vector<2x16x16xf32> to vector<2x16xf32>
    %270 = vector.shape_cast %269 : vector<2x16xf32> to vector<2x16x1xf32>
    %271 = vector.broadcast %270 : vector<2x16x1xf32> to vector<2x16x16xf32>
    %272 = arith.subf %268, %271 : vector<2x16x16xf32>
    %273 = math.exp %272 : vector<2x16x16xf32>
    %cst_73 = arith.constant dense<0.000000e+00> : vector<2x16xf32>
    %274 = vector.multi_reduction <add>, %273, %cst_73 [2] : vector<2x16x16xf32> to vector<2x16xf32>
    %275 = vector.shape_cast %274 : vector<2x16xf32> to vector<2x16x1xf32>
    %276 = vector.broadcast %275 : vector<2x16x1xf32> to vector<2x16x16xf32>
    %277 = arith.divf %273, %276 : vector<2x16x16xf32>
    %278 = arith.truncf %277 : vector<2x16x16xf32> to vector<2x16x16xbf16>
    %279 = arith.truncf %262 : vector<2x16x8xf32> to vector<2x16x8xbf16>
    "tpu.trace_start"() <{level = 10 : i32, message = "bqk,bkd->bqd"}> : () -> ()
    %cst_74 = arith.constant dense<0.000000e+00> : vector<2x16x8xf32>
    %280 = tpu.matmul %278, %279, %cst_74 {dimension_numbers = #tpu.dot_dimension_numbers<[2], [1], [1], [2], [0, 0, 0, 1, 1, 2], [0], [0]>} : vector<2x16x16xbf16>, vector<2x16x8xbf16>, vector<2x16x8xf32> -> vector<2x16x8xf32>
    "tpu.trace_stop"() : () -> ()
    %281 = vector.extract_strided_slice %238 {offsets = [0, 0, 16], sizes = [2, 16, 8], strides = [1, 1, 1]} : vector<2x16x96xf32> to vector<2x16x8xf32>
    %282 = vector.extract_strided_slice %238 {offsets = [0, 0, 48], sizes = [2, 16, 8], strides = [1, 1, 1]} : vector<2x16x96xf32> to vector<2x16x8xf32>
    %283 = vector.extract_strided_slice %238 {offsets = [0, 0, 80], sizes = [2, 16, 8], strides = [1, 1, 1]} : vector<2x16x96xf32> to vector<2x16x8xf32>
    %284 = arith.truncf %281 : vector<2x16x8xf32> to vector<2x16x8xbf16>
    %285 = arith.truncf %282 : vector<2x16x8xf32> to vector<2x16x8xbf16>
    "tpu.trace_start"() <{level = 10 : i32, message = "bqd,bkd->bqk"}> : () -> ()
    %cst_75 = arith.constant dense<0.000000e+00> : vector<2x16x16xf32>
    %286 = tpu.matmul %284, %285, %cst_75 {dimension_numbers = #tpu.dot_dimension_numbers<[2], [2], [1], [1], [0, 0, 0, 1, 1, 1], [0], [0]>} : vector<2x16x8xbf16>, vector<2x16x8xbf16>, vector<2x16x16xf32> -> vector<2x16x16xf32>
    "tpu.trace_stop"() : () -> ()
    %cst_76 = arith.constant 0.353553385 : f32
    %287 = vector.broadcast %cst_76 : f32 to vector<2x16x16xf32>
    %288 = arith.mulf %286, %287 : vector<2x16x16xf32>
    %289 = arith.addf %288, %57 : vector<2x16x16xf32>
    %cst_77 = arith.constant dense<0xFF800000> : vector<2x16xf32>
    %290 = vector.multi_reduction <maximumf>, %289, %cst_77 [2] : vector<2x16x16xf32> to vector<2x16xf32>
    %291 = vector.shape_cast %290 : vector<2x16xf32> to vector<2x16x1xf32>
    %292 = vector.broadcast %291 : vector<2x16x1xf32> to vector<2x16x16xf32>
    %293 = arith.subf %289, %292 : vector<2x16x16xf32>
    %294 = math.exp %293 : vector<2x16x16xf32>
    %cst_78 = arith.constant dense<0.000000e+00> : vector<2x16xf32>
    %295 = vector.multi_reduction <add>, %294, %cst_78 [2] : vector<2x16x16xf32> to vector<2x16xf32>
    %296 = vector.shape_cast %295 : vector<2x16xf32> to vector<2x16x1xf32>
    %297 = vector.broadcast %296 : vector<2x16x1xf32> to vector<2x16x16xf32>
    %298 = arith.divf %294, %297 : vector<2x16x16xf32>
    %299 = arith.truncf %298 : vector<2x16x16xf32> to vector<2x16x16xbf16>
    %300 = arith.truncf %283 : vector<2x16x8xf32> to vector<2x16x8xbf16>
    "tpu.trace_start"() <{level = 10 : i32, message = "bqk,bkd->bqd"}> : () -> ()
    %cst_79 = arith.constant dense<0.000000e+00> : vector<2x16x8xf32>
    %301 = tpu.matmul %299, %300, %cst_79 {dimension_numbers = #tpu.dot_dimension_numbers<[2], [1], [1], [2], [0, 0, 0, 1, 1, 2], [0], [0]>} : vector<2x16x16xbf16>, vector<2x16x8xbf16>, vector<2x16x8xf32> -> vector<2x16x8xf32>
    "tpu.trace_stop"() : () -> ()
    %302 = vector.extract_strided_slice %238 {offsets = [0, 0, 24], sizes = [2, 16, 8], strides = [1, 1, 1]} : vector<2x16x96xf32> to vector<2x16x8xf32>
    %303 = vector.extract_strided_slice %238 {offsets = [0, 0, 56], sizes = [2, 16, 8], strides = [1, 1, 1]} : vector<2x16x96xf32> to vector<2x16x8xf32>
    %304 = vector.extract_strided_slice %238 {offsets = [0, 0, 88], sizes = [2, 16, 8], strides = [1, 1, 1]} : vector<2x16x96xf32> to vector<2x16x8xf32>
    %305 = arith.truncf %302 : vector<2x16x8xf32> to vector<2x16x8xbf16>
    %306 = arith.truncf %303 : vector<2x16x8xf32> to vector<2x16x8xbf16>
    "tpu.trace_start"() <{level = 10 : i32, message = "bqd,bkd->bqk"}> : () -> ()
    %cst_80 = arith.constant dense<0.000000e+00> : vector<2x16x16xf32>
    %307 = tpu.matmul %305, %306, %cst_80 {dimension_numbers = #tpu.dot_dimension_numbers<[2], [2], [1], [1], [0, 0, 0, 1, 1, 1], [0], [0]>} : vector<2x16x8xbf16>, vector<2x16x8xbf16>, vector<2x16x16xf32> -> vector<2x16x16xf32>
    "tpu.trace_stop"() : () -> ()
    %cst_81 = arith.constant 0.353553385 : f32
    %308 = vector.broadcast %cst_81 : f32 to vector<2x16x16xf32>
    %309 = arith.mulf %307, %308 : vector<2x16x16xf32>
    %310 = arith.addf %309, %57 : vector<2x16x16xf32>
    %cst_82 = arith.constant dense<0xFF800000> : vector<2x16xf32>
    %311 = vector.multi_reduction <maximumf>, %310, %cst_82 [2] : vector<2x16x16xf32> to vector<2x16xf32>
    %312 = vector.shape_cast %311 : vector<2x16xf32> to vector<2x16x1xf32>
    %313 = vector.broadcast %312 : vector<2x16x1xf32> to vector<2x16x16xf32>
    %314 = arith.subf %310, %313 : vector<2x16x16xf32>
    %315 = math.exp %314 : vector<2x16x16xf32>
    %cst_83 = arith.constant dense<0.000000e+00> : vector<2x16xf32>
    %316 = vector.multi_reduction <add>, %315, %cst_83 [2] : vector<2x16x16xf32> to vector<2x16xf32>
    %317 = vector.shape_cast %316 : vector<2x16xf32> to vector<2x16x1xf32>
    %318 = vector.broadcast %317 : vector<2x16x1xf32> to vector<2x16x16xf32>
    %319 = arith.divf %315, %318 : vector<2x16x16xf32>
    %320 = arith.truncf %319 : vector<2x16x16xf32> to vector<2x16x16xbf16>
    %321 = arith.truncf %304 : vector<2x16x8xf32> to vector<2x16x8xbf16>
    "tpu.trace_start"() <{level = 10 : i32, message = "bqk,bkd->bqd"}> : () -> ()
    %cst_84 = arith.constant dense<0.000000e+00> : vector<2x16x8xf32>
    %322 = tpu.matmul %320, %321, %cst_84 {dimension_numbers = #tpu.dot_dimension_numbers<[2], [1], [1], [2], [0, 0, 0, 1, 1, 2], [0], [0]>} : vector<2x16x16xbf16>, vector<2x16x8xbf16>, vector<2x16x8xf32> -> vector<2x16x8xf32>
    "tpu.trace_stop"() : () -> ()
    %323 = tpu.concatenate %259, %280, %301, %322 in 2 : vector<2x16x8xf32>, vector<2x16x8xf32>, vector<2x16x8xf32>, vector<2x16x8xf32> -> vector<2x16x32xf32>
    %324 = vector.shape_cast %323 : vector<2x16x32xf32> to vector<32x32xf32>
    %325 = arith.truncf %324 : vector<32x32xf32> to vector<32x32xbf16>
    %c32_85 = arith.constant 32 : index
    %c0_86 = arith.constant 0 : index
    %326 = vector.load %arg6[%c32_85, %c0_86] : memref<352x32xbf16, #tpu.memory_space<vmem>>, vector<32x32xbf16>
    %cst_87 = arith.constant dense<0.000000e+00> : vector<32x32xf32>
    %327 = tpu.matmul %325, %326, %cst_87 {dimension_numbers = #tpu.dot_dimension_numbers<[1], [0], [0], [1], [0, 0, 1, 1], [], []>} : vector<32x32xbf16>, vector<32x32xbf16>, vector<32x32xf32> -> vector<32x32xf32>
    %328 = vector.extract_strided_slice %0 {offsets = [15, 0], sizes = [1, 32], strides = [1, 1]} : vector<24x128xf32> to vector<1x32xf32>
    %329 = vector.broadcast %328 : vector<1x32xf32> to vector<32x32xf32>
    %330 = arith.addf %327, %329 : vector<32x32xf32>
    %331 = arith.addf %231, %330 : vector<32x32xf32>
    %332 = vector.extract_strided_slice %0 {offsets = [16, 0], sizes = [1, 32], strides = [1, 1]} : vector<24x128xf32> to vector<1x32xf32>
    %333 = vector.extract_strided_slice %0 {offsets = [17, 0], sizes = [1, 32], strides = [1, 1]} : vector<24x128xf32> to vector<1x32xf32>
    %cst_88 = arith.constant dense<0.000000e+00> : vector<32xf32>
    %334 = vector.multi_reduction <add>, %331, %cst_88 [1] : vector<32x32xf32> to vector<32xf32>
    %335 = vector.shape_cast %334 : vector<32xf32> to vector<32x1xf32>
    %cst_89 = arith.constant 3.200000e+01 : f32
    %336 = vector.broadcast %cst_89 : f32 to vector<32x1xf32>
    %337 = arith.divf %335, %336 : vector<32x1xf32>
    %338 = vector.broadcast %337 : vector<32x1xf32> to vector<32x32xf32>
    %339 = arith.subf %331, %338 : vector<32x32xf32>
    %340 = arith.mulf %339, %339 : vector<32x32xf32>
    %cst_90 = arith.constant dense<0.000000e+00> : vector<32xf32>
    %341 = vector.multi_reduction <add>, %340, %cst_90 [1] : vector<32x32xf32> to vector<32xf32>
    %342 = vector.shape_cast %341 : vector<32xf32> to vector<32x1xf32>
    %cst_91 = arith.constant 3.200000e+01 : f32
    %343 = vector.broadcast %cst_91 : f32 to vector<32x1xf32>
    %344 = arith.divf %342, %343 : vector<32x1xf32>
    %345 = vector.broadcast %337 : vector<32x1xf32> to vector<32x32xf32>
    %346 = arith.subf %331, %345 : vector<32x32xf32>
    %cst_92 = arith.constant 9.99999996E-13 : f32
    %347 = vector.broadcast %cst_92 : f32 to vector<32x1xf32>
    %348 = arith.addf %344, %347 : vector<32x1xf32>
    %349 = math.rsqrt %348 : vector<32x1xf32>
    %350 = vector.broadcast %349 : vector<32x1xf32> to vector<32x32xf32>
    %351 = arith.mulf %346, %350 : vector<32x32xf32>
    %352 = vector.broadcast %332 : vector<1x32xf32> to vector<32x32xf32>
    %353 = arith.mulf %351, %352 : vector<32x32xf32>
    %354 = vector.broadcast %333 : vector<1x32xf32> to vector<32x32xf32>
    %355 = arith.addf %353, %354 : vector<32x32xf32>
    %356 = arith.truncf %355 : vector<32x32xf32> to vector<32x32xbf16>
    %c32_93 = arith.constant 32 : index
    %c0_94 = arith.constant 0 : index
    %357 = vector.load %arg5[%c32_93, %c0_94] : memref<160x128xbf16, #tpu.memory_space<vmem>>, vector<32x128xbf16>
    %cst_95 = arith.constant dense<0.000000e+00> : vector<32x128xf32>
    %358 = tpu.matmul %356, %357, %cst_95 {dimension_numbers = #tpu.dot_dimension_numbers<[1], [0], [0], [1], [0, 0, 1, 1], [], []>} : vector<32x32xbf16>, vector<32x128xbf16>, vector<32x128xf32> -> vector<32x128xf32>
    %359 = vector.extract_strided_slice %0 {offsets = [14, 0], sizes = [1, 128], strides = [1, 1]} : vector<24x128xf32> to vector<1x128xf32>
    %360 = vector.broadcast %359 : vector<1x128xf32> to vector<32x128xf32>
    %361 = arith.addf %358, %360 : vector<32x128xf32>
    %362 = arith.mulf %361, %361 : vector<32x128xf32>
    %363 = arith.mulf %361, %362 : vector<32x128xf32>
    %cst_96 = arith.constant 4.471500e-02 : f32
    %364 = vector.broadcast %cst_96 : f32 to vector<32x128xf32>
    %365 = arith.mulf %364, %363 : vector<32x128xf32>
    %366 = arith.addf %361, %365 : vector<32x128xf32>
    %cst_97 = arith.constant 0.797884583 : f32
    %367 = vector.broadcast %cst_97 : f32 to vector<32x128xf32>
    %368 = arith.mulf %367, %366 : vector<32x128xf32>
    %369 = math.tanh %368 : vector<32x128xf32>
    %cst_98 = arith.constant 1.000000e+00 : f32
    %370 = vector.broadcast %cst_98 : f32 to vector<32x128xf32>
    %371 = arith.addf %370, %369 : vector<32x128xf32>
    %cst_99 = arith.constant 5.000000e-01 : f32
    %372 = vector.broadcast %cst_99 : f32 to vector<32x128xf32>
    %373 = arith.mulf %372, %371 : vector<32x128xf32>
    %374 = arith.mulf %361, %373 : vector<32x128xf32>
    %375 = arith.truncf %374 : vector<32x128xf32> to vector<32x128xbf16>
    %c192 = arith.constant 192 : index
    %c0_100 = arith.constant 0 : index
    %376 = vector.load %arg6[%c192, %c0_100] : memref<352x32xbf16, #tpu.memory_space<vmem>>, vector<128x32xbf16>
    %cst_101 = arith.constant dense<0.000000e+00> : vector<32x32xf32>
    %377 = tpu.matmul %375, %376, %cst_101 {dimension_numbers = #tpu.dot_dimension_numbers<[1], [0], [0], [1], [0, 0, 1, 1], [], []>} : vector<32x128xbf16>, vector<128x32xbf16>, vector<32x32xf32> -> vector<32x32xf32>
    %378 = vector.extract_strided_slice %0 {offsets = [18, 0], sizes = [1, 32], strides = [1, 1]} : vector<24x128xf32> to vector<1x32xf32>
    %379 = vector.broadcast %378 : vector<1x32xf32> to vector<32x32xf32>
    %380 = arith.addf %377, %379 : vector<32x32xf32>
    %381 = arith.addf %355, %380 : vector<32x32xf32>
    %382 = vector.extract_strided_slice %0 {offsets = [19, 0], sizes = [1, 32], strides = [1, 1]} : vector<24x128xf32> to vector<1x32xf32>
    %383 = vector.extract_strided_slice %0 {offsets = [20, 0], sizes = [1, 32], strides = [1, 1]} : vector<24x128xf32> to vector<1x32xf32>
    %cst_102 = arith.constant dense<0.000000e+00> : vector<32xf32>
    %384 = vector.multi_reduction <add>, %381, %cst_102 [1] : vector<32x32xf32> to vector<32xf32>
    %385 = vector.shape_cast %384 : vector<32xf32> to vector<32x1xf32>
    %cst_103 = arith.constant 3.200000e+01 : f32
    %386 = vector.broadcast %cst_103 : f32 to vector<32x1xf32>
    %387 = arith.divf %385, %386 : vector<32x1xf32>
    %388 = vector.broadcast %387 : vector<32x1xf32> to vector<32x32xf32>
    %389 = arith.subf %381, %388 : vector<32x32xf32>
    %390 = arith.mulf %389, %389 : vector<32x32xf32>
    %cst_104 = arith.constant dense<0.000000e+00> : vector<32xf32>
    %391 = vector.multi_reduction <add>, %390, %cst_104 [1] : vector<32x32xf32> to vector<32xf32>
    %392 = vector.shape_cast %391 : vector<32xf32> to vector<32x1xf32>
    %cst_105 = arith.constant 3.200000e+01 : f32
    %393 = vector.broadcast %cst_105 : f32 to vector<32x1xf32>
    %394 = arith.divf %392, %393 : vector<32x1xf32>
    %395 = vector.broadcast %387 : vector<32x1xf32> to vector<32x32xf32>
    %396 = arith.subf %381, %395 : vector<32x32xf32>
    %cst_106 = arith.constant 9.99999996E-13 : f32
    %397 = vector.broadcast %cst_106 : f32 to vector<32x1xf32>
    %398 = arith.addf %394, %397 : vector<32x1xf32>
    %399 = math.rsqrt %398 : vector<32x1xf32>
    %400 = vector.broadcast %399 : vector<32x1xf32> to vector<32x32xf32>
    %401 = arith.mulf %396, %400 : vector<32x32xf32>
    %402 = vector.broadcast %382 : vector<1x32xf32> to vector<32x32xf32>
    %403 = arith.mulf %401, %402 : vector<32x32xf32>
    %404 = vector.broadcast %383 : vector<1x32xf32> to vector<32x32xf32>
    %405 = arith.addf %403, %404 : vector<32x32xf32>
    %406 = arith.truncf %405 : vector<32x32xf32> to vector<32x32xbf16>
    %c64_107 = arith.constant 64 : index
    %c0_108 = arith.constant 0 : index
    %407 = vector.load %arg4[%c64_107, %c0_108] : memref<96x96xbf16, #tpu.memory_space<vmem>>, vector<32x96xbf16>
    %cst_109 = arith.constant dense<0.000000e+00> : vector<32x96xf32>
    %408 = tpu.matmul %406, %407, %cst_109 {dimension_numbers = #tpu.dot_dimension_numbers<[1], [0], [0], [1], [0, 0, 1, 1], [], []>} : vector<32x32xbf16>, vector<32x96xbf16>, vector<32x96xf32> -> vector<32x96xf32>
    %409 = vector.extract_strided_slice %0 {offsets = [3, 0], sizes = [1, 96], strides = [1, 1]} : vector<24x128xf32> to vector<1x96xf32>
    %410 = vector.broadcast %409 : vector<1x96xf32> to vector<32x96xf32>
    %411 = arith.addf %408, %410 : vector<32x96xf32>
    %412 = vector.extract_strided_slice %411 {offsets = [0, 0], sizes = [32, 32], strides = [1, 1]} : vector<32x96xf32> to vector<32x32xf32>
    %413 = math.tanh %412 : vector<32x32xf32>
    %414 = vector.extract_strided_slice %411 {offsets = [0, 32], sizes = [32, 64], strides = [1, 1]} : vector<32x96xf32> to vector<32x64xf32>
    %cst_110 = arith.constant 0.000000e+00 : f32
    %415 = vector.broadcast %cst_110 : f32 to vector<32x64xf32>
    %416 = arith.maximumf %414, %415 : vector<32x64xf32>
    %417 = arith.truncf %413 : vector<32x32xf32> to vector<32x32xbf16>
    %c320 = arith.constant 320 : index
    %c0_111 = arith.constant 0 : index
    %418 = vector.load %arg6[%c320, %c0_111] : memref<352x32xbf16, #tpu.memory_space<vmem>>, vector<32x32xbf16>
    %cst_112 = arith.constant dense<0.000000e+00> : vector<32x32xf32>
    %419 = tpu.matmul %417, %418, %cst_112 {dimension_numbers = #tpu.dot_dimension_numbers<[1], [0], [0], [1], [0, 0, 1, 1], [], []>} : vector<32x32xbf16>, vector<32x32xbf16>, vector<32x32xf32> -> vector<32x32xf32>
    %420 = vector.extract_strided_slice %0 {offsets = [4, 0], sizes = [1, 32], strides = [1, 1]} : vector<24x128xf32> to vector<1x32xf32>
    %421 = vector.broadcast %420 : vector<1x32xf32> to vector<32x32xf32>
    %422 = arith.addf %419, %421 : vector<32x32xf32>
    %cst_113 = arith.constant 0.000000e+00 : f32
    %423 = vector.broadcast %cst_113 : f32 to vector<32x32xf32>
    %424 = arith.maximumf %422, %423 : vector<32x32xf32>
    %425 = arith.truncf %416 : vector<32x64xf32> to vector<32x64xbf16>
    %c64_114 = arith.constant 64 : index
    %c0_115 = arith.constant 0 : index
    %426 = vector.load %arg5[%c64_114, %c0_115] : memref<160x128xbf16, #tpu.memory_space<vmem>>, vector<64x128xbf16>
    %cst_116 = arith.constant dense<0.000000e+00> : vector<32x128xf32>
    %427 = tpu.matmul %425, %426, %cst_116 {dimension_numbers = #tpu.dot_dimension_numbers<[1], [0], [0], [1], [0, 0, 1, 1], [], []>} : vector<32x64xbf16>, vector<64x128xbf16>, vector<32x128xf32> -> vector<32x128xf32>
    %428 = arith.truncf %424 : vector<32x32xf32> to vector<32x32xbf16>
    %c128 = arith.constant 128 : index
    %c0_117 = arith.constant 0 : index
    %429 = vector.load %arg5[%c128, %c0_117] : memref<160x128xbf16, #tpu.memory_space<vmem>>, vector<32x128xbf16>
    %cst_118 = arith.constant dense<0.000000e+00> : vector<32x128xf32>
    %430 = tpu.matmul %428, %429, %cst_118 {dimension_numbers = #tpu.dot_dimension_numbers<[1], [0], [0], [1], [0, 0, 1, 1], [], []>} : vector<32x32xbf16>, vector<32x128xbf16>, vector<32x128xf32> -> vector<32x128xf32>
    %431 = arith.addf %427, %430 : vector<32x128xf32>
    %432 = vector.extract_strided_slice %0 {offsets = [2, 0], sizes = [1, 128], strides = [1, 1]} : vector<24x128xf32> to vector<1x128xf32>
    %433 = vector.broadcast %432 : vector<1x128xf32> to vector<32x128xf32>
    %434 = arith.addf %431, %433 : vector<32x128xf32>
    %c0_119 = arith.constant 0 : index
    %c0_120 = arith.constant 0 : index
    %435 = vector.load %arg7[%c0_119, %c0_120] : memref<32x128xf32, #tpu.memory_space<vmem>>, vector<32x128xf32>
    tpu.vector_store %arg7[%c0_119, %c0_120], %434 {strides = array<i32>} : memref<32x128xf32, #tpu.memory_space<vmem>>, vector<32x128xf32>,
    return
  }
}

</mosaic_0001>

<llo_original>
// kernel: forward.1
$region0: #{forward.1}
  #allocation0 [shape = 'u32[]', space=smem, size = 0x4, offset = 0x4, fixed_abs, tag = 'smem constant byte address 0x4 - core index']
  #allocation1 [shape = 'u32[144,128]{1,0:T(1,128)}', space=vmem, size = 0x12000, scoped, tag = 'internal scratch']
  %s0 = inlined_call_operand.vmem [shape: s32[32,2], index: 0, kind: input, shape index: {}]
  %s1 = inlined_call_operand.vmem [shape: f32[2,16], index: 1, kind: input, shape index: {}]
  %s2 = inlined_call_operand.vmem [shape: f32[134,32], index: 2, kind: input, shape index: {}]
  %s3 = inlined_call_operand.vmem [shape: f32[24,128], index: 3, kind: input, shape index: {}]
  %s4 = inlined_call_operand.vmem [shape: bf16[96,96], index: 4, kind: input, shape index: {}]
  %s5 = inlined_call_operand.vmem [shape: bf16[160,128], index: 5, kind: input, shape index: {}]
  %s6 = inlined_call_operand.vmem [shape: bf16[352,32], index: 6, kind: input, shape index: {}]
  %s7 = inlined_call_operand.vmem [shape: f32[32,128], index: 7, kind: output, shape index: {}]
  %s8 = sld [smem:[#allocation0]]
  $region38: #{forward.1} parent=0
    _
  %s10 = ssub.s32 1, %s8
  %s11 = scalar_select 0, %s10, %s8
  // Predicated region
  $region2: #{forward.1} parent=0 // pred_check
    _
  $region3: #{forward.1} parent=0 // pred_check_branch
    %13 = sbr.rel (0) target = $region5
  $region4: #{forward.1} parent=0 // pred_region
    _
  $region5: #{forward.1} parent=0 // pred_fallthru
    _
  // Predicated region
  $region6: #{forward.1} parent=0 // pred_check
    _
  $region7: #{forward.1} parent=0 // pred_check_branch
    %15 = sbr.rel (0) target = $region9
  $region8: #{forward.1} parent=0 // pred_region
    _
  $region9: #{forward.1} parent=0 // pred_fallthru
    _
  // Predicated region
  $region10: #{forward.1} parent=0 // pred_check
    _
  $region11: #{forward.1} parent=0 // pred_check_branch
    %17 = sbr.rel (0) target = $region13
  $region12: #{forward.1} parent=0 // pred_region
    _
  $region13: #{forward.1} parent=0 // pred_fallthru
    _
  // Predicated region
  $region14: #{forward.1} parent=0 // pred_check
    _
  $region15: #{forward.1} parent=0 // pred_check_branch
    %19 = sbr.rel (0) target = $region17
  $region16: #{forward.1} parent=0 // pred_region
    _
  $region17: #{forward.1} parent=0 // pred_fallthru
    _
  // Predicated region
  $region18: #{forward.1} parent=0 // pred_check
    _
  $region19: #{forward.1} parent=0 // pred_check_branch
    %21 = sbr.rel (0) target = $region21
  $region20: #{forward.1} parent=0 // pred_region
    _
  $region21: #{forward.1} parent=0 // pred_fallthru
    _
  // Predicated region
  $region22: #{forward.1} parent=0 // pred_check
    _
  $region23: #{forward.1} parent=0 // pred_check_branch
    %23 = sbr.rel (0) target = $region25
  $region24: #{forward.1} parent=0 // pred_region
    _
  $region25: #{forward.1} parent=0 // pred_fallthru
    _
  // Predicated region
  $region26: #{forward.1} parent=0 // pred_check
    _
  $region27: #{forward.1} parent=0 // pred_check_branch
    %25 = sbr.rel (0) target = $region29
  $region28: #{forward.1} parent=0 // pred_region
    _
  $region29: #{forward.1} parent=0 // pred_fallthru
    _
  %v27 = vld [vmem:[%s3] sm:$0xff]
  %v28 = vld [vmem:[%s3 + $0x8] sm:$0xff]
  %v29 = vld [vmem:[%s3 + $0x10] sm:$0xff]
  %v30 = vld [vmem:[%s0] sm:$0xff]
  %v31 = vld [vmem:[%s0 + $0x8] sm:$0xff]
  %v32 = vld [vmem:[%s0 + $0x10] sm:$0xff]
  %v33 = vld [vmem:[%s0 + $0x18] sm:$0xff]
  %v34 = vcvt.s32.f32 %v30
  %v35 = vcvt.s32.f32 %v31
  %v36 = vcvt.s32.f32 %v32
  %v37 = vcvt.s32.f32 %v33
  %v38 = vlaneseq
  %v39 = vand.u32 %v38, 127
  %40 = vset.pattern.permute.xlu0 0
  %41 = vperm.xlu0 %40, %v30
  %v42 = vpop.permute.xlu0 %41
  %43 = vset.pattern.permute.xlu0 0
  %44 = vperm.xlu0 %43, %v31
  %v45 = vpop.permute.xlu0 %44
  %46 = vset.pattern.permute.xlu0 0
  %47 = vperm.xlu0 %46, %v32
  %v48 = vpop.permute.xlu0 %47
  %49 = vset.pattern.permute.xlu0 0
  %50 = vperm.xlu0 %49, %v33
  %v51 = vpop.permute.xlu0 %50
  %vm52 = vcmp.eq.s32.totalorder %v42, %v39
  %vm53 = vcmp.eq.s32.totalorder %v45, %v39
  %vm54 = vcmp.eq.s32.totalorder %v48, %v39
  %vm55 = vcmp.eq.s32.totalorder %v51, %v39
  %v56 = vsel %vm52, 1, 0
  %v57 = vsel %vm53, 1, 0
  %v58 = vsel %vm54, 1, 0
  %v59 = vsel %vm55, 1, 0
  %v60 = vcvt.s32.f32 %v56
  %v61 = vcvt.s32.f32 %v57
  %v62 = vcvt.s32.f32 %v58
  %v63 = vcvt.s32.f32 %v59
  %v64 = vld [vmem:[%s2] sm:$0xff]
  %v65 = vld [vmem:[%s2 + $0x8] sm:$0xff]
  %v66 = vld [vmem:[%s2 + $0x10] sm:$0xff]
  %v67 = vld [vmem:[%s2 + $0x18] sm:$0xff]
  %v68 = vld [vmem:[%s2 + $0x20] sm:$0xff]
  %v69 = vld [vmem:[%s2 + $0x28] sm:$0xff]
  %v70 = vld [vmem:[%s2 + $0x30] sm:$0xff]
  %v71 = vld [vmem:[%s2 + $0x38] sm:$0xff]
  %v72 = vld [vmem:[%s2 + $0x40] sm:$0xff]
  %v73 = vld [vmem:[%s2 + $0x48] sm:$0xff]
  %v74 = vld [vmem:[%s2 + $0x50] sm:$0xff]
  %v75 = vld [vmem:[%s2 + $0x58] sm:$0xff]
  %v76 = vld [vmem:[%s2 + $0x60] sm:$0xf]
  %v77 = vld [vmem:[%s2 + $0x64] sm:$0xff]
  %v78 = vld [vmem:[%s2 + $0x6c] sm:$0xff]
  %v79 = vld [vmem:[%s2 + $0x74] sm:$0xff]
  %v80 = vld [vmem:[%s2 + $0x7c] sm:$0xff]
  %vm81 = vcmask 818176
  %v83 = vsel %vm81, %v60, 0
  %v86 = vsel %vm81, %v61, 0
  %v89 = vsel %vm81, %v62, 0
  %v92 = vsel %vm81, %v63, 0
  %vm94 = vcmask 1043456
  %v96 = vsel %vm94, %v76, 0
  %98 = vmatprep.subr.mxu0 0.0
  %99 = vmatpush1.msra.mxu0 %v64
  %100 = vmatprep.subr.mxu0 0.0
  %101 = vmatpush1.msra.mxu0 %v65
  %102 = vmatprep.subr.mxu0 0.0
  %103 = vmatpush1.msra.mxu0 %v66
  %104 = vmatprep.subr.mxu0 0.0
  %105 = vmatpush1.msra.mxu0 %v67
  %106 = vmatprep.subr.mxu0 0.0
  %107 = vmatpush1.msra.mxu0 %v68
  %108 = vmatprep.subr.mxu0 0.0
  %109 = vmatpush1.msra.mxu0 %v69
  %110 = vmatprep.subr.mxu0 0.0
  %111 = vmatpush1.msra.mxu0 %v70
  %112 = vmatprep.subr.mxu0 0.0
  %113 = vmatpush1.msra.mxu0 %v71
  %114 = vmatprep.subr.mxu0 0.0
  %115 = vmatpush1.msra.mxu0 %v72
  %116 = vmatprep.subr.mxu0 0.0
  %117 = vmatpush1.msra.mxu0 %v73
  %118 = vmatprep.subr.mxu0 0.0
  %119 = vmatpush1.msra.mxu0 %v74
  %120 = vmatprep.subr.mxu0 0.0
  %121 = vmatpush1.msra.mxu0 %v75
  %122 = vmatprep.subr.mxu0 0.0
  %123 = vmatpush1.msra.mxu0 %v96
  %124 = vmatprep.subr.mxu0 0.0
  %125 = vmatpush1.msra.mxu0 0.0
  %126 = vmatprep.subr.mxu0 0.0
  %127 = vmatpush1.msra.mxu0 0.0
  %128 = vmatprep.subr.mxu0 0.0
  %129 = vmatpush1.msra.mxu0 0.0
  %130 = vmatprep.subr.mxu0 0.0
  %131 = vmatpush1.msra.mxu0 0.0
  %132 = vmatprep.subr.mxu0 0.0
  %133 = vmatpush1.msra.mxu0 0.0
  %134 = vmatprep.subr.mxu0 0.0
  %135 = vmatpush1.msra.mxu0 0.0
  %136 = vmatprep.subr.mxu0 0.0
  %137 = vmatpush1.msra.mxu0 0.0
  %138 = vmatprep.subr.mxu0 0.0
  %139 = vmatpush1.msra.mxu0 0.0
  %140 = vmatprep.subr.mxu0 0.0
  %141 = vmatpush1.msra.mxu0 0.0
  %142 = vmatprep.subr.mxu0 0.0
  %143 = vmatpush1.msra.mxu0 0.0
  %144 = vmatprep.subr.mxu0 0.0
  %145 = vmatpush1.msra.mxu0 0.0
  %146 = vmatprep.subr.mxu0 0.0
  %147 = vmatpush1.msra.mxu0 0.0
  %148 = vmatprep.subr.mxu0 0.0
  %149 = vmatpush1.msra.mxu0 0.0
  %150 = vmatprep.subr.mxu0 0.0
  %151 = vmatpush1.msra.mxu0 0.0
  %152 = vmatprep.subr.mxu0 0.0
  %153 = vmatpush1.msra.mxu0 0.0
  %154 = vmatprep.subr.mxu0 0.0
  %155 = vmatpush1.msra.mxu0 0.0
  %156 = vmatprep.subr.mxu0 0.0
  %157 = vmatpush1.msra.mxu0 0.0
  %158 = vmatprep.subr.mxu0 0.0
  %159 = vmatpush1.msra.mxu0 0.0
  %160 = vmatprep.subr.mxu0 0.0
  %161 = vmatpush1.msra.mxu0 0.0
  %162 = vmatprep.mubr.f32.mxu0 0.0
  %163 = vmatmul.mubr.f32.gmra.mrb[0].mxu0 %v83
  %v164 = vpop.f32.mrb[0].mxu0
  %v165 = vadd.f32 %v77, %v164
  %v166 = vpop.f32.mrb[0].mxu0
  %167 = vmatprep.mubr.f32.mxu0 0.0
  %168 = vmatmul.mubr.f32.gmra.mrb[0].mxu0 %v86
  %v169 = vpop.f32.mrb[0].mxu0
  %v170 = vadd.f32 %v78, %v169
  %v171 = vpop.f32.mrb[0].mxu0
  %172 = vmatprep.mubr.f32.mxu0 0.0
  %173 = vmatmul.mubr.f32.gmra.mrb[0].mxu0 %v89
  %v174 = vpop.f32.mrb[0].mxu0
  %v175 = vadd.f32 %v79, %v174
  %v176 = vpop.f32.mrb[0].mxu0
  %177 = vmatprep.mubr.f32.mxu0 0.0
  %178 = vmatmul.mubr.f32.gmra.mrb[0].mxu0 %v92
  %v179 = vpop.f32.mrb[0].mxu0
  %v180 = vadd.f32 %v80, %v179
  %v181 = vpop.f32.mrb[0].mxu0
  %182 = vdwg.mxu0
  %v183 = vld [vmem:[%s2 + $0x84] sm:$0x1]
  %v184 = vld [vmem:[%s2 + $0x85] sm:$0x1]
  %v185 = vsub.f32 1.0, %v34
  %v186 = vsub.f32 1.0, %v35
  %v187 = vsub.f32 1.0, %v36
  %v188 = vsub.f32 1.0, %v37
  %v189 = vlaneseq
  %v190 = vshrl.u32 %v189, 7
  %v191 = vsub.s32 0, %v190
  %v192 = vrot.slane %v183, %v191
  %194 = vset.pattern.permute.xlu0 1
  %195 = vperm.xlu0 %194, %v185
  %v196 = vpop.permute.xlu0 %195
  %199 = vset.pattern.permute.xlu0 1
  %200 = vperm.xlu0 %199, %v186
  %v201 = vpop.permute.xlu0 %200
  %204 = vset.pattern.permute.xlu0 1
  %205 = vperm.xlu0 %204, %v187
  %v206 = vpop.permute.xlu0 %205
  %209 = vset.pattern.permute.xlu0 1
  %210 = vperm.xlu0 %209, %v188
  %v211 = vpop.permute.xlu0 %210
  %v213 = vmul.f32 %v192, %v196
  %v214 = vmul.f32 %v192, %v201
  %v215 = vmul.f32 %v192, %v206
  %v216 = vmul.f32 %v192, %v211
  %v217 = vadd.f32 %v165, %v213
  %v218 = vadd.f32 %v170, %v214
  %v219 = vadd.f32 %v175, %v215
  %v220 = vadd.f32 %v180, %v216
  %v221 = vlaneseq
  %v222 = vshrl.u32 %v221, 7
  %v223 = vsub.s32 0, %v222
  %v224 = vrot.slane %v184, %v223
  %226 = vset.pattern.permute.xlu0 1
  %227 = vperm.xlu0 %226, %v34
  %v228 = vpop.permute.xlu0 %227
  %231 = vset.pattern.permute.xlu0 1
  %232 = vperm.xlu0 %231, %v35
  %v233 = vpop.permute.xlu0 %232
  %236 = vset.pattern.permute.xlu0 1
  %237 = vperm.xlu0 %236, %v36
  %v238 = vpop.permute.xlu0 %237
  %241 = vset.pattern.permute.xlu0 1
  %242 = vperm.xlu0 %241, %v37
  %v243 = vpop.permute.xlu0 %242
  %v245 = vmul.f32 %v224, %v228
  %v246 = vmul.f32 %v224, %v233
  %v247 = vmul.f32 %v224, %v238
  %v248 = vmul.f32 %v224, %v243
  %v249 = vadd.f32 %v217, %v245
  %v250 = vadd.f32 %v218, %v246
  %v251 = vadd.f32 %v219, %v247
  %v252 = vadd.f32 %v220, %v248
  %vm253 = vcmask 261120
  %v254 = vsel %vm253, %v249, 0.0
  %255 = vadd.xlane.f32.xlu0 %v254
  %v256 = vpop.xlane.xlu0 %255
  %v257 = vsel %vm253, %v250, 0.0
  %258 = vadd.xlane.f32.xlu0 %v257
  %v259 = vpop.xlane.xlu0 %258
  %v260 = vsel %vm253, %v251, 0.0
  %261 = vadd.xlane.f32.xlu0 %v260
  %v262 = vpop.xlane.xlu0 %261
  %v263 = vsel %vm253, %v252, 0.0
  %264 = vadd.xlane.f32.xlu0 %v263
  %v265 = vpop.xlane.xlu0 %264
  %v266 = vrcp.pop 32.0
  %v267 = vmul.f32 %v256, %v266
  %v268 = vmul.f32 %v259, %v266
  %v269 = vmul.f32 %v262, %v266
  %v270 = vmul.f32 %v265, %v266
  %v271 = vsub.f32 %v249, %v267
  %v272 = vsub.f32 %v250, %v268
  %v273 = vsub.f32 %v251, %v269
  %v274 = vsub.f32 %v252, %v270
  %v275 = vmul.f32 %v271, %v271
  %v276 = vmul.f32 %v272, %v272
  %v277 = vmul.f32 %v273, %v273
  %v278 = vmul.f32 %v274, %v274
  %v279 = vsel %vm253, %v275, 0.0
  %280 = vadd.xlane.f32.xlu0 %v279
  %v281 = vpop.xlane.xlu0 %280
  %v282 = vsel %vm253, %v276, 0.0
  %283 = vadd.xlane.f32.xlu0 %v282
  %v284 = vpop.xlane.xlu0 %283
  %v285 = vsel %vm253, %v277, 0.0
  %286 = vadd.xlane.f32.xlu0 %v285
  %v287 = vpop.xlane.xlu0 %286
  %v288 = vsel %vm253, %v278, 0.0
  %289 = vadd.xlane.f32.xlu0 %v288
  %v290 = vpop.xlane.xlu0 %289
  %v291 = vmul.f32 %v281, %v266
  %v292 = vmul.f32 %v284, %v266
  %v293 = vmul.f32 %v287, %v266
  %v294 = vmul.f32 %v290, %v266
  %v295 = vadd.f32 %v291, 1e-12
  %v296 = vadd.f32 %v292, 1e-12
  %v297 = vadd.f32 %v293, 1e-12
  %v298 = vadd.f32 %v294, 1e-12
  %v299 = vrsqrt.pop %v295
  %v300 = vrsqrt.pop %v296
  %v301 = vrsqrt.pop %v297
  %v302 = vrsqrt.pop %v298
  %v303 = vmul.f32 %v271, %v299
  %v304 = vmul.f32 %v272, %v300
  %v305 = vmul.f32 %v273, %v301
  %v306 = vmul.f32 %v274, %v302
  %v307 = vlaneseq
  %v308 = vshrl.u32 %v307, 7
  %v309 = vsub.s32 0, %v308
  %v310 = vrot.slane %v27, %v309
  %v311 = vmul.f32 %v303, %v310
  %v312 = vmul.f32 %v304, %v310
  %v313 = vmul.f32 %v305, %v310
  %v314 = vmul.f32 %v306, %v310
  %v315 = vlaneseq
  %v316 = vshrl.u32 %v315, 7
  %v317 = vsub.s32 1, %v316
  %v318 = vrot.slane %v27, %v317
  %v319 = vadd.f32 %v311, %v318
  %v320 = vadd.f32 %v312, %v318
  %v321 = vadd.f32 %v313, %v318
  %v322 = vadd.f32 %v314, %v318
  %v323 = vld [vmem:[%s1] sm:$0x3]
  %v324 = vsub.f32 %v323, 1.0
  %v325 = vmul.f32 %v324, 1e+09
  %v328 = vunpack.c.l.s4 1966171168
  %v329 = vunpack.c.0.s8 %v328
  %v330 = vlaneseq
  %v331 = vshrl.u32 %v330, 7
  %v332 = vsub.s32 %v329, %v331
  %v333 = vrot.slane %v325, %v332
  %v334 = vcombine.high %v333, %v333
  %v336 = vunpack.c.l.s4 1966171168
  %v337 = vunpack.c.0.s8 %v336
  %v338 = vlaneseq
  %v339 = vshrl.u32 %v338, 7
  %v340 = vsub.s32 %v337, %v339
  %v341 = vrot.slane %v333, %v340
  %v343 = vunpack.c.l.s4 1966171168
  %v344 = vunpack.c.0.s8 %v343
  %v345 = vlaneseq
  %v346 = vshrl.u32 %v345, 7
  %v347 = vsub.s32 %v344, %v346
  %v348 = vrot.slane %v334, %v347
  %v349 = vlaneseq
  %v350 = vshrl.u32 %v349, 7
  %v351 = vsub.s32 0, %v350
  %v352 = vrot.slane %v341, %v351
  %v353 = vlaneseq
  %v354 = vshrl.u32 %v353, 7
  %v355 = vsub.s32 0, %v354
  %v356 = vrot.slane %v348, %v355
  %v359 = vpack.c.bf16 %v320, %v319
  %v360 = vpack.c.bf16 %v322, %v321
  %v361 = vld [vmem:[%s4] sm:$0xf]
  %v362 = vld [vmem:[%s4 + $0x4] sm:$0xf]
  %v363 = vld [vmem:[%s4 + $0x8] sm:$0xf]
  %v364 = vld [vmem:[%s4 + $0xc] sm:$0xf]
  %v365 = vlaneseq
  %v366 = vshrl.u32 %v365, 7
  %v367 = vsub.s32 5, %v366
  %v368 = vrot.slane %v27, %v367
  %v373 = vunpack.c.l.b16 %v361
  %v374 = vunpack.c.l.b16 %v362
  %v375 = vunpack.c.l.b16 %v363
  %v376 = vunpack.c.l.b16 %v364
  %v377 = vpack.c.b16 %v374, %v373
  %v378 = vpack.c.b16 %v376, %v375
  %v382 = vsel %vm253, %v359, 0
  %v385 = vsel %vm253, %v360, 0
  %387 = vmatprep.subr.bf16.mxu0 0
  %388 = vmatpush1.bf16.msra.mxu0 %v377
  %389 = vmatprep.subr.bf16.mxu0 0
  %390 = vmatpush1.bf16.msra.mxu0 %v378
  %391 = vmatprep.subr.bf16.mxu0 0
  %392 = vmatpush1.bf16.msra.mxu0 0
  %393 = vmatprep.subr.bf16.mxu0 0
  %394 = vmatpush1.bf16.msra.mxu0 0
  %395 = vmatprep.subr.bf16.mxu0 0
  %396 = vmatpush1.bf16.msra.mxu0 0
  %397 = vmatprep.subr.bf16.mxu0 0
  %398 = vmatpush1.bf16.msra.mxu0 0
  %399 = vmatprep.subr.bf16.mxu0 0
  %400 = vmatpush1.bf16.msra.mxu0 0
  %401 = vmatprep.subr.bf16.mxu0 0
  %402 = vmatpush1.bf16.msra.mxu0 0
  %403 = vmatprep.subr.bf16.mxu0 0
  %404 = vmatpush1.bf16.msra.mxu0 0
  %405 = vmatprep.subr.bf16.mxu0 0
  %406 = vmatpush1.bf16.msra.mxu0 0
  %407 = vmatprep.subr.bf16.mxu0 0
  %408 = vmatpush1.bf16.msra.mxu0 0
  %409 = vmatprep.subr.bf16.mxu0 0
  %410 = vmatpush1.bf16.msra.mxu0 0
  %411 = vmatprep.subr.bf16.mxu0 0
  %412 = vmatpush1.bf16.msra.mxu0 0
  %413 = vmatprep.subr.bf16.mxu0 0
  %414 = vmatpush1.bf16.msra.mxu0 0
  %415 = vmatprep.subr.bf16.mxu0 0
  %416 = vmatpush1.bf16.msra.mxu0 0
  %417 = vmatprep.subr.bf16.mxu0 0
  %418 = vmatpush1.bf16.msra.mxu0 0
  %419 = vmatprep.mubr.bf16.mxu0 0
  %420 = vmatmul.mubr.bf16.gmra.mrb[0].mxu0 %v382
  %v421 = vpop.f32.mrb[0].mxu0
  %v422 = vadd.f32 %v368, %v421
  %v423 = vpop.f32.mrb[0].mxu0
  %v424 = vpop.f32.mrb[0].mxu0
  %v425 = vadd.f32 %v368, %v424
  %v426 = vpop.f32.mrb[0].mxu0
  %427 = vmatprep.mubr.bf16.mxu0 0
  %428 = vmatmul.mubr.bf16.gmra.mrb[0].mxu0 %v385
  %v429 = vpop.f32.mrb[0].mxu0
  %v430 = vadd.f32 %v368, %v429
  %v431 = vpop.f32.mrb[0].mxu0
  %v432 = vpop.f32.mrb[0].mxu0
  %v433 = vadd.f32 %v368, %v432
  %v434 = vpop.f32.mrb[0].mxu0
  %435 = vdwg.mxu0
  %v436 = vpack.c.bf16 %v425, %v422
  %v437 = vpack.c.bf16 %v433, %v430
  %439 = vrot.lane.b32.xlu0 %v436, 96
  %v440 = vpop.permute.xlu0 %439
  %vm441 = vcmask 64512
  %v443 = vsel %vm441, %v436, 0
  %v446 = vsel %vm441, %v440, 0
  %448 = vmatprep.subr.bf16.mxu0 0
  %449 = vmatpush1.bf16.xpose.msra.mxu0 %v446
  %450 = vmatprep.subr.bf16.mxu0 0
  %451 = vmatpush1.bf16.xpose.msra.mxu0 0
  %452 = vmatprep.subr.bf16.mxu0 0
  %453 = vmatpush1.bf16.xpose.msra.mxu0 0
  %454 = vmatprep.subr.bf16.mxu0 0
  %455 = vmatpush1.bf16.xpose.msra.mxu0 0
  %456 = vmatprep.subr.bf16.mxu0 0
  %457 = vmatpush1.bf16.xpose.msra.mxu0 0
  %458 = vmatprep.subr.bf16.mxu0 0
  %459 = vmatpush1.bf16.xpose.msra.mxu0 0
  %460 = vmatprep.subr.bf16.mxu0 0
  %461 = vmatpush1.bf16.xpose.msra.mxu0 0
  %462 = vmatprep.subr.bf16.mxu0 0
  %463 = vmatpush1.bf16.xpose.msra.mxu0 0
  %464 = vmatprep.subr.bf16.mxu0 0
  %465 = vmatpush1.bf16.xpose.msra.mxu0 0
  %466 = vmatprep.subr.bf16.mxu0 0
  %467 = vmatpush1.bf16.xpose.msra.mxu0 0
  %468 = vmatprep.subr.bf16.mxu0 0
  %469 = vmatpush1.bf16.xpose.msra.mxu0 0
  %470 = vmatprep.subr.bf16.mxu0 0
  %471 = vmatpush1.bf16.xpose.msra.mxu0 0
  %472 = vmatprep.subr.bf16.mxu0 0
  %473 = vmatpush1.bf16.xpose.msra.mxu0 0
  %474 = vmatprep.subr.bf16.mxu0 0
  %475 = vmatpush1.bf16.xpose.msra.mxu0 0
  %476 = vmatprep.subr.bf16.mxu0 0
  %477 = vmatpush1.bf16.xpose.msra.mxu0 0
  %478 = vmatprep.subr.bf16.mxu0 0
  %479 = vmatpush1.bf16.xpose.msra.mxu0 0
  %480 = vmatprep.mubr.bf16.mxu0 0
  %481 = vmatmul.mubr.bf16.gmra.mrb[0].mxu0 %v443
  %v482 = vpop.f32.mrb[0].mxu0
  %v483 = vadd.f32 0.0, %v482
  %v484 = vpop.f32.mrb[0].mxu0
  %v485 = vpop.f32.mrb[0].mxu0
  %v486 = vadd.f32 0.0, %v485
  %v487 = vpop.f32.mrb[0].mxu0
  %488 = vdwg.mxu0
  %490 = vrot.lane.b32.xlu0 %v437, 96
  %v491 = vpop.permute.xlu0 %490
  %v493 = vsel %vm441, %v437, 0
  %v496 = vsel %vm441, %v491, 0
  %498 = vmatprep.subr.bf16.mxu0 0
  %499 = vmatpush1.bf16.xpose.msra.mxu0 %v496
  %500 = vmatprep.subr.bf16.mxu0 0
  %501 = vmatpush1.bf16.xpose.msra.mxu0 0
  %502 = vmatprep.subr.bf16.mxu0 0
  %503 = vmatpush1.bf16.xpose.msra.mxu0 0
  %504 = vmatprep.subr.bf16.mxu0 0
  %505 = vmatpush1.bf16.xpose.msra.mxu0 0
  %506 = vmatprep.subr.bf16.mxu0 0
  %507 = vmatpush1.bf16.xpose.msra.mxu0 0
  %508 = vmatprep.subr.bf16.mxu0 0
  %509 = vmatpush1.bf16.xpose.msra.mxu0 0
  %510 = vmatprep.subr.bf16.mxu0 0
  %511 = vmatpush1.bf16.xpose.msra.mxu0 0
  %512 = vmatprep.subr.bf16.mxu0 0
  %513 = vmatpush1.bf16.xpose.msra.mxu0 0
  %514 = vmatprep.subr.bf16.mxu0 0
  %515 = vmatpush1.bf16.xpose.msra.mxu0 0
  %516 = vmatprep.subr.bf16.mxu0 0
  %517 = vmatpush1.bf16.xpose.msra.mxu0 0
  %518 = vmatprep.subr.bf16.mxu0 0
  %519 = vmatpush1.bf16.xpose.msra.mxu0 0
  %520 = vmatprep.subr.bf16.mxu0 0
  %521 = vmatpush1.bf16.xpose.msra.mxu0 0
  %522 = vmatprep.subr.bf16.mxu0 0
  %523 = vmatpush1.bf16.xpose.msra.mxu0 0
  %524 = vmatprep.subr.bf16.mxu0 0
  %525 = vmatpush1.bf16.xpose.msra.mxu0 0
  %526 = vmatprep.subr.bf16.mxu0 0
  %527 = vmatpush1.bf16.xpose.msra.mxu0 0
  %528 = vmatprep.subr.bf16.mxu0 0
  %529 = vmatpush1.bf16.xpose.msra.mxu0 0
  %530 = vmatprep.mubr.bf16.mxu0 0
  %531 = vmatmul.mubr.bf16.gmra.mrb[0].mxu0 %v493
  %v532 = vpop.f32.mrb[0].mxu0
  %v533 = vadd.f32 0.0, %v532
  %v534 = vpop.f32.mrb[0].mxu0
  %v535 = vpop.f32.mrb[0].mxu0
  %v536 = vadd.f32 0.0, %v535
  %v537 = vpop.f32.mrb[0].mxu0
  %538 = vdwg.mxu0
  %v539 = vmul.f32 %v483, 0.35355338
  %v540 = vmul.f32 %v486, 0.35355338
  %v541 = vmul.f32 %v533, 0.35355338
  %v542 = vmul.f32 %v536, 0.35355338
  %v543 = vadd.f32 %v539, %v352
  %v544 = vadd.f32 %v540, %v352
  %v545 = vadd.f32 %v541, %v356
  %v546 = vadd.f32 %v542, %v356
  %vm547 = vcmask 130048
  %v548 = vsel %vm547, %v543, -inf
  %549 = vmax.xlane.f32.xlu0 %v548
  %v550 = vpop.xlane.xlu0 %549
  %v551 = vsel %vm547, %v544, -inf
  %552 = vmax.xlane.f32.xlu0 %v551
  %v553 = vpop.xlane.xlu0 %552
  %v554 = vsel %vm547, %v545, -inf
  %555 = vmax.xlane.f32.xlu0 %v554
  %v556 = vpop.xlane.xlu0 %555
  %v557 = vsel %vm547, %v546, -inf
  %558 = vmax.xlane.f32.xlu0 %v557
  %v559 = vpop.xlane.xlu0 %558
  %v560 = vsub.f32 %v543, %v550
  %v561 = vsub.f32 %v544, %v553
  %v562 = vsub.f32 %v545, %v556
  %v563 = vsub.f32 %v546, %v559
  %v564 = vmul.f32 %v560, 1.442695
  %v565 = vpow.pop %v564
  %v566 = vmul.f32 %v561, 1.442695
  %v567 = vpow.pop %v566
  %v568 = vmul.f32 %v562, 1.442695
  %v569 = vpow.pop %v568
  %v570 = vmul.f32 %v563, 1.442695
  %v571 = vpow.pop %v570
  %v572 = vsel %vm547, %v565, 0.0
  %573 = vadd.xlane.f32.xlu0 %v572
  %v574 = vpop.xlane.xlu0 %573
  %v575 = vsel %vm547, %v567, 0.0
  %576 = vadd.xlane.f32.xlu0 %v575
  %v577 = vpop.xlane.xlu0 %576
  %v578 = vsel %vm547, %v569, 0.0
  %579 = vadd.xlane.f32.xlu0 %v578
  %v580 = vpop.xlane.xlu0 %579
  %v581 = vsel %vm547, %v571, 0.0
  %582 = vadd.xlane.f32.xlu0 %v581
  %v583 = vpop.xlane.xlu0 %582
  %v584 = vrcp.pop %v574
  %v585 = vmul.f32 %v565, %v584
  %v586 = vrcp.pop %v577
  %v587 = vmul.f32 %v567, %v586
  %v588 = vrcp.pop %v580
  %v589 = vmul.f32 %v569, %v588
  %v590 = vrcp.pop %v583
  %v591 = vmul.f32 %v571, %v590
  %v592 = vpack.c.bf16 %v587, %v585
  %v593 = vpack.c.bf16 %v591, %v589
  %594 = vrot.lane.b32.xlu0 %v436, 64
  %v595 = vpop.permute.xlu0 %594
  %v598 = vsel %vm547, %v592, 0
  %600 = vmatprep.subr.bf16.mxu0 0
  %601 = vmatpush1.bf16.msra.mxu0 %v595
  %602 = vmatprep.subr.bf16.mxu0 0
  %603 = vmatpush1.bf16.msra.mxu0 0
  %604 = vmatprep.subr.bf16.mxu0 0
  %605 = vmatpush1.bf16.msra.mxu0 0
  %606 = vmatprep.subr.bf16.mxu0 0
  %607 = vmatpush1.bf16.msra.mxu0 0
  %608 = vmatprep.subr.bf16.mxu0 0
  %609 = vmatpush1.bf16.msra.mxu0 0
  %610 = vmatprep.subr.bf16.mxu0 0
  %611 = vmatpush1.bf16.msra.mxu0 0
  %612 = vmatprep.subr.bf16.mxu0 0
  %613 = vmatpush1.bf16.msra.mxu0 0
  %614 = vmatprep.subr.bf16.mxu0 0
  %615 = vmatpush1.bf16.msra.mxu0 0
  %616 = vmatprep.subr.bf16.mxu0 0
  %617 = vmatpush1.bf16.msra.mxu0 0
  %618 = vmatprep.subr.bf16.mxu0 0
  %619 = vmatpush1.bf16.msra.mxu0 0
  %620 = vmatprep.subr.bf16.mxu0 0
  %621 = vmatpush1.bf16.msra.mxu0 0
  %622 = vmatprep.subr.bf16.mxu0 0
  %623 = vmatpush1.bf16.msra.mxu0 0
  %624 = vmatprep.subr.bf16.mxu0 0
  %625 = vmatpush1.bf16.msra.mxu0 0
  %626 = vmatprep.subr.bf16.mxu0 0
  %627 = vmatpush1.bf16.msra.mxu0 0
  %628 = vmatprep.subr.bf16.mxu0 0
  %629 = vmatpush1.bf16.msra.mxu0 0
  %630 = vmatprep.subr.bf16.mxu0 0
  %631 = vmatpush1.bf16.msra.mxu0 0
  %632 = vmatprep.mubr.bf16.mxu0 0
  %633 = vmatmul.mubr.bf16.gmra.mrb[0].mxu0 %v598
  %v634 = vpop.f32.mrb[0].mxu0
  %v635 = vadd.f32 0.0, %v634
  %v636 = vpop.f32.mrb[0].mxu0
  %v637 = vpop.f32.mrb[0].mxu0
  %v638 = vadd.f32 0.0, %v637
  %v639 = vpop.f32.mrb[0].mxu0
  %640 = vdwg.mxu0
  %641 = vrot.lane.b32.xlu0 %v437, 64
  %v642 = vpop.permute.xlu0 %641
  %v645 = vsel %vm547, %v593, 0
  %647 = vmatprep.subr.bf16.mxu0 0
  %648 = vmatpush1.bf16.msra.mxu0 %v642
  %649 = vmatprep.subr.bf16.mxu0 0
  %650 = vmatpush1.bf16.msra.mxu0 0
  %651 = vmatprep.subr.bf16.mxu0 0
  %652 = vmatpush1.bf16.msra.mxu0 0
  %653 = vmatprep.subr.bf16.mxu0 0
  %654 = vmatpush1.bf16.msra.mxu0 0
  %655 = vmatprep.subr.bf16.mxu0 0
  %656 = vmatpush1.bf16.msra.mxu0 0
  %657 = vmatprep.subr.bf16.mxu0 0
  %658 = vmatpush1.bf16.msra.mxu0 0
  %659 = vmatprep.subr.bf16.mxu0 0
  %660 = vmatpush1.bf16.msra.mxu0 0
  %661 = vmatprep.subr.bf16.mxu0 0
  %662 = vmatpush1.bf16.msra.mxu0 0
  %663 = vmatprep.subr.bf16.mxu0 0
  %664 = vmatpush1.bf16.msra.mxu0 0
  %665 = vmatprep.subr.bf16.mxu0 0
  %666 = vmatpush1.bf16.msra.mxu0 0
  %667 = vmatprep.subr.bf16.mxu0 0
  %668 = vmatpush1.bf16.msra.mxu0 0
  %669 = vmatprep.subr.bf16.mxu0 0
  %670 = vmatpush1.bf16.msra.mxu0 0
  %671 = vmatprep.subr.bf16.mxu0 0
  %672 = vmatpush1.bf16.msra.mxu0 0
  %673 = vmatprep.subr.bf16.mxu0 0
  %674 = vmatpush1.bf16.msra.mxu0 0
  %675 = vmatprep.subr.bf16.mxu0 0
  %676 = vmatpush1.bf16.msra.mxu0 0
  %677 = vmatprep.subr.bf16.mxu0 0
  %678 = vmatpush1.bf16.msra.mxu0 0
  %679 = vmatprep.mubr.bf16.mxu0 0
  %680 = vmatmul.mubr.bf16.gmra.mrb[0].mxu0 %v645
  %v681 = vpop.f32.mrb[0].mxu0
  %v682 = vadd.f32 0.0, %v681
  %v683 = vpop.f32.mrb[0].mxu0
  %v684 = vpop.f32.mrb[0].mxu0
  %v685 = vadd.f32 0.0, %v684
  %v686 = vpop.f32.mrb[0].mxu0
  %687 = vdwg.mxu0
  %688 = vrot.lane.b32.xlu0 %v436, 120
  %v689 = vpop.permute.xlu0 %688
  %690 = vrot.lane.b32.xlu0 %v436, 88
  %v691 = vpop.permute.xlu0 %690
  %v693 = vsel %vm441, %v689, 0
  %v696 = vsel %vm441, %v691, 0
  %698 = vmatprep.subr.bf16.mxu0 0
  %699 = vmatpush1.bf16.xpose.msra.mxu0 %v696
  %700 = vmatprep.subr.bf16.mxu0 0
  %701 = vmatpush1.bf16.xpose.msra.mxu0 0
  %702 = vmatprep.subr.bf16.mxu0 0
  %703 = vmatpush1.bf16.xpose.msra.mxu0 0
  %704 = vmatprep.subr.bf16.mxu0 0
  %705 = vmatpush1.bf16.xpose.msra.mxu0 0
  %706 = vmatprep.subr.bf16.mxu0 0
  %707 = vmatpush1.bf16.xpose.msra.mxu0 0
  %708 = vmatprep.subr.bf16.mxu0 0
  %709 = vmatpush1.bf16.xpose.msra.mxu0 0
  %710 = vmatprep.subr.bf16.mxu0 0
  %711 = vmatpush1.bf16.xpose.msra.mxu0 0
  %712 = vmatprep.subr.bf16.mxu0 0
  %713 = vmatpush1.bf16.xpose.msra.mxu0 0
  %714 = vmatprep.subr.bf16.mxu0 0
  %715 = vmatpush1.bf16.xpose.msra.mxu0 0
  %716 = vmatprep.subr.bf16.mxu0 0
  %717 = vmatpush1.bf16.xpose.msra.mxu0 0
  %718 = vmatprep.subr.bf16.mxu0 0
  %719 = vmatpush1.bf16.xpose.msra.mxu0 0
  %720 = vmatprep.subr.bf16.mxu0 0
  %721 = vmatpush1.bf16.xpose.msra.mxu0 0
  %722 = vmatprep.subr.bf16.mxu0 0
  %723 = vmatpush1.bf16.xpose.msra.mxu0 0
  %724 = vmatprep.subr.bf16.mxu0 0
  %725 = vmatpush1.bf16.xpose.msra.mxu0 0
  %726 = vmatprep.subr.bf16.mxu0 0
  %727 = vmatpush1.bf16.xpose.msra.mxu0 0
  %728 = vmatprep.subr.bf16.mxu0 0
  %729 = vmatpush1.bf16.xpose.msra.mxu0 0
  %730 = vmatprep.mubr.bf16.mxu0 0
  %731 = vmatmul.mubr.bf16.gmra.mrb[0].mxu0 %v693
  %v732 = vpop.f32.mrb[0].mxu0
  %v733 = vadd.f32 0.0, %v732
  %v734 = vpop.f32.mrb[0].mxu0
  %v735 = vpop.f32.mrb[0].mxu0
  %v736 = vadd.f32 0.0, %v735
  %v737 = vpop.f32.mrb[0].mxu0
  %738 = vdwg.mxu0
  %739 = vrot.lane.b32.xlu0 %v437, 120
  %v740 = vpop.permute.xlu0 %739
  %741 = vrot.lane.b32.xlu0 %v437, 88
  %v742 = vpop.permute.xlu0 %741
  %v744 = vsel %vm441, %v740, 0
  %v747 = vsel %vm441, %v742, 0
  %749 = vmatprep.subr.bf16.mxu0 0
  %750 = vmatpush1.bf16.xpose.msra.mxu0 %v747
  %751 = vmatprep.subr.bf16.mxu0 0
  %752 = vmatpush1.bf16.xpose.msra.mxu0 0
  %753 = vmatprep.subr.bf16.mxu0 0
  %754 = vmatpush1.bf16.xpose.msra.mxu0 0
  %755 = vmatprep.subr.bf16.mxu0 0
  %756 = vmatpush1.bf16.xpose.msra.mxu0 0
  %757 = vmatprep.subr.bf16.mxu0 0
  %758 = vmatpush1.bf16.xpose.msra.mxu0 0
  %759 = vmatprep.subr.bf16.mxu0 0
  %760 = vmatpush1.bf16.xpose.msra.mxu0 0
  %761 = vmatprep.subr.bf16.mxu0 0
  %762 = vmatpush1.bf16.xpose.msra.mxu0 0
  %763 = vmatprep.subr.bf16.mxu0 0
  %764 = vmatpush1.bf16.xpose.msra.mxu0 0
  %765 = vmatprep.subr.bf16.mxu0 0
  %766 = vmatpush1.bf16.xpose.msra.mxu0 0
  %767 = vmatprep.subr.bf16.mxu0 0
  %768 = vmatpush1.bf16.xpose.msra.mxu0 0
  %769 = vmatprep.subr.bf16.mxu0 0
  %770 = vmatpush1.bf16.xpose.msra.mxu0 0
  %771 = vmatprep.subr.bf16.mxu0 0
  %772 = vmatpush1.bf16.xpose.msra.mxu0 0
  %773 = vmatprep.subr.bf16.mxu0 0
  %774 = vmatpush1.bf16.xpose.msra.mxu0 0
  %775 = vmatprep.subr.bf16.mxu0 0
  %776 = vmatpush1.bf16.xpose.msra.mxu0 0
  %777 = vmatprep.subr.bf16.mxu0 0
  %778 = vmatpush1.bf16.xpose.msra.mxu0 0
  %779 = vmatprep.subr.bf16.mxu0 0
  %780 = vmatpush1.bf16.xpose.msra.mxu0 0
  %781 = vmatprep.mubr.bf16.mxu0 0
  %782 = vmatmul.mubr.bf16.gmra.mrb[0].mxu0 %v744
  %v783 = vpop.f32.mrb[0].mxu0
  %v784 = vadd.f32 0.0, %v783
  %v785 = vpop.f32.mrb[0].mxu0
  %v786 = vpop.f32.mrb[0].mxu0
  %v787 = vadd.f32 0.0, %v786
  %v788 = vpop.f32.mrb[0].mxu0
  %789 = vdwg.mxu0
  %v790 = vmul.f32 %v733, 0.35355338
  %v791 = vmul.f32 %v736, 0.35355338
  %v792 = vmul.f32 %v784, 0.35355338
  %v793 = vmul.f32 %v787, 0.35355338
  %v794 = vadd.f32 %v790, %v352
  %v795 = vadd.f32 %v791, %v352
  %v796 = vadd.f32 %v792, %v356
  %v797 = vadd.f32 %v793, %v356
  %v798 = vsel %vm547, %v794, -inf
  %799 = vmax.xlane.f32.xlu0 %v798
  %v800 = vpop.xlane.xlu0 %799
  %v801 = vsel %vm547, %v795, -inf
  %802 = vmax.xlane.f32.xlu0 %v801
  %v803 = vpop.xlane.xlu0 %802
  %v804 = vsel %vm547, %v796, -inf
  %805 = vmax.xlane.f32.xlu0 %v804
  %v806 = vpop.xlane.xlu0 %805
  %v807 = vsel %vm547, %v797, -inf
  %808 = vmax.xlane.f32.xlu0 %v807
  %v809 = vpop.xlane.xlu0 %808
  %v810 = vsub.f32 %v794, %v800
  %v811 = vsub.f32 %v795, %v803
  %v812 = vsub.f32 %v796, %v806
  %v813 = vsub.f32 %v797, %v809
  %v814 = vmul.f32 %v810, 1.442695
  %v815 = vpow.pop %v814
  %v816 = vmul.f32 %v811, 1.442695
  %v817 = vpow.pop %v816
  %v818 = vmul.f32 %v812, 1.442695
  %v819 = vpow.pop %v818
  %v820 = vmul.f32 %v813, 1.442695
  %v821 = vpow.pop %v820
  %v822 = vsel %vm547, %v815, 0.0
  %823 = vadd.xlane.f32.xlu0 %v822
  %v824 = vpop.xlane.xlu0 %823
  %v825 = vsel %vm547, %v817, 0.0
  %826 = vadd.xlane.f32.xlu0 %v825
  %v827 = vpop.xlane.xlu0 %826
  %v828 = vsel %vm547, %v819, 0.0
  %829 = vadd.xlane.f32.xlu0 %v828
  %v830 = vpop.xlane.xlu0 %829
  %v831 = vsel %vm547, %v821, 0.0
  %832 = vadd.xlane.f32.xlu0 %v831
  %v833 = vpop.xlane.xlu0 %832
  %v834 = vrcp.pop %v824
  %v835 = vmul.f32 %v815, %v834
  %v836 = vrcp.pop %v827
  %v837 = vmul.f32 %v817, %v836
  %v838 = vrcp.pop %v830
  %v839 = vmul.f32 %v819, %v838
  %v840 = vrcp.pop %v833
  %v841 = vmul.f32 %v821, %v840
  %v842 = vpack.c.bf16 %v837, %v835
  %v843 = vpack.c.bf16 %v841, %v839
  %844 = vrot.lane.b32.xlu0 %v436, 56
  %v845 = vpop.permute.xlu0 %844
  %v848 = vsel %vm547, %v842, 0
  %850 = vmatprep.subr.bf16.mxu0 0
  %851 = vmatpush1.bf16.msra.mxu0 %v845
  %852 = vmatprep.subr.bf16.mxu0 0
  %853 = vmatpush1.bf16.msra.mxu0 0
  %854 = vmatprep.subr.bf16.mxu0 0
  %855 = vmatpush1.bf16.msra.mxu0 0
  %856 = vmatprep.subr.bf16.mxu0 0
  %857 = vmatpush1.bf16.msra.mxu0 0
  %858 = vmatprep.subr.bf16.mxu0 0
  %859 = vmatpush1.bf16.msra.mxu0 0
  %860 = vmatprep.subr.bf16.mxu0 0
  %861 = vmatpush1.bf16.msra.mxu0 0
  %862 = vmatprep.subr.bf16.mxu0 0
  %863 = vmatpush1.bf16.msra.mxu0 0
  %864 = vmatprep.subr.bf16.mxu0 0
  %865 = vmatpush1.bf16.msra.mxu0 0
  %866 = vmatprep.subr.bf16.mxu0 0
  %867 = vmatpush1.bf16.msra.mxu0 0
  %868 = vmatprep.subr.bf16.mxu0 0
  %869 = vmatpush1.bf16.msra.mxu0 0
  %870 = vmatprep.subr.bf16.mxu0 0
  %871 = vmatpush1.bf16.msra.mxu0 0
  %872 = vmatprep.subr.bf16.mxu0 0
  %873 = vmatpush1.bf16.msra.mxu0 0
  %874 = vmatprep.subr.bf16.mxu0 0
  %875 = vmatpush1.bf16.msra.mxu0 0
  %876 = vmatprep.subr.bf16.mxu0 0
  %877 = vmatpush1.bf16.msra.mxu0 0
  %878 = vmatprep.subr.bf16.mxu0 0
  %879 = vmatpush1.bf16.msra.mxu0 0
  %880 = vmatprep.subr.bf16.mxu0 0
  %881 = vmatpush1.bf16.msra.mxu0 0
  %882 = vmatprep.mubr.bf16.mxu0 0
  %883 = vmatmul.mubr.bf16.gmra.mrb[0].mxu0 %v848
  %v884 = vpop.f32.mrb[0].mxu0
  %v885 = vadd.f32 0.0, %v884
  %v886 = vpop.f32.mrb[0].mxu0
  %v887 = vpop.f32.mrb[0].mxu0
  %v888 = vadd.f32 0.0, %v887
  %v889 = vpop.f32.mrb[0].mxu0
  %890 = vdwg.mxu0
  %891 = vrot.lane.b32.xlu0 %v437, 56
  %v892 = vpop.permute.xlu0 %891
  %v895 = vsel %vm547, %v843, 0
  %897 = vmatprep.subr.bf16.mxu0 0
  %898 = vmatpush1.bf16.msra.mxu0 %v892
  %899 = vmatprep.subr.bf16.mxu0 0
  %900 = vmatpush1.bf16.msra.mxu0 0
  %901 = vmatprep.subr.bf16.mxu0 0
  %902 = vmatpush1.bf16.msra.mxu0 0
  %903 = vmatprep.subr.bf16.mxu0 0
  %904 = vmatpush1.bf16.msra.mxu0 0
  %905 = vmatprep.subr.bf16.mxu0 0
  %906 = vmatpush1.bf16.msra.mxu0 0
  %907 = vmatprep.subr.bf16.mxu0 0
  %908 = vmatpush1.bf16.msra.mxu0 0
  %909 = vmatprep.subr.bf16.mxu0 0
  %910 = vmatpush1.bf16.msra.mxu0 0
  %911 = vmatprep.subr.bf16.mxu0 0
  %912 = vmatpush1.bf16.msra.mxu0 0
  %913 = vmatprep.subr.bf16.mxu0 0
  %914 = vmatpush1.bf16.msra.mxu0 0
  %915 = vmatprep.subr.bf16.mxu0 0
  %916 = vmatpush1.bf16.msra.mxu0 0
  %917 = vmatprep.subr.bf16.mxu0 0
  %918 = vmatpush1.bf16.msra.mxu0 0
  %919 = vmatprep.subr.bf16.mxu0 0
  %920 = vmatpush1.bf16.msra.mxu0 0
  %921 = vmatprep.subr.bf16.mxu0 0
  %922 = vmatpush1.bf16.msra.mxu0 0
  %923 = vmatprep.subr.bf16.mxu0 0
  %924 = vmatpush1.bf16.msra.mxu0 0
  %925 = vmatprep.subr.bf16.mxu0 0
  %926 = vmatpush1.bf16.msra.mxu0 0
  %927 = vmatprep.subr.bf16.mxu0 0
  %928 = vmatpush1.bf16.msra.mxu0 0
  %929 = vmatprep.mubr.bf16.mxu0 0
  %930 = vmatmul.mubr.bf16.gmra.mrb[0].mxu0 %v895
  %v931 = vpop.f32.mrb[0].mxu0
  %v932 = vadd.f32 0.0, %v931
  %v933 = vpop.f32.mrb[0].mxu0
  %v934 = vpop.f32.mrb[0].mxu0
  %v935 = vadd.f32 0.0, %v934
  %v936 = vpop.f32.mrb[0].mxu0
  %937 = vdwg.mxu0
  %938 = vrot.lane.b32.xlu0 %v436, 112
  %v939 = vpop.permute.xlu0 %938
  %940 = vrot.lane.b32.xlu0 %v436, 80
  %v941 = vpop.permute.xlu0 %940
  %v943 = vsel %vm441, %v939, 0
  %v946 = vsel %vm441, %v941, 0
  %948 = vmatprep.subr.bf16.mxu0 0
  %949 = vmatpush1.bf16.xpose.msra.mxu0 %v946
  %950 = vmatprep.subr.bf16.mxu0 0
  %951 = vmatpush1.bf16.xpose.msra.mxu0 0
  %952 = vmatprep.subr.bf16.mxu0 0
  %953 = vmatpush1.bf16.xpose.msra.mxu0 0
  %954 = vmatprep.subr.bf16.mxu0 0
  %955 = vmatpush1.bf16.xpose.msra.mxu0 0
  %956 = vmatprep.subr.bf16.mxu0 0
  %957 = vmatpush1.bf16.xpose.msra.mxu0 0
  %958 = vmatprep.subr.bf16.mxu0 0
  %959 = vmatpush1.bf16.xpose.msra.mxu0 0
  %960 = vmatprep.subr.bf16.mxu0 0
  %961 = vmatpush1.bf16.xpose.msra.mxu0 0
  %962 = vmatprep.subr.bf16.mxu0 0
  %963 = vmatpush1.bf16.xpose.msra.mxu0 0
  %964 = vmatprep.subr.bf16.mxu0 0
  %965 = vmatpush1.bf16.xpose.msra.mxu0 0
  %966 = vmatprep.subr.bf16.mxu0 0
  %967 = vmatpush1.bf16.xpose.msra.mxu0 0
  %968 = vmatprep.subr.bf16.mxu0 0
  %969 = vmatpush1.bf16.xpose.msra.mxu0 0
  %970 = vmatprep.subr.bf16.mxu0 0
  %971 = vmatpush1.bf16.xpose.msra.mxu0 0
  %972 = vmatprep.subr.bf16.mxu0 0
  %973 = vmatpush1.bf16.xpose.msra.mxu0 0
  %974 = vmatprep.subr.bf16.mxu0 0
  %975 = vmatpush1.bf16.xpose.msra.mxu0 0
  %976 = vmatprep.subr.bf16.mxu0 0
  %977 = vmatpush1.bf16.xpose.msra.mxu0 0
  %978 = vmatprep.subr.bf16.mxu0 0
  %979 = vmatpush1.bf16.xpose.msra.mxu0 0
  %980 = vmatprep.mubr.bf16.mxu0 0
  %981 = vmatmul.mubr.bf16.gmra.mrb[0].mxu0 %v943
  %v982 = vpop.f32.mrb[0].mxu0
  %v983 = vadd.f32 0.0, %v982
  %v984 = vpop.f32.mrb[0].mxu0
  %v985 = vpop.f32.mrb[0].mxu0
  %v986 = vadd.f32 0.0, %v985
  %v987 = vpop.f32.mrb[0].mxu0
  %988 = vdwg.mxu0
  %989 = vrot.lane.b32.xlu0 %v437, 112
  %v990 = vpop.permute.xlu0 %989
  %991 = vrot.lane.b32.xlu0 %v437, 80
  %v992 = vpop.permute.xlu0 %991
  %v994 = vsel %vm441, %v990, 0
  %v997 = vsel %vm441, %v992, 0
  %999 = vmatprep.subr.bf16.mxu0 0
  %1000 = vmatpush1.bf16.xpose.msra.mxu0 %v997
  %1001 = vmatprep.subr.bf16.mxu0 0
  %1002 = vmatpush1.bf16.xpose.msra.mxu0 0
  %1003 = vmatprep.subr.bf16.mxu0 0
  %1004 = vmatpush1.bf16.xpose.msra.mxu0 0
  %1005 = vmatprep.subr.bf16.mxu0 0
  %1006 = vmatpush1.bf16.xpose.msra.mxu0 0
  %1007 = vmatprep.subr.bf16.mxu0 0
  %1008 = vmatpush1.bf16.xpose.msra.mxu0 0
  %1009 = vmatprep.subr.bf16.mxu0 0
  %1010 = vmatpush1.bf16.xpose.msra.mxu0 0
  %1011 = vmatprep.subr.bf16.mxu0 0
  %1012 = vmatpush1.bf16.xpose.msra.mxu0 0
  %1013 = vmatprep.subr.bf16.mxu0 0
  %1014 = vmatpush1.bf16.xpose.msra.mxu0 0
  %1015 = vmatprep.subr.bf16.mxu0 0
  %1016 = vmatpush1.bf16.xpose.msra.mxu0 0
  %1017 = vmatprep.subr.bf16.mxu0 0
  %1018 = vmatpush1.bf16.xpose.msra.mxu0 0
  %1019 = vmatprep.subr.bf16.mxu0 0
  %1020 = vmatpush1.bf16.xpose.msra.mxu0 0
  %1021 = vmatprep.subr.bf16.mxu0 0
  %1022 = vmatpush1.bf16.xpose.msra.mxu0 0
  %1023 = vmatprep.subr.bf16.mxu0 0
  %1024 = vmatpush1.bf16.xpose.msra.mxu0 0
  %1025 = vmatprep.subr.bf16.mxu0 0
  %1026 = vmatpush1.bf16.xpose.msra.mxu0 0
  %1027 = vmatprep.subr.bf16.mxu0 0
  %1028 = vmatpush1.bf16.xpose.msra.mxu0 0
  %1029 = vmatprep.subr.bf16.mxu0 0
  %1030 = vmatpush1.bf16.xpose.msra.mxu0 0
  %1031 = vmatprep.mubr.bf16.mxu0 0
  %1032 = vmatmul.mubr.bf16.gmra.mrb[0].mxu0 %v994
  %v1033 = vpop.f32.mrb[0].mxu0
  %v1034 = vadd.f32 0.0, %v1033
  %v1035 = vpop.f32.mrb[0].mxu0
  %v1036 = vpop.f32.mrb[0].mxu0
  %v1037 = vadd.f32 0.0, %v1036
  %v1038 = vpop.f32.mrb[0].mxu0
  %1039 = vdwg.mxu0
  %v1040 = vmul.f32 %v983, 0.35355338
  %v1041 = vmul.f32 %v986, 0.35355338
  %v1042 = vmul.f32 %v1034, 0.35355338
  %v1043 = vmul.f32 %v1037, 0.35355338
  %v1044 = vadd.f32 %v1040, %v352
  %v1045 = vadd.f32 %v1041, %v352
  %v1046 = vadd.f32 %v1042, %v356
  %v1047 = vadd.f32 %v1043, %v356
  %v1048 = vsel %vm547, %v1044, -inf
  %1049 = vmax.xlane.f32.xlu0 %v1048
  %v1050 = vpop.xlane.xlu0 %1049
  %v1051 = vsel %vm547, %v1045, -inf
  %1052 = vmax.xlane.f32.xlu0 %v1051
  %v1053 = vpop.xlane.xlu0 %1052
  %v1054 = vsel %vm547, %v1046, -inf
  %1055 = vmax.xlane.f32.xlu0 %v1054
  %v1056 = vpop.xlane.xlu0 %1055
  %v1057 = vsel %vm547, %v1047, -inf
  %1058 = vmax.xlane.f32.xlu0 %v1057
  %v1059 = vpop.xlane.xlu0 %1058
  %v1060 = vsub.f32 %v1044, %v1050
  %v1061 = vsub.f32 %v1045, %v1053
  %v1062 = vsub.f32 %v1046, %v1056
  %v1063 = vsub.f32 %v1047, %v1059
  %v1064 = vmul.f32 %v1060, 1.442695
  %v1065 = vpow.pop %v1064
  %v1066 = vmul.f32 %v1061, 1.442695
  %v1067 = vpow.pop %v1066
  %v1068 = vmul.f32 %v1062, 1.442695
  %v1069 = vpow.pop %v1068
  %v1070 = vmul.f32 %v1063, 1.442695
  %v1071 = vpow.pop %v1070
  %v1072 = vsel %vm547, %v1065, 0.0
  %1073 = vadd.xlane.f32.xlu0 %v1072
  %v1074 = vpop.xlane.xlu0 %1073
  %v1075 = vsel %vm547, %v1067, 0.0
  %1076 = vadd.xlane.f32.xlu0 %v1075
  %v1077 = vpop.xlane.xlu0 %1076
  %v1078 = vsel %vm547, %v1069, 0.0
  %1079 = vadd.xlane.f32.xlu0 %v1078
  %v1080 = vpop.xlane.xlu0 %1079
  %v1081 = vsel %vm547, %v1071, 0.0
  %1082 = vadd.xlane.f32.xlu0 %v1081
  %v1083 = vpop.xlane.xlu0 %1082
  %v1084 = vrcp.pop %v1074
  %v1085 = vmul.f32 %v1065, %v1084
  %v1086 = vrcp.pop %v1077
  %v1087 = vmul.f32 %v1067, %v1086
  %v1088 = vrcp.pop %v1080
  %v1089 = vmul.f32 %v1069, %v1088
  %v1090 = vrcp.pop %v1083
  %v1091 = vmul.f32 %v1071, %v1090
  %v1092 = vpack.c.bf16 %v1087, %v1085
  %v1093 = vpack.c.bf16 %v1091, %v1089
  %1094 = vrot.lane.b32.xlu0 %v436, 48
  %v1095 = vpop.permute.xlu0 %1094
  %v1098 = vsel %vm547, %v1092, 0
  %1100 = vmatprep.subr.bf16.mxu0 0
  %1101 = vmatpush1.bf16.msra.mxu0 %v1095
  %1102 = vmatprep.subr.bf16.mxu0 0
  %1103 = vmatpush1.bf16.msra.mxu0 0
  %1104 = vmatprep.subr.bf16.mxu0 0
  %1105 = vmatpush1.bf16.msra.mxu0 0
  %1106 = vmatprep.subr.bf16.mxu0 0
  %1107 = vmatpush1.bf16.msra.mxu0 0
  %1108 = vmatprep.subr.bf16.mxu0 0
  %1109 = vmatpush1.bf16.msra.mxu0 0
  %1110 = vmatprep.subr.bf16.mxu0 0
  %1111 = vmatpush1.bf16.msra.mxu0 0
  %1112 = vmatprep.subr.bf16.mxu0 0
  %1113 = vmatpush1.bf16.msra.mxu0 0
  %1114 = vmatprep.subr.bf16.mxu0 0
  %1115 = vmatpush1.bf16.msra.mxu0 0
  %1116 = vmatprep.subr.bf16.mxu0 0
  %1117 = vmatpush1.bf16.msra.mxu0 0
  %1118 = vmatprep.subr.bf16.mxu0 0
  %1119 = vmatpush1.bf16.msra.mxu0 0
  %1120 = vmatprep.subr.bf16.mxu0 0
  %1121 = vmatpush1.bf16.msra.mxu0 0
  %1122 = vmatprep.subr.bf16.mxu0 0
  %1123 = vmatpush1.bf16.msra.mxu0 0
  %1124 = vmatprep.subr.bf16.mxu0 0
  %1125 = vmatpush1.bf16.msra.mxu0 0
  %1126 = vmatprep.subr.bf16.mxu0 0
  %1127 = vmatpush1.bf16.msra.mxu0 0
  %1128 = vmatprep.subr.bf16.mxu0 0
  %1129 = vmatpush1.bf16.msra.mxu0 0
  %1130 = vmatprep.subr.bf16.mxu0 0
  %1131 = vmatpush1.bf16.msra.mxu0 0
  %1132 = vmatprep.mubr.bf16.mxu0 0
  %1133 = vmatmul.mubr.bf16.gmra.mrb[0].mxu0 %v1098
  %v1134 = vpop.f32.mrb[0].mxu0
  %v1135 = vadd.f32 0.0, %v1134
  %v1136 = vpop.f32.mrb[0].mxu0
  %v1137 = vpop.f32.mrb[0].mxu0
  %v1138 = vadd.f32 0.0, %v1137
  %v1139 = vpop.f32.mrb[0].mxu0
  %1140 = vdwg.mxu0
  %1141 = vrot.lane.b32.xlu0 %v437, 48
  %v1142 = vpop.permute.xlu0 %1141
  %v1145 = vsel %vm547, %v1093, 0
  %1147 = vmatprep.subr.bf16.mxu0 0
  %1148 = vmatpush1.bf16.msra.mxu0 %v1142
  %1149 = vmatprep.subr.bf16.mxu0 0
  %1150 = vmatpush1.bf16.msra.mxu0 0
  %1151 = vmatprep.subr.bf16.mxu0 0
  %1152 = vmatpush1.bf16.msra.mxu0 0
  %1153 = vmatprep.subr.bf16.mxu0 0
  %1154 = vmatpush1.bf16.msra.mxu0 0
  %1155 = vmatprep.subr.bf16.mxu0 0
  %1156 = vmatpush1.bf16.msra.mxu0 0
  %1157 = vmatprep.subr.bf16.mxu0 0
  %1158 = vmatpush1.bf16.msra.mxu0 0
  %1159 = vmatprep.subr.bf16.mxu0 0
  %1160 = vmatpush1.bf16.msra.mxu0 0
  %1161 = vmatprep.subr.bf16.mxu0 0
  %1162 = vmatpush1.bf16.msra.mxu0 0
  %1163 = vmatprep.subr.bf16.mxu0 0
  %1164 = vmatpush1.bf16.msra.mxu0 0
  %1165 = vmatprep.subr.bf16.mxu0 0
  %1166 = vmatpush1.bf16.msra.mxu0 0
  %1167 = vmatprep.subr.bf16.mxu0 0
  %1168 = vmatpush1.bf16.msra.mxu0 0
  %1169 = vmatprep.subr.bf16.mxu0 0
  %1170 = vmatpush1.bf16.msra.mxu0 0
  %1171 = vmatprep.subr.bf16.mxu0 0
  %1172 = vmatpush1.bf16.msra.mxu0 0
  %1173 = vmatprep.subr.bf16.mxu0 0
  %1174 = vmatpush1.bf16.msra.mxu0 0
  %1175 = vmatprep.subr.bf16.mxu0 0
  %1176 = vmatpush1.bf16.msra.mxu0 0
  %1177 = vmatprep.subr.bf16.mxu0 0
  %1178 = vmatpush1.bf16.msra.mxu0 0
  %1179 = vmatprep.mubr.bf16.mxu0 0
  %1180 = vmatmul.mubr.bf16.gmra.mrb[0].mxu0 %v1145
  %v1181 = vpop.f32.mrb[0].mxu0
  %v1182 = vadd.f32 0.0, %v1181
  %v1183 = vpop.f32.mrb[0].mxu0
  %v1184 = vpop.f32.mrb[0].mxu0
  %v1185 = vadd.f32 0.0, %v1184
  %v1186 = vpop.f32.mrb[0].mxu0
  %1187 = vdwg.mxu0
  %1188 = vrot.lane.b32.xlu0 %v436, 104
  %v1189 = vpop.permute.xlu0 %1188
  %1190 = vrot.lane.b32.xlu0 %v436, 72
  %v1191 = vpop.permute.xlu0 %1190
  %v1193 = vsel %vm441, %v1189, 0
  %v1196 = vsel %vm441, %v1191, 0
  %1198 = vmatprep.subr.bf16.mxu0 0
  %1199 = vmatpush1.bf16.xpose.msra.mxu0 %v1196
  %1200 = vmatprep.subr.bf16.mxu0 0
  %1201 = vmatpush1.bf16.xpose.msra.mxu0 0
  %1202 = vmatprep.subr.bf16.mxu0 0
  %1203 = vmatpush1.bf16.xpose.msra.mxu0 0
  %1204 = vmatprep.subr.bf16.mxu0 0
  %1205 = vmatpush1.bf16.xpose.msra.mxu0 0
  %1206 = vmatprep.subr.bf16.mxu0 0
  %1207 = vmatpush1.bf16.xpose.msra.mxu0 0
  %1208 = vmatprep.subr.bf16.mxu0 0
  %1209 = vmatpush1.bf16.xpose.msra.mxu0 0
  %1210 = vmatprep.subr.bf16.mxu0 0
  %1211 = vmatpush1.bf16.xpose.msra.mxu0 0
  %1212 = vmatprep.subr.bf16.mxu0 0
  %1213 = vmatpush1.bf16.xpose.msra.mxu0 0
  %1214 = vmatprep.subr.bf16.mxu0 0
  %1215 = vmatpush1.bf16.xpose.msra.mxu0 0
  %1216 = vmatprep.subr.bf16.mxu0 0
  %1217 = vmatpush1.bf16.xpose.msra.mxu0 0
  %1218 = vmatprep.subr.bf16.mxu0 0
  %1219 = vmatpush1.bf16.xpose.msra.mxu0 0
  %1220 = vmatprep.subr.bf16.mxu0 0
  %1221 = vmatpush1.bf16.xpose.msra.mxu0 0
  %1222 = vmatprep.subr.bf16.mxu0 0
  %1223 = vmatpush1.bf16.xpose.msra.mxu0 0
  %1224 = vmatprep.subr.bf16.mxu0 0
  %1225 = vmatpush1.bf16.xpose.msra.mxu0 0
  %1226 = vmatprep.subr.bf16.mxu0 0
  %1227 = vmatpush1.bf16.xpose.msra.mxu0 0
  %1228 = vmatprep.subr.bf16.mxu0 0
  %1229 = vmatpush1.bf16.xpose.msra.mxu0 0
  %1230 = vmatprep.mubr.bf16.mxu0 0
  %1231 = vmatmul.mubr.bf16.gmra.mrb[0].mxu0 %v1193
  %v1232 = vpop.f32.mrb[0].mxu0
  %v1233 = vadd.f32 0.0, %v1232
  %v1234 = vpop.f32.mrb[0].mxu0
  %v1235 = vpop.f32.mrb[0].mxu0
  %v1236 = vadd.f32 0.0, %v1235
  %v1237 = vpop.f32.mrb[0].mxu0
  %1238 = vdwg.mxu0
  %1239 = vrot.lane.b32.xlu0 %v437, 104
  %v1240 = vpop.permute.xlu0 %1239
  %1241 = vrot.lane.b32.xlu0 %v437, 72
  %v1242 = vpop.permute.xlu0 %1241
  %v1244 = vsel %vm441, %v1240, 0
  %v1247 = vsel %vm441, %v1242, 0
  %1249 = vmatprep.subr.bf16.mxu0 0
  %1250 = vmatpush1.bf16.xpose.msra.mxu0 %v1247
  %1251 = vmatprep.subr.bf16.mxu0 0
  %1252 = vmatpush1.bf16.xpose.msra.mxu0 0
  %1253 = vmatprep.subr.bf16.mxu0 0
  %1254 = vmatpush1.bf16.xpose.msra.mxu0 0
  %1255 = vmatprep.subr.bf16.mxu0 0
  %1256 = vmatpush1.bf16.xpose.msra.mxu0 0
  %1257 = vmatprep.subr.bf16.mxu0 0
  %1258 = vmatpush1.bf16.xpose.msra.mxu0 0
  %1259 = vmatprep.subr.bf16.mxu0 0
  %1260 = vmatpush1.bf16.xpose.msra.mxu0 0
  %1261 = vmatprep.subr.bf16.mxu0 0
  %1262 = vmatpush1.bf16.xpose.msra.mxu0 0
  %1263 = vmatprep.subr.bf16.mxu0 0
  %1264 = vmatpush1.bf16.xpose.msra.mxu0 0
  %1265 = vmatprep.subr.bf16.mxu0 0
  %1266 = vmatpush1.bf16.xpose.msra.mxu0 0
  %1267 = vmatprep.subr.bf16.mxu0 0
  %1268 = vmatpush1.bf16.xpose.msra.mxu0 0
  %1269 = vmatprep.subr.bf16.mxu0 0
  %1270 = vmatpush1.bf16.xpose.msra.mxu0 0
  %1271 = vmatprep.subr.bf16.mxu0 0
  %1272 = vmatpush1.bf16.xpose.msra.mxu0 0
  %1273 = vmatprep.subr.bf16.mxu0 0
  %1274 = vmatpush1.bf16.xpose.msra.mxu0 0
  %1275 = vmatprep.subr.bf16.mxu0 0
  %1276 = vmatpush1.bf16.xpose.msra.mxu0 0
  %1277 = vmatprep.subr.bf16.mxu0 0
  %1278 = vmatpush1.bf16.xpose.msra.mxu0 0
  %1279 = vmatprep.subr.bf16.mxu0 0
  %1280 = vmatpush1.bf16.xpose.msra.mxu0 0
  %1281 = vmatprep.mubr.bf16.mxu0 0
  %1282 = vmatmul.mubr.bf16.gmra.mrb[0].mxu0 %v1244
  %v1283 = vpop.f32.mrb[0].mxu0
  %v1284 = vadd.f32 0.0, %v1283
  %v1285 = vpop.f32.mrb[0].mxu0
  %v1286 = vpop.f32.mrb[0].mxu0
  %v1287 = vadd.f32 0.0, %v1286
  %v1288 = vpop.f32.mrb[0].mxu0
  %1289 = vdwg.mxu0
  %v1290 = vmul.f32 %v1233, 0.35355338
  %v1291 = vmul.f32 %v1236, 0.35355338
  %v1292 = vmul.f32 %v1284, 0.35355338
  %v1293 = vmul.f32 %v1287, 0.35355338
  %v1294 = vadd.f32 %v1290, %v352
  %v1295 = vadd.f32 %v1291, %v352
  %v1296 = vadd.f32 %v1292, %v356
  %v1297 = vadd.f32 %v1293, %v356
  %v1298 = vsel %vm547, %v1294, -inf
  %1299 = vmax.xlane.f32.xlu0 %v1298
  %v1300 = vpop.xlane.xlu0 %1299
  %v1301 = vsel %vm547, %v1295, -inf
  %1302 = vmax.xlane.f32.xlu0 %v1301
  %v1303 = vpop.xlane.xlu0 %1302
  %v1304 = vsel %vm547, %v1296, -inf
  %1305 = vmax.xlane.f32.xlu0 %v1304
  %v1306 = vpop.xlane.xlu0 %1305
  %v1307 = vsel %vm547, %v1297, -inf
  %1308 = vmax.xlane.f32.xlu0 %v1307
  %v1309 = vpop.xlane.xlu0 %1308
  %v1310 = vsub.f32 %v1294, %v1300
  %v1311 = vsub.f32 %v1295, %v1303
  %v1312 = vsub.f32 %v1296, %v1306
  %v1313 = vsub.f32 %v1297, %v1309
  %v1314 = vmul.f32 %v1310, 1.442695
  %v1315 = vpow.pop %v1314
  %v1316 = vmul.f32 %v1311, 1.442695
  %v1317 = vpow.pop %v1316
  %v1318 = vmul.f32 %v1312, 1.442695
  %v1319 = vpow.pop %v1318
  %v1320 = vmul.f32 %v1313, 1.442695
  %v1321 = vpow.pop %v1320
  %v1322 = vsel %vm547, %v1315, 0.0
  %1323 = vadd.xlane.f32.xlu0 %v1322
  %v1324 = vpop.xlane.xlu0 %1323
  %v1325 = vsel %vm547, %v1317, 0.0
  %1326 = vadd.xlane.f32.xlu0 %v1325
  %v1327 = vpop.xlane.xlu0 %1326
  %v1328 = vsel %vm547, %v1319, 0.0
  %1329 = vadd.xlane.f32.xlu0 %v1328
  %v1330 = vpop.xlane.xlu0 %1329
  %v1331 = vsel %vm547, %v1321, 0.0
  %1332 = vadd.xlane.f32.xlu0 %v1331
  %v1333 = vpop.xlane.xlu0 %1332
  %v1334 = vrcp.pop %v1324
  %v1335 = vmul.f32 %v1315, %v1334
  %v1336 = vrcp.pop %v1327
  %v1337 = vmul.f32 %v1317, %v1336
  %v1338 = vrcp.pop %v1330
  %v1339 = vmul.f32 %v1319, %v1338
  %v1340 = vrcp.pop %v1333
  %v1341 = vmul.f32 %v1321, %v1340
  %v1342 = vpack.c.bf16 %v1337, %v1335
  %v1343 = vpack.c.bf16 %v1341, %v1339
  %1344 = vrot.lane.b32.xlu0 %v436, 40
  %v1345 = vpop.permute.xlu0 %1344
  %v1348 = vsel %vm547, %v1342, 0
  %1350 = vmatprep.subr.bf16.mxu0 0
  %1351 = vmatpush1.bf16.msra.mxu0 %v1345
  %1352 = vmatprep.subr.bf16.mxu0 0
  %1353 = vmatpush1.bf16.msra.mxu0 0
  %1354 = vmatprep.subr.bf16.mxu0 0
  %1355 = vmatpush1.bf16.msra.mxu0 0
  %1356 = vmatprep.subr.bf16.mxu0 0
  %1357 = vmatpush1.bf16.msra.mxu0 0
  %1358 = vmatprep.subr.bf16.mxu0 0
  %1359 = vmatpush1.bf16.msra.mxu0 0
  %1360 = vmatprep.subr.bf16.mxu0 0
  %1361 = vmatpush1.bf16.msra.mxu0 0
  %1362 = vmatprep.subr.bf16.mxu0 0
  %1363 = vmatpush1.bf16.msra.mxu0 0
  %1364 = vmatprep.subr.bf16.mxu0 0
  %1365 = vmatpush1.bf16.msra.mxu0 0
  %1366 = vmatprep.subr.bf16.mxu0 0
  %1367 = vmatpush1.bf16.msra.mxu0 0
  %1368 = vmatprep.subr.bf16.mxu0 0
  %1369 = vmatpush1.bf16.msra.mxu0 0
  %1370 = vmatprep.subr.bf16.mxu0 0
  %1371 = vmatpush1.bf16.msra.mxu0 0
  %1372 = vmatprep.subr.bf16.mxu0 0
  %1373 = vmatpush1.bf16.msra.mxu0 0
  %1374 = vmatprep.subr.bf16.mxu0 0
  %1375 = vmatpush1.bf16.msra.mxu0 0
  %1376 = vmatprep.subr.bf16.mxu0 0
  %1377 = vmatpush1.bf16.msra.mxu0 0
  %1378 = vmatprep.subr.bf16.mxu0 0
  %1379 = vmatpush1.bf16.msra.mxu0 0
  %1380 = vmatprep.subr.bf16.mxu0 0
  %1381 = vmatpush1.bf16.msra.mxu0 0
  %1382 = vmatprep.mubr.bf16.mxu0 0
  %1383 = vmatmul.mubr.bf16.gmra.mrb[0].mxu0 %v1348
  %v1384 = vpop.f32.mrb[0].mxu0
  %v1385 = vadd.f32 0.0, %v1384
  %v1386 = vpop.f32.mrb[0].mxu0
  %v1387 = vpop.f32.mrb[0].mxu0
  %v1388 = vadd.f32 0.0, %v1387
  %v1389 = vpop.f32.mrb[0].mxu0
  %1390 = vdwg.mxu0
  %1391 = vrot.lane.b32.xlu0 %v437, 40
  %v1392 = vpop.permute.xlu0 %1391
  %v1395 = vsel %vm547, %v1343, 0
  %1397 = vmatprep.subr.bf16.mxu0 0
  %1398 = vmatpush1.bf16.msra.mxu0 %v1392
  %1399 = vmatprep.subr.bf16.mxu0 0
  %1400 = vmatpush1.bf16.msra.mxu0 0
  %1401 = vmatprep.subr.bf16.mxu0 0
  %1402 = vmatpush1.bf16.msra.mxu0 0
  %1403 = vmatprep.subr.bf16.mxu0 0
  %1404 = vmatpush1.bf16.msra.mxu0 0
  %1405 = vmatprep.subr.bf16.mxu0 0
  %1406 = vmatpush1.bf16.msra.mxu0 0
  %1407 = vmatprep.subr.bf16.mxu0 0
  %1408 = vmatpush1.bf16.msra.mxu0 0
  %1409 = vmatprep.subr.bf16.mxu0 0
  %1410 = vmatpush1.bf16.msra.mxu0 0
  %1411 = vmatprep.subr.bf16.mxu0 0
  %1412 = vmatpush1.bf16.msra.mxu0 0
  %1413 = vmatprep.subr.bf16.mxu0 0
  %1414 = vmatpush1.bf16.msra.mxu0 0
  %1415 = vmatprep.subr.bf16.mxu0 0
  %1416 = vmatpush1.bf16.msra.mxu0 0
  %1417 = vmatprep.subr.bf16.mxu0 0
  %1418 = vmatpush1.bf16.msra.mxu0 0
  %1419 = vmatprep.subr.bf16.mxu0 0
  %1420 = vmatpush1.bf16.msra.mxu0 0
  %1421 = vmatprep.subr.bf16.mxu0 0
  %1422 = vmatpush1.bf16.msra.mxu0 0
  %1423 = vmatprep.subr.bf16.mxu0 0
  %1424 = vmatpush1.bf16.msra.mxu0 0
  %1425 = vmatprep.subr.bf16.mxu0 0
  %1426 = vmatpush1.bf16.msra.mxu0 0
  %1427 = vmatprep.subr.bf16.mxu0 0
  %1428 = vmatpush1.bf16.msra.mxu0 0
  %1429 = vmatprep.mubr.bf16.mxu0 0
  %1430 = vmatmul.mubr.bf16.gmra.mrb[0].mxu0 %v1395
  %v1431 = vpop.f32.mrb[0].mxu0
  %v1432 = vadd.f32 0.0, %v1431
  %v1433 = vpop.f32.mrb[0].mxu0
  %v1434 = vpop.f32.mrb[0].mxu0
  %v1435 = vadd.f32 0.0, %v1434
  %v1436 = vpop.f32.mrb[0].mxu0
  %1437 = vdwg.mxu0
  %1442 = vrot.lane.b32.xlu0 %v885, 8
  %v1443 = vpop.permute.xlu0 %1442
  %1444 = vrot.lane.b32.xlu0 %v888, 8
  %v1445 = vpop.permute.xlu0 %1444
  %1446 = vrot.lane.b32.xlu0 %v932, 8
  %v1447 = vpop.permute.xlu0 %1446
  %1448 = vrot.lane.b32.xlu0 %v935, 8
  %v1449 = vpop.permute.xlu0 %1448
  %1458 = vrot.lane.b32.xlu0 %v1135, 16
  %v1459 = vpop.permute.xlu0 %1458
  %1460 = vrot.lane.b32.xlu0 %v1138, 16
  %v1461 = vpop.permute.xlu0 %1460
  %1462 = vrot.lane.b32.xlu0 %v1182, 16
  %v1463 = vpop.permute.xlu0 %1462
  %1464 = vrot.lane.b32.xlu0 %v1185, 16
  %v1465 = vpop.permute.xlu0 %1464
  %1474 = vrot.lane.b32.xlu0 %v1385, 24
  %v1475 = vpop.permute.xlu0 %1474
  %1476 = vrot.lane.b32.xlu0 %v1388, 24
  %v1477 = vpop.permute.xlu0 %1476
  %1478 = vrot.lane.b32.xlu0 %v1432, 24
  %v1479 = vpop.permute.xlu0 %1478
  %1480 = vrot.lane.b32.xlu0 %v1435, 24
  %v1481 = vpop.permute.xlu0 %1480
  %v1486 = vsel %vm441, %v635, %v1443
  %v1487 = vsel %vm441, %v638, %v1445
  %v1488 = vsel %vm441, %v682, %v1447
  %v1489 = vsel %vm441, %v685, %v1449
  %v1490 = vsel %vm547, %v1486, %v1459
  %v1491 = vsel %vm547, %v1487, %v1461
  %v1492 = vsel %vm547, %v1488, %v1463
  %v1493 = vsel %vm547, %v1489, %v1465
  %vm1494 = vcmask 195584
  %v1495 = vsel %vm1494, %v1490, %v1475
  %v1496 = vsel %vm1494, %v1491, %v1477
  %v1497 = vsel %vm1494, %v1492, %v1479
  %v1498 = vsel %vm1494, %v1493, %v1481
  %v1499 = vpack.c.bf16 %v1496, %v1495
  %v1500 = vpack.c.bf16 %v1498, %v1497
  %v1501 = vld [vmem:[%s6] sm:$0xf]
  %v1502 = vld [vmem:[%s6 + $0x4] sm:$0xf]
  %v1503 = vld [vmem:[%s6 + $0x8] sm:$0xf]
  %v1504 = vld [vmem:[%s6 + $0xc] sm:$0xf]
  %v1505 = vlaneseq
  %v1506 = vshrl.u32 %v1505, 7
  %v1507 = vsub.s32 7, %v1506
  %v1508 = vrot.slane %v27, %v1507
  %v1513 = vunpack.c.l.b16 %v1501
  %v1514 = vunpack.c.l.b16 %v1502
  %v1515 = vunpack.c.l.b16 %v1503
  %v1516 = vunpack.c.l.b16 %v1504
  %v1517 = vpack.c.b16 %v1514, %v1513
  %v1518 = vpack.c.b16 %v1516, %v1515
  %v1522 = vsel %vm253, %v1499, 0
  %v1525 = vsel %vm253, %v1500, 0
  %1527 = vmatprep.subr.bf16.mxu0 0
  %1528 = vmatpush1.bf16.msra.mxu0 %v1517
  %1529 = vmatprep.subr.bf16.mxu0 0
  %1530 = vmatpush1.bf16.msra.mxu0 %v1518
  %1531 = vmatprep.subr.bf16.mxu0 0
  %1532 = vmatpush1.bf16.msra.mxu0 0
  %1533 = vmatprep.subr.bf16.mxu0 0
  %1534 = vmatpush1.bf16.msra.mxu0 0
  %1535 = vmatprep.subr.bf16.mxu0 0
  %1536 = vmatpush1.bf16.msra.mxu0 0
  %1537 = vmatprep.subr.bf16.mxu0 0
  %1538 = vmatpush1.bf16.msra.mxu0 0
  %1539 = vmatprep.subr.bf16.mxu0 0
  %1540 = vmatpush1.bf16.msra.mxu0 0
  %1541 = vmatprep.subr.bf16.mxu0 0
  %1542 = vmatpush1.bf16.msra.mxu0 0
  %1543 = vmatprep.subr.bf16.mxu0 0
  %1544 = vmatpush1.bf16.msra.mxu0 0
  %1545 = vmatprep.subr.bf16.mxu0 0
  %1546 = vmatpush1.bf16.msra.mxu0 0
  %1547 = vmatprep.subr.bf16.mxu0 0
  %1548 = vmatpush1.bf16.msra.mxu0 0
  %1549 = vmatprep.subr.bf16.mxu0 0
  %1550 = vmatpush1.bf16.msra.mxu0 0
  %1551 = vmatprep.subr.bf16.mxu0 0
  %1552 = vmatpush1.bf16.msra.mxu0 0
  %1553 = vmatprep.subr.bf16.mxu0 0
  %1554 = vmatpush1.bf16.msra.mxu0 0
  %1555 = vmatprep.subr.bf16.mxu0 0
  %1556 = vmatpush1.bf16.msra.mxu0 0
  %1557 = vmatprep.subr.bf16.mxu0 0
  %1558 = vmatpush1.bf16.msra.mxu0 0
  %1559 = vmatprep.mubr.bf16.mxu0 0
  %1560 = vmatmul.mubr.bf16.gmra.mrb[0].mxu0 %v1522
  %v1561 = vpop.f32.mrb[0].mxu0
  %v1562 = vadd.f32 %v1508, %v1561
  %v1563 = vpop.f32.mrb[0].mxu0
  %v1564 = vpop.f32.mrb[0].mxu0
  %v1565 = vadd.f32 %v1508, %v1564
  %v1566 = vpop.f32.mrb[0].mxu0
  %1567 = vmatprep.mubr.bf16.mxu0 0
  %1568 = vmatmul.mubr.bf16.gmra.mrb[0].mxu0 %v1525
  %v1569 = vpop.f32.mrb[0].mxu0
  %v1570 = vadd.f32 %v1508, %v1569
  %v1571 = vpop.f32.mrb[0].mxu0
  %v1572 = vpop.f32.mrb[0].mxu0
  %v1573 = vadd.f32 %v1508, %v1572
  %v1574 = vpop.f32.mrb[0].mxu0
  %1575 = vdwg.mxu0
  %v1576 = vadd.f32 %v319, %v1562
  %v1577 = vadd.f32 %v320, %v1565
  %v1578 = vadd.f32 %v321, %v1570
  %v1579 = vadd.f32 %v322, %v1573
  %v1580 = vsel %vm253, %v1576, 0.0
  %1581 = vadd.xlane.f32.xlu0 %v1580
  %v1582 = vpop.xlane.xlu0 %1581
  %v1583 = vsel %vm253, %v1577, 0.0
  %1584 = vadd.xlane.f32.xlu0 %v1583
  %v1585 = vpop.xlane.xlu0 %1584
  %v1586 = vsel %vm253, %v1578, 0.0
  %1587 = vadd.xlane.f32.xlu0 %v1586
  %v1588 = vpop.xlane.xlu0 %1587
  %v1589 = vsel %vm253, %v1579, 0.0
  %1590 = vadd.xlane.f32.xlu0 %v1589
  %v1591 = vpop.xlane.xlu0 %1590
  %v1592 = vmul.f32 %v1582, %v266
  %v1593 = vmul.f32 %v1585, %v266
  %v1594 = vmul.f32 %v1588, %v266
  %v1595 = vmul.f32 %v1591, %v266
  %v1596 = vsub.f32 %v1576, %v1592
  %v1597 = vsub.f32 %v1577, %v1593
  %v1598 = vsub.f32 %v1578, %v1594
  %v1599 = vsub.f32 %v1579, %v1595
  %v1600 = vmul.f32 %v1596, %v1596
  %v1601 = vmul.f32 %v1597, %v1597
  %v1602 = vmul.f32 %v1598, %v1598
  %v1603 = vmul.f32 %v1599, %v1599
  %v1604 = vsel %vm253, %v1600, 0.0
  %1605 = vadd.xlane.f32.xlu0 %v1604
  %v1606 = vpop.xlane.xlu0 %1605
  %v1607 = vsel %vm253, %v1601, 0.0
  %1608 = vadd.xlane.f32.xlu0 %v1607
  %v1609 = vpop.xlane.xlu0 %1608
  %v1610 = vsel %vm253, %v1602, 0.0
  %1611 = vadd.xlane.f32.xlu0 %v1610
  %v1612 = vpop.xlane.xlu0 %1611
  %v1613 = vsel %vm253, %v1603, 0.0
  %1614 = vadd.xlane.f32.xlu0 %v1613
  %v1615 = vpop.xlane.xlu0 %1614
  %v1616 = vmul.f32 %v1606, %v266
  %v1617 = vmul.f32 %v1609, %v266
  %v1618 = vmul.f32 %v1612, %v266
  %v1619 = vmul.f32 %v1615, %v266
  %v1620 = vadd.f32 %v1616, 1e-12
  %v1621 = vadd.f32 %v1617, 1e-12
  %v1622 = vadd.f32 %v1618, 1e-12
  %v1623 = vadd.f32 %v1619, 1e-12
  %v1624 = vrsqrt.pop %v1620
  %v1625 = vrsqrt.pop %v1621
  %v1626 = vrsqrt.pop %v1622
  %v1627 = vrsqrt.pop %v1623
  %v1628 = vmul.f32 %v1596, %v1624
  %v1629 = vmul.f32 %v1597, %v1625
  %v1630 = vmul.f32 %v1598, %v1626
  %v1631 = vmul.f32 %v1599, %v1627
  %v1632 = vlaneseq
  %v1633 = vshrl.u32 %v1632, 7
  %v1634 = vsub.s32 0, %v1633
  %v1635 = vrot.slane %v28, %v1634
  %v1636 = vmul.f32 %v1628, %v1635
  %v1637 = vmul.f32 %v1629, %v1635
  %v1638 = vmul.f32 %v1630, %v1635
  %v1639 = vmul.f32 %v1631, %v1635
  %v1640 = vlaneseq
  %v1641 = vshrl.u32 %v1640, 7
  %v1642 = vsub.s32 1, %v1641
  %v1643 = vrot.slane %v28, %v1642
  %v1644 = vadd.f32 %v1636, %v1643
  %v1645 = vadd.f32 %v1637, %v1643
  %v1646 = vadd.f32 %v1638, %v1643
  %v1647 = vadd.f32 %v1639, %v1643
  %v1648 = vpack.c.bf16 %v1645, %v1644
  %v1649 = vpack.c.bf16 %v1647, %v1646
  %v1650 = vld [vmem:[%s5] sm:$0xf]
  %v1651 = vld [vmem:[%s5 + $0x4] sm:$0xf]
  %v1652 = vld [vmem:[%s5 + $0x8] sm:$0xf]
  %v1653 = vld [vmem:[%s5 + $0xc] sm:$0xf]
  %v1654 = vlaneseq
  %v1655 = vshrl.u32 %v1654, 7
  %v1656 = vsub.s32 6, %v1655
  %v1657 = vrot.slane %v27, %v1656
  %v1662 = vunpack.c.l.b16 %v1650
  %v1663 = vunpack.c.l.b16 %v1651
  %v1664 = vunpack.c.l.b16 %v1652
  %v1665 = vunpack.c.l.b16 %v1653
  %v1666 = vpack.c.b16 %v1663, %v1662
  %v1667 = vpack.c.b16 %v1665, %v1664
  %v1671 = vsel %vm253, %v1648, 0
  %v1674 = vsel %vm253, %v1649, 0
  %1676 = vmatprep.subr.bf16.mxu0 0
  %1677 = vmatpush1.bf16.msra.mxu0 %v1666
  %1678 = vmatprep.subr.bf16.mxu0 0
  %1679 = vmatpush1.bf16.msra.mxu0 %v1667
  %1680 = vmatprep.subr.bf16.mxu0 0
  %1681 = vmatpush1.bf16.msra.mxu0 0
  %1682 = vmatprep.subr.bf16.mxu0 0
  %1683 = vmatpush1.bf16.msra.mxu0 0
  %1684 = vmatprep.subr.bf16.mxu0 0
  %1685 = vmatpush1.bf16.msra.mxu0 0
  %1686 = vmatprep.subr.bf16.mxu0 0
  %1687 = vmatpush1.bf16.msra.mxu0 0
  %1688 = vmatprep.subr.bf16.mxu0 0
  %1689 = vmatpush1.bf16.msra.mxu0 0
  %1690 = vmatprep.subr.bf16.mxu0 0
  %1691 = vmatpush1.bf16.msra.mxu0 0
  %1692 = vmatprep.subr.bf16.mxu0 0
  %1693 = vmatpush1.bf16.msra.mxu0 0
  %1694 = vmatprep.subr.bf16.mxu0 0
  %1695 = vmatpush1.bf16.msra.mxu0 0
  %1696 = vmatprep.subr.bf16.mxu0 0
  %1697 = vmatpush1.bf16.msra.mxu0 0
  %1698 = vmatprep.subr.bf16.mxu0 0
  %1699 = vmatpush1.bf16.msra.mxu0 0
  %1700 = vmatprep.subr.bf16.mxu0 0
  %1701 = vmatpush1.bf16.msra.mxu0 0
  %1702 = vmatprep.subr.bf16.mxu0 0
  %1703 = vmatpush1.bf16.msra.mxu0 0
  %1704 = vmatprep.subr.bf16.mxu0 0
  %1705 = vmatpush1.bf16.msra.mxu0 0
  %1706 = vmatprep.subr.bf16.mxu0 0
  %1707 = vmatpush1.bf16.msra.mxu0 0
  %1708 = vmatprep.mubr.bf16.mxu0 0
  %1709 = vmatmul.mubr.bf16.gmra.mrb[0].mxu0 %v1671
  %v1710 = vpop.f32.mrb[0].mxu0
  %v1711 = vadd.f32 %v1657, %v1710
  %v1712 = vpop.f32.mrb[0].mxu0
  %v1713 = vpop.f32.mrb[0].mxu0
  %v1714 = vadd.f32 %v1657, %v1713
  %v1715 = vpop.f32.mrb[0].mxu0
  %1716 = vmatprep.mubr.bf16.mxu0 0
  %1717 = vmatmul.mubr.bf16.gmra.mrb[0].mxu0 %v1674
  %v1718 = vpop.f32.mrb[0].mxu0
  %v1719 = vadd.f32 %v1657, %v1718
  %v1720 = vpop.f32.mrb[0].mxu0
  %v1721 = vpop.f32.mrb[0].mxu0
  %v1722 = vadd.f32 %v1657, %v1721
  %v1723 = vpop.f32.mrb[0].mxu0
  %1724 = vdwg.mxu0
  %v1725 = vmul.f32 %v1711, %v1711
  %v1726 = vmul.f32 %v1714, %v1714
  %v1727 = vmul.f32 %v1719, %v1719
  %v1728 = vmul.f32 %v1722, %v1722
  %v1729 = vmul.f32 %v1711, %v1725
  %v1730 = vmul.f32 %v1714, %v1726
  %v1731 = vmul.f32 %v1719, %v1727
  %v1732 = vmul.f32 %v1722, %v1728
  %v1733 = vmul.f32 %v1729, 0.044715
  %v1734 = vmul.f32 %v1730, 0.044715
  %v1735 = vmul.f32 %v1731, 0.044715
  %v1736 = vmul.f32 %v1732, 0.044715
  %v1737 = vadd.f32 %v1711, %v1733
  %v1738 = vadd.f32 %v1714, %v1734
  %v1739 = vadd.f32 %v1719, %v1735
  %v1740 = vadd.f32 %v1722, %v1736
  %v1741 = vmul.f32 %v1737, 0.7978846
  %v1742 = vmul.f32 %v1738, 0.7978846
  %v1743 = vmul.f32 %v1739, 0.7978846
  %v1744 = vmul.f32 %v1740, 0.7978846
  %v1745 = vtanh.pop %v1741
  %v1746 = vtanh.pop %v1742
  %v1747 = vtanh.pop %v1743
  %v1748 = vtanh.pop %v1744
  %v1749 = vadd.f32 %v1745, 1.0
  %v1750 = vadd.f32 %v1746, 1.0
  %v1751 = vadd.f32 %v1747, 1.0
  %v1752 = vadd.f32 %v1748, 1.0
  %v1753 = vmul.f32 %v1749, 0.5
  %v1754 = vmul.f32 %v1750, 0.5
  %v1755 = vmul.f32 %v1751, 0.5
  %v1756 = vmul.f32 %v1752, 0.5
  %v1757 = vmul.f32 %v1711, %v1753
  %v1758 = vmul.f32 %v1714, %v1754
  %v1759 = vmul.f32 %v1719, %v1755
  %v1760 = vmul.f32 %v1722, %v1756
  %v1761 = vpack.c.bf16 %v1758, %v1757
  %v1762 = vpack.c.bf16 %v1760, %v1759
  %v1763 = vld [vmem:[%s6 + $0x20] sm:$0xf]
  %v1764 = vld [vmem:[%s6 + $0x24] sm:$0xf]
  %v1765 = vld [vmem:[%s6 + $0x28] sm:$0xf]
  %v1766 = vld [vmem:[%s6 + $0x2c] sm:$0xf]
  %v1767 = vld [vmem:[%s6 + $0x30] sm:$0xf]
  %v1768 = vld [vmem:[%s6 + $0x34] sm:$0xf]
  %v1769 = vld [vmem:[%s6 + $0x38] sm:$0xf]
  %v1770 = vld [vmem:[%s6 + $0x3c] sm:$0xf]
  %v1771 = vld [vmem:[%s6 + $0x40] sm:$0xf]
  %v1772 = vld [vmem:[%s6 + $0x44] sm:$0xf]
  %v1773 = vld [vmem:[%s6 + $0x48] sm:$0xf]
  %v1774 = vld [vmem:[%s6 + $0x4c] sm:$0xf]
  %v1775 = vld [vmem:[%s6 + $0x50] sm:$0xf]
  %v1776 = vld [vmem:[%s6 + $0x54] sm:$0xf]
  %v1777 = vld [vmem:[%s6 + $0x58] sm:$0xf]
  %v1778 = vld [vmem:[%s6 + $0x5c] sm:$0xf]
  %v1779 = vlaneseq
  %v1780 = vshrl.u32 %v1779, 7
  %v1781 = vsub.s32 2, %v1780
  %v1782 = vrot.slane %v28, %v1781
  %v1799 = vunpack.c.l.b16 %v1763
  %v1800 = vunpack.c.l.b16 %v1764
  %v1801 = vunpack.c.l.b16 %v1765
  %v1802 = vunpack.c.l.b16 %v1766
  %v1803 = vunpack.c.l.b16 %v1767
  %v1804 = vunpack.c.l.b16 %v1768
  %v1805 = vunpack.c.l.b16 %v1769
  %v1806 = vunpack.c.l.b16 %v1770
  %v1807 = vunpack.c.l.b16 %v1771
  %v1808 = vunpack.c.l.b16 %v1772
  %v1809 = vunpack.c.l.b16 %v1773
  %v1810 = vunpack.c.l.b16 %v1774
  %v1811 = vunpack.c.l.b16 %v1775
  %v1812 = vunpack.c.l.b16 %v1776
  %v1813 = vunpack.c.l.b16 %v1777
  %v1814 = vunpack.c.l.b16 %v1778
  %v1815 = vpack.c.b16 %v1800, %v1799
  %v1816 = vpack.c.b16 %v1802, %v1801
  %v1817 = vpack.c.b16 %v1804, %v1803
  %v1818 = vpack.c.b16 %v1806, %v1805
  %v1819 = vpack.c.b16 %v1808, %v1807
  %v1820 = vpack.c.b16 %v1810, %v1809
  %v1821 = vpack.c.b16 %v1812, %v1811
  %v1822 = vpack.c.b16 %v1814, %v1813
  %1831 = vmatprep.subr.bf16.mxu0 0
  %1832 = vmatpush1.bf16.msra.mxu0 %v1815
  %1833 = vmatprep.subr.bf16.mxu0 0
  %1834 = vmatpush1.bf16.msra.mxu0 %v1816
  %1835 = vmatprep.subr.bf16.mxu0 0
  %1836 = vmatpush1.bf16.msra.mxu0 %v1817
  %1837 = vmatprep.subr.bf16.mxu0 0
  %1838 = vmatpush1.bf16.msra.mxu0 %v1818
  %1839 = vmatprep.subr.bf16.mxu0 0
  %1840 = vmatpush1.bf16.msra.mxu0 %v1819
  %1841 = vmatprep.subr.bf16.mxu0 0
  %1842 = vmatpush1.bf16.msra.mxu0 %v1820
  %1843 = vmatprep.subr.bf16.mxu0 0
  %1844 = vmatpush1.bf16.msra.mxu0 %v1821
  %1845 = vmatprep.subr.bf16.mxu0 0
  %1846 = vmatpush1.bf16.msra.mxu0 %v1822
  %1847 = vmatprep.subr.bf16.mxu0 0
  %1848 = vmatpush1.bf16.msra.mxu0 0
  %1849 = vmatprep.subr.bf16.mxu0 0
  %1850 = vmatpush1.bf16.msra.mxu0 0
  %1851 = vmatprep.subr.bf16.mxu0 0
  %1852 = vmatpush1.bf16.msra.mxu0 0
  %1853 = vmatprep.subr.bf16.mxu0 0
  %1854 = vmatpush1.bf16.msra.mxu0 0
  %1855 = vmatprep.subr.bf16.mxu0 0
  %1856 = vmatpush1.bf16.msra.mxu0 0
  %1857 = vmatprep.subr.bf16.mxu0 0
  %1858 = vmatpush1.bf16.msra.mxu0 0
  %1859 = vmatprep.subr.bf16.mxu0 0
  %1860 = vmatpush1.bf16.msra.mxu0 0
  %1861 = vmatprep.subr.bf16.mxu0 0
  %1862 = vmatpush1.bf16.msra.mxu0 0
  %1863 = vmatprep.mubr.bf16.mxu0 0
  %1864 = vmatmul.mubr.bf16.gmra.mrb[0].mxu0 %v1761
  %v1865 = vpop.f32.mrb[0].mxu0
  %v1866 = vadd.f32 %v1782, %v1865
  %v1867 = vpop.f32.mrb[0].mxu0
  %v1868 = vpop.f32.mrb[0].mxu0
  %v1869 = vadd.f32 %v1782, %v1868
  %v1870 = vpop.f32.mrb[0].mxu0
  %1871 = vmatprep.mubr.bf16.mxu0 0
  %1872 = vmatmul.mubr.bf16.gmra.mrb[0].mxu0 %v1762
  %v1873 = vpop.f32.mrb[0].mxu0
  %v1874 = vadd.f32 %v1782, %v1873
  %v1875 = vpop.f32.mrb[0].mxu0
  %v1876 = vpop.f32.mrb[0].mxu0
  %v1877 = vadd.f32 %v1782, %v1876
  %v1878 = vpop.f32.mrb[0].mxu0
  %1879 = vdwg.mxu0
  %v1880 = vadd.f32 %v1644, %v1866
  %v1881 = vadd.f32 %v1645, %v1869
  %v1882 = vadd.f32 %v1646, %v1874
  %v1883 = vadd.f32 %v1647, %v1877
  %v1884 = vsel %vm253, %v1880, 0.0
  %1885 = vadd.xlane.f32.xlu0 %v1884
  %v1886 = vpop.xlane.xlu0 %1885
  %v1887 = vsel %vm253, %v1881, 0.0
  %1888 = vadd.xlane.f32.xlu0 %v1887
  %v1889 = vpop.xlane.xlu0 %1888
  %v1890 = vsel %vm253, %v1882, 0.0
  %1891 = vadd.xlane.f32.xlu0 %v1890
  %v1892 = vpop.xlane.xlu0 %1891
  %v1893 = vsel %vm253, %v1883, 0.0
  %1894 = vadd.xlane.f32.xlu0 %v1893
  %v1895 = vpop.xlane.xlu0 %1894
  %v1896 = vmul.f32 %v1886, %v266
  %v1897 = vmul.f32 %v1889, %v266
  %v1898 = vmul.f32 %v1892, %v266
  %v1899 = vmul.f32 %v1895, %v266
  %v1900 = vsub.f32 %v1880, %v1896
  %v1901 = vsub.f32 %v1881, %v1897
  %v1902 = vsub.f32 %v1882, %v1898
  %v1903 = vsub.f32 %v1883, %v1899
  %v1904 = vmul.f32 %v1900, %v1900
  %v1905 = vmul.f32 %v1901, %v1901
  %v1906 = vmul.f32 %v1902, %v1902
  %v1907 = vmul.f32 %v1903, %v1903
  %v1908 = vsel %vm253, %v1904, 0.0
  %1909 = vadd.xlane.f32.xlu0 %v1908
  %v1910 = vpop.xlane.xlu0 %1909
  %v1911 = vsel %vm253, %v1905, 0.0
  %1912 = vadd.xlane.f32.xlu0 %v1911
  %v1913 = vpop.xlane.xlu0 %1912
  %v1914 = vsel %vm253, %v1906, 0.0
  %1915 = vadd.xlane.f32.xlu0 %v1914
  %v1916 = vpop.xlane.xlu0 %1915
  %v1917 = vsel %vm253, %v1907, 0.0
  %1918 = vadd.xlane.f32.xlu0 %v1917
  %v1919 = vpop.xlane.xlu0 %1918
  %v1920 = vmul.f32 %v1910, %v266
  %v1921 = vmul.f32 %v1913, %v266
  %v1922 = vmul.f32 %v1916, %v266
  %v1923 = vmul.f32 %v1919, %v266
  %v1924 = vadd.f32 %v1920, 1e-12
  %v1925 = vadd.f32 %v1921, 1e-12
  %v1926 = vadd.f32 %v1922, 1e-12
  %v1927 = vadd.f32 %v1923, 1e-12
  %v1928 = vrsqrt.pop %v1924
  %v1929 = vrsqrt.pop %v1925
  %v1930 = vrsqrt.pop %v1926
  %v1931 = vrsqrt.pop %v1927
  %v1932 = vmul.f32 %v1900, %v1928
  %v1933 = vmul.f32 %v1901, %v1929
  %v1934 = vmul.f32 %v1902, %v1930
  %v1935 = vmul.f32 %v1903, %v1931
  %v1936 = vlaneseq
  %v1937 = vshrl.u32 %v1936, 7
  %v1938 = vsub.s32 3, %v1937
  %v1939 = vrot.slane %v28, %v1938
  %v1940 = vmul.f32 %v1932, %v1939
  %v1941 = vmul.f32 %v1933, %v1939
  %v1942 = vmul.f32 %v1934, %v1939
  %v1943 = vmul.f32 %v1935, %v1939
  %v1944 = vlaneseq
  %v1945 = vshrl.u32 %v1944, 7
  %v1946 = vsub.s32 4, %v1945
  %v1947 = vrot.slane %v28, %v1946
  %v1948 = vadd.f32 %v1940, %v1947
  %v1949 = vadd.f32 %v1941, %v1947
  %v1950 = vadd.f32 %v1942, %v1947
  %v1951 = vadd.f32 %v1943, %v1947
  %v1952 = vpack.c.bf16 %v1949, %v1948
  %v1953 = vpack.c.bf16 %v1951, %v1950
  %v1954 = vld [vmem:[%s4 + $0x10] sm:$0xf]
  %v1955 = vld [vmem:[%s4 + $0x14] sm:$0xf]
  %v1956 = vld [vmem:[%s4 + $0x18] sm:$0xf]
  %v1957 = vld [vmem:[%s4 + $0x1c] sm:$0xf]
  %v1958 = vlaneseq
  %v1959 = vshrl.u32 %v1958, 7
  %v1960 = vsub.s32 5, %v1959
  %v1961 = vrot.slane %v28, %v1960
  %v1966 = vunpack.c.l.b16 %v1954
  %v1967 = vunpack.c.l.b16 %v1955
  %v1968 = vunpack.c.l.b16 %v1956
  %v1969 = vunpack.c.l.b16 %v1957
  %v1970 = vpack.c.b16 %v1967, %v1966
  %v1971 = vpack.c.b16 %v1969, %v1968
  %v1975 = vsel %vm253, %v1952, 0
  %v1978 = vsel %vm253, %v1953, 0
  %1980 = vmatprep.subr.bf16.mxu0 0
  %1981 = vmatpush1.bf16.msra.mxu0 %v1970
  %1982 = vmatprep.subr.bf16.mxu0 0
  %1983 = vmatpush1.bf16.msra.mxu0 %v1971
  %1984 = vmatprep.subr.bf16.mxu0 0
  %1985 = vmatpush1.bf16.msra.mxu0 0
  %1986 = vmatprep.subr.bf16.mxu0 0
  %1987 = vmatpush1.bf16.msra.mxu0 0
  %1988 = vmatprep.subr.bf16.mxu0 0
  %1989 = vmatpush1.bf16.msra.mxu0 0
  %1990 = vmatprep.subr.bf16.mxu0 0
  %1991 = vmatpush1.bf16.msra.mxu0 0
  %1992 = vmatprep.subr.bf16.mxu0 0
  %1993 = vmatpush1.bf16.msra.mxu0 0
  %1994 = vmatprep.subr.bf16.mxu0 0
  %1995 = vmatpush1.bf16.msra.mxu0 0
  %1996 = vmatprep.subr.bf16.mxu0 0
  %1997 = vmatpush1.bf16.msra.mxu0 0
  %1998 = vmatprep.subr.bf16.mxu0 0
  %1999 = vmatpush1.bf16.msra.mxu0 0
  %2000 = vmatprep.subr.bf16.mxu0 0
  %2001 = vmatpush1.bf16.msra.mxu0 0
  %2002 = vmatprep.subr.bf16.mxu0 0
  %2003 = vmatpush1.bf16.msra.mxu0 0
  %2004 = vmatprep.subr.bf16.mxu0 0
  %2005 = vmatpush1.bf16.msra.mxu0 0
  %2006 = vmatprep.subr.bf16.mxu0 0
  %2007 = vmatpush1.bf16.msra.mxu0 0
  %2008 = vmatprep.subr.bf16.mxu0 0
  %2009 = vmatpush1.bf16.msra.mxu0 0
  %2010 = vmatprep.subr.bf16.mxu0 0
  %2011 = vmatpush1.bf16.msra.mxu0 0
  %2012 = vmatprep.mubr.bf16.mxu0 0
  %2013 = vmatmul.mubr.bf16.gmra.mrb[0].mxu0 %v1975
  %v2014 = vpop.f32.mrb[0].mxu0
  %v2015 = vadd.f32 %v1961, %v2014
  %v2016 = vpop.f32.mrb[0].mxu0
  %v2017 = vpop.f32.mrb[0].mxu0
  %v2018 = vadd.f32 %v1961, %v2017
  %v2019 = vpop.f32.mrb[0].mxu0
  %2020 = vmatprep.mubr.bf16.mxu0 0
  %2021 = vmatmul.mubr.bf16.gmra.mrb[0].mxu0 %v1978
  %v2022 = vpop.f32.mrb[0].mxu0
  %v2023 = vadd.f32 %v1961, %v2022
  %v2024 = vpop.f32.mrb[0].mxu0
  %v2025 = vpop.f32.mrb[0].mxu0
  %v2026 = vadd.f32 %v1961, %v2025
  %v2027 = vpop.f32.mrb[0].mxu0
  %2028 = vdwg.mxu0
  %v2029 = vpack.c.bf16 %v2018, %v2015
  %v2030 = vpack.c.bf16 %v2026, %v2023
  %2032 = vrot.lane.b32.xlu0 %v2029, 96
  %v2033 = vpop.permute.xlu0 %2032
  %v2035 = vsel %vm441, %v2029, 0
  %v2038 = vsel %vm441, %v2033, 0
  %2040 = vmatprep.subr.bf16.mxu0 0
  %2041 = vmatpush1.bf16.xpose.msra.mxu0 %v2038
  %2042 = vmatprep.subr.bf16.mxu0 0
  %2043 = vmatpush1.bf16.xpose.msra.mxu0 0
  %2044 = vmatprep.subr.bf16.mxu0 0
  %2045 = vmatpush1.bf16.xpose.msra.mxu0 0
  %2046 = vmatprep.subr.bf16.mxu0 0
  %2047 = vmatpush1.bf16.xpose.msra.mxu0 0
  %2048 = vmatprep.subr.bf16.mxu0 0
  %2049 = vmatpush1.bf16.xpose.msra.mxu0 0
  %2050 = vmatprep.subr.bf16.mxu0 0
  %2051 = vmatpush1.bf16.xpose.msra.mxu0 0
  %2052 = vmatprep.subr.bf16.mxu0 0
  %2053 = vmatpush1.bf16.xpose.msra.mxu0 0
  %2054 = vmatprep.subr.bf16.mxu0 0
  %2055 = vmatpush1.bf16.xpose.msra.mxu0 0
  %2056 = vmatprep.subr.bf16.mxu0 0
  %2057 = vmatpush1.bf16.xpose.msra.mxu0 0
  %2058 = vmatprep.subr.bf16.mxu0 0
  %2059 = vmatpush1.bf16.xpose.msra.mxu0 0
  %2060 = vmatprep.subr.bf16.mxu0 0
  %2061 = vmatpush1.bf16.xpose.msra.mxu0 0
  %2062 = vmatprep.subr.bf16.mxu0 0
  %2063 = vmatpush1.bf16.xpose.msra.mxu0 0
  %2064 = vmatprep.subr.bf16.mxu0 0
  %2065 = vmatpush1.bf16.xpose.msra.mxu0 0
  %2066 = vmatprep.subr.bf16.mxu0 0
  %2067 = vmatpush1.bf16.xpose.msra.mxu0 0
  %2068 = vmatprep.subr.bf16.mxu0 0
  %2069 = vmatpush1.bf16.xpose.msra.mxu0 0
  %2070 = vmatprep.subr.bf16.mxu0 0
  %2071 = vmatpush1.bf16.xpose.msra.mxu0 0
  %2072 = vmatprep.mubr.bf16.mxu0 0
  %2073 = vmatmul.mubr.bf16.gmra.mrb[0].mxu0 %v2035
  %v2074 = vpop.f32.mrb[0].mxu0
  %v2075 = vadd.f32 0.0, %v2074
  %v2076 = vpop.f32.mrb[0].mxu0
  %v2077 = vpop.f32.mrb[0].mxu0
  %v2078 = vadd.f32 0.0, %v2077
  %v2079 = vpop.f32.mrb[0].mxu0
  %2080 = vdwg.mxu0
  %2082 = vrot.lane.b32.xlu0 %v2030, 96
  %v2083 = vpop.permute.xlu0 %2082
  %v2085 = vsel %vm441, %v2030, 0
  %v2088 = vsel %vm441, %v2083, 0
  %2090 = vmatprep.subr.bf16.mxu0 0
  %2091 = vmatpush1.bf16.xpose.msra.mxu0 %v2088
  %2092 = vmatprep.subr.bf16.mxu0 0
  %2093 = vmatpush1.bf16.xpose.msra.mxu0 0
  %2094 = vmatprep.subr.bf16.mxu0 0
  %2095 = vmatpush1.bf16.xpose.msra.mxu0 0
  %2096 = vmatprep.subr.bf16.mxu0 0
  %2097 = vmatpush1.bf16.xpose.msra.mxu0 0
  %2098 = vmatprep.subr.bf16.mxu0 0
  %2099 = vmatpush1.bf16.xpose.msra.mxu0 0
  %2100 = vmatprep.subr.bf16.mxu0 0
  %2101 = vmatpush1.bf16.xpose.msra.mxu0 0
  %2102 = vmatprep.subr.bf16.mxu0 0
  %2103 = vmatpush1.bf16.xpose.msra.mxu0 0
  %2104 = vmatprep.subr.bf16.mxu0 0
  %2105 = vmatpush1.bf16.xpose.msra.mxu0 0
  %2106 = vmatprep.subr.bf16.mxu0 0
  %2107 = vmatpush1.bf16.xpose.msra.mxu0 0
  %2108 = vmatprep.subr.bf16.mxu0 0
  %2109 = vmatpush1.bf16.xpose.msra.mxu0 0
  %2110 = vmatprep.subr.bf16.mxu0 0
  %2111 = vmatpush1.bf16.xpose.msra.mxu0 0
  %2112 = vmatprep.subr.bf16.mxu0 0
  %2113 = vmatpush1.bf16.xpose.msra.mxu0 0
  %2114 = vmatprep.subr.bf16.mxu0 0
  %2115 = vmatpush1.bf16.xpose.msra.mxu0 0
  %2116 = vmatprep.subr.bf16.mxu0 0
  %2117 = vmatpush1.bf16.xpose.msra.mxu0 0
  %2118 = vmatprep.subr.bf16.mxu0 0
  %2119 = vmatpush1.bf16.xpose.msra.mxu0 0
  %2120 = vmatprep.subr.bf16.mxu0 0
  %2121 = vmatpush1.bf16.xpose.msra.mxu0 0
  %2122 = vmatprep.mubr.bf16.mxu0 0
  %2123 = vmatmul.mubr.bf16.gmra.mrb[0].mxu0 %v2085
  %v2124 = vpop.f32.mrb[0].mxu0
  %v2125 = vadd.f32 0.0, %v2124
  %v2126 = vpop.f32.mrb[0].mxu0
  %v2127 = vpop.f32.mrb[0].mxu0
  %v2128 = vadd.f32 0.0, %v2127
  %v2129 = vpop.f32.mrb[0].mxu0
  %2130 = vdwg.mxu0
  %v2131 = vmul.f32 %v2075, 0.35355338
  %v2132 = vmul.f32 %v2078, 0.35355338
  %v2133 = vmul.f32 %v2125, 0.35355338
  %v2134 = vmul.f32 %v2128, 0.35355338
  %v2135 = vadd.f32 %v2131, %v352
  %v2136 = vadd.f32 %v2132, %v352
  %v2137 = vadd.f32 %v2133, %v356
  %v2138 = vadd.f32 %v2134, %v356
  %v2139 = vsel %vm547, %v2135, -inf
  %2140 = vmax.xlane.f32.xlu0 %v2139
  %v2141 = vpop.xlane.xlu0 %2140
  %v2142 = vsel %vm547, %v2136, -inf
  %2143 = vmax.xlane.f32.xlu0 %v2142
  %v2144 = vpop.xlane.xlu0 %2143
  %v2145 = vsel %vm547, %v2137, -inf
  %2146 = vmax.xlane.f32.xlu0 %v2145
  %v2147 = vpop.xlane.xlu0 %2146
  %v2148 = vsel %vm547, %v2138, -inf
  %2149 = vmax.xlane.f32.xlu0 %v2148
  %v2150 = vpop.xlane.xlu0 %2149
  %v2151 = vsub.f32 %v2135, %v2141
  %v2152 = vsub.f32 %v2136, %v2144
  %v2153 = vsub.f32 %v2137, %v2147
  %v2154 = vsub.f32 %v2138, %v2150
  %v2155 = vmul.f32 %v2151, 1.442695
  %v2156 = vpow.pop %v2155
  %v2157 = vmul.f32 %v2152, 1.442695
  %v2158 = vpow.pop %v2157
  %v2159 = vmul.f32 %v2153, 1.442695
  %v2160 = vpow.pop %v2159
  %v2161 = vmul.f32 %v2154, 1.442695
  %v2162 = vpow.pop %v2161
  %v2163 = vsel %vm547, %v2156, 0.0
  %2164 = vadd.xlane.f32.xlu0 %v2163
  %v2165 = vpop.xlane.xlu0 %2164
  %v2166 = vsel %vm547, %v2158, 0.0
  %2167 = vadd.xlane.f32.xlu0 %v2166
  %v2168 = vpop.xlane.xlu0 %2167
  %v2169 = vsel %vm547, %v2160, 0.0
  %2170 = vadd.xlane.f32.xlu0 %v2169
  %v2171 = vpop.xlane.xlu0 %2170
  %v2172 = vsel %vm547, %v2162, 0.0
  %2173 = vadd.xlane.f32.xlu0 %v2172
  %v2174 = vpop.xlane.xlu0 %2173
  %v2175 = vrcp.pop %v2165
  %v2176 = vmul.f32 %v2156, %v2175
  %v2177 = vrcp.pop %v2168
  %v2178 = vmul.f32 %v2158, %v2177
  %v2179 = vrcp.pop %v2171
  %v2180 = vmul.f32 %v2160, %v2179
  %v2181 = vrcp.pop %v2174
  %v2182 = vmul.f32 %v2162, %v2181
  %v2183 = vpack.c.bf16 %v2178, %v2176
  %v2184 = vpack.c.bf16 %v2182, %v2180
  %2185 = vrot.lane.b32.xlu0 %v2029, 64
  %v2186 = vpop.permute.xlu0 %2185
  %v2189 = vsel %vm547, %v2183, 0
  %2191 = vmatprep.subr.bf16.mxu0 0
  %2192 = vmatpush1.bf16.msra.mxu0 %v2186
  %2193 = vmatprep.subr.bf16.mxu0 0
  %2194 = vmatpush1.bf16.msra.mxu0 0
  %2195 = vmatprep.subr.bf16.mxu0 0
  %2196 = vmatpush1.bf16.msra.mxu0 0
  %2197 = vmatprep.subr.bf16.mxu0 0
  %2198 = vmatpush1.bf16.msra.mxu0 0
  %2199 = vmatprep.subr.bf16.mxu0 0
  %2200 = vmatpush1.bf16.msra.mxu0 0
  %2201 = vmatprep.subr.bf16.mxu0 0
  %2202 = vmatpush1.bf16.msra.mxu0 0
  %2203 = vmatprep.subr.bf16.mxu0 0
  %2204 = vmatpush1.bf16.msra.mxu0 0
  %2205 = vmatprep.subr.bf16.mxu0 0
  %2206 = vmatpush1.bf16.msra.mxu0 0
  %2207 = vmatprep.subr.bf16.mxu0 0
  %2208 = vmatpush1.bf16.msra.mxu0 0
  %2209 = vmatprep.subr.bf16.mxu0 0
  %2210 = vmatpush1.bf16.msra.mxu0 0
  %2211 = vmatprep.subr.bf16.mxu0 0
  %2212 = vmatpush1.bf16.msra.mxu0 0
  %2213 = vmatprep.subr.bf16.mxu0 0
  %2214 = vmatpush1.bf16.msra.mxu0 0
  %2215 = vmatprep.subr.bf16.mxu0 0
  %2216 = vmatpush1.bf16.msra.mxu0 0
  %2217 = vmatprep.subr.bf16.mxu0 0
  %2218 = vmatpush1.bf16.msra.mxu0 0
  %2219 = vmatprep.subr.bf16.mxu0 0
  %2220 = vmatpush1.bf16.msra.mxu0 0
  %2221 = vmatprep.subr.bf16.mxu0 0
  %2222 = vmatpush1.bf16.msra.mxu0 0
  %2223 = vmatprep.mubr.bf16.mxu0 0
  %2224 = vmatmul.mubr.bf16.gmra.mrb[0].mxu0 %v2189
  %v2225 = vpop.f32.mrb[0].mxu0
  %v2226 = vadd.f32 0.0, %v2225
  %v2227 = vpop.f32.mrb[0].mxu0
  %v2228 = vpop.f32.mrb[0].mxu0
  %v2229 = vadd.f32 0.0, %v2228
  %v2230 = vpop.f32.mrb[0].mxu0
  %2231 = vdwg.mxu0
  %2232 = vrot.lane.b32.xlu0 %v2030, 64
  %v2233 = vpop.permute.xlu0 %2232
  %v2236 = vsel %vm547, %v2184, 0
  %2238 = vmatprep.subr.bf16.mxu0 0
  %2239 = vmatpush1.bf16.msra.mxu0 %v2233
  %2240 = vmatprep.subr.bf16.mxu0 0
  %2241 = vmatpush1.bf16.msra.mxu0 0
  %2242 = vmatprep.subr.bf16.mxu0 0
  %2243 = vmatpush1.bf16.msra.mxu0 0
  %2244 = vmatprep.subr.bf16.mxu0 0
  %2245 = vmatpush1.bf16.msra.mxu0 0
  %2246 = vmatprep.subr.bf16.mxu0 0
  %2247 = vmatpush1.bf16.msra.mxu0 0
  %2248 = vmatprep.subr.bf16.mxu0 0
  %2249 = vmatpush1.bf16.msra.mxu0 0
  %2250 = vmatprep.subr.bf16.mxu0 0
  %2251 = vmatpush1.bf16.msra.mxu0 0
  %2252 = vmatprep.subr.bf16.mxu0 0
  %2253 = vmatpush1.bf16.msra.mxu0 0
  %2254 = vmatprep.subr.bf16.mxu0 0
  %2255 = vmatpush1.bf16.msra.mxu0 0
  %2256 = vmatprep.subr.bf16.mxu0 0
  %2257 = vmatpush1.bf16.msra.mxu0 0
  %2258 = vmatprep.subr.bf16.mxu0 0
  %2259 = vmatpush1.bf16.msra.mxu0 0
  %2260 = vmatprep.subr.bf16.mxu0 0
  %2261 = vmatpush1.bf16.msra.mxu0 0
  %2262 = vmatprep.subr.bf16.mxu0 0
  %2263 = vmatpush1.bf16.msra.mxu0 0
  %2264 = vmatprep.subr.bf16.mxu0 0
  %2265 = vmatpush1.bf16.msra.mxu0 0
  %2266 = vmatprep.subr.bf16.mxu0 0
  %2267 = vmatpush1.bf16.msra.mxu0 0
  %2268 = vmatprep.subr.bf16.mxu0 0
  %2269 = vmatpush1.bf16.msra.mxu0 0
  %2270 = vmatprep.mubr.bf16.mxu0 0
  %2271 = vmatmul.mubr.bf16.gmra.mrb[0].mxu0 %v2236
  %v2272 = vpop.f32.mrb[0].mxu0
  %v2273 = vadd.f32 0.0, %v2272
  %v2274 = vpop.f32.mrb[0].mxu0
  %v2275 = vpop.f32.mrb[0].mxu0
  %v2276 = vadd.f32 0.0, %v2275
  %v2277 = vpop.f32.mrb[0].mxu0
  %2278 = vdwg.mxu0
  %2279 = vrot.lane.b32.xlu0 %v2029, 120
  %v2280 = vpop.permute.xlu0 %2279
  %2281 = vrot.lane.b32.xlu0 %v2029, 88
  %v2282 = vpop.permute.xlu0 %2281
  %v2284 = vsel %vm441, %v2280, 0
  %v2287 = vsel %vm441, %v2282, 0
  %2289 = vmatprep.subr.bf16.mxu0 0
  %2290 = vmatpush1.bf16.xpose.msra.mxu0 %v2287
  %2291 = vmatprep.subr.bf16.mxu0 0
  %2292 = vmatpush1.bf16.xpose.msra.mxu0 0
  %2293 = vmatprep.subr.bf16.mxu0 0
  %2294 = vmatpush1.bf16.xpose.msra.mxu0 0
  %2295 = vmatprep.subr.bf16.mxu0 0
  %2296 = vmatpush1.bf16.xpose.msra.mxu0 0
  %2297 = vmatprep.subr.bf16.mxu0 0
  %2298 = vmatpush1.bf16.xpose.msra.mxu0 0
  %2299 = vmatprep.subr.bf16.mxu0 0
  %2300 = vmatpush1.bf16.xpose.msra.mxu0 0
  %2301 = vmatprep.subr.bf16.mxu0 0
  %2302 = vmatpush1.bf16.xpose.msra.mxu0 0
  %2303 = vmatprep.subr.bf16.mxu0 0
  %2304 = vmatpush1.bf16.xpose.msra.mxu0 0
  %2305 = vmatprep.subr.bf16.mxu0 0
  %2306 = vmatpush1.bf16.xpose.msra.mxu0 0
  %2307 = vmatprep.subr.bf16.mxu0 0
  %2308 = vmatpush1.bf16.xpose.msra.mxu0 0
  %2309 = vmatprep.subr.bf16.mxu0 0
  %2310 = vmatpush1.bf16.xpose.msra.mxu0 0
  %2311 = vmatprep.subr.bf16.mxu0 0
  %2312 = vmatpush1.bf16.xpose.msra.mxu0 0
  %2313 = vmatprep.subr.bf16.mxu0 0
  %2314 = vmatpush1.bf16.xpose.msra.mxu0 0
  %2315 = vmatprep.subr.bf16.mxu0 0
  %2316 = vmatpush1.bf16.xpose.msra.mxu0 0
  %2317 = vmatprep.subr.bf16.mxu0 0
  %2318 = vmatpush1.bf16.xpose.msra.mxu0 0
  %2319 = vmatprep.subr.bf16.mxu0 0
  %2320 = vmatpush1.bf16.xpose.msra.mxu0 0
  %2321 = vmatprep.mubr.bf16.mxu0 0
  %2322 = vmatmul.mubr.bf16.gmra.mrb[0].mxu0 %v2284
  %v2323 = vpop.f32.mrb[0].mxu0
  %v2324 = vadd.f32 0.0, %v2323
  %v2325 = vpop.f32.mrb[0].mxu0
  %v2326 = vpop.f32.mrb[0].mxu0
  %v2327 = vadd.f32 0.0, %v2326
  %v2328 = vpop.f32.mrb[0].mxu0
  %2329 = vdwg.mxu0
  %2330 = vrot.lane.b32.xlu0 %v2030, 120
  %v2331 = vpop.permute.xlu0 %2330
  %2332 = vrot.lane.b32.xlu0 %v2030, 88
  %v2333 = vpop.permute.xlu0 %2332
  %v2335 = vsel %vm441, %v2331, 0
  %v2338 = vsel %vm441, %v2333, 0
  %2340 = vmatprep.subr.bf16.mxu0 0
  %2341 = vmatpush1.bf16.xpose.msra.mxu0 %v2338
  %2342 = vmatprep.subr.bf16.mxu0 0
  %2343 = vmatpush1.bf16.xpose.msra.mxu0 0
  %2344 = vmatprep.subr.bf16.mxu0 0
  %2345 = vmatpush1.bf16.xpose.msra.mxu0 0
  %2346 = vmatprep.subr.bf16.mxu0 0
  %2347 = vmatpush1.bf16.xpose.msra.mxu0 0
  %2348 = vmatprep.subr.bf16.mxu0 0
  %2349 = vmatpush1.bf16.xpose.msra.mxu0 0
  %2350 = vmatprep.subr.bf16.mxu0 0
  %2351 = vmatpush1.bf16.xpose.msra.mxu0 0
  %2352 = vmatprep.subr.bf16.mxu0 0
  %2353 = vmatpush1.bf16.xpose.msra.mxu0 0
  %2354 = vmatprep.subr.bf16.mxu0 0
  %2355 = vmatpush1.bf16.xpose.msra.mxu0 0
  %2356 = vmatprep.subr.bf16.mxu0 0
  %2357 = vmatpush1.bf16.xpose.msra.mxu0 0
  %2358 = vmatprep.subr.bf16.mxu0 0
  %2359 = vmatpush1.bf16.xpose.msra.mxu0 0
  %2360 = vmatprep.subr.bf16.mxu0 0
  %2361 = vmatpush1.bf16.xpose.msra.mxu0 0
  %2362 = vmatprep.subr.bf16.mxu0 0
  %2363 = vmatpush1.bf16.xpose.msra.mxu0 0
  %2364 = vmatprep.subr.bf16.mxu0 0
  %2365 = vmatpush1.bf16.xpose.msra.mxu0 0
  %2366 = vmatprep.subr.bf16.mxu0 0
  %2367 = vmatpush1.bf16.xpose.msra.mxu0 0
  %2368 = vmatprep.subr.bf16.mxu0 0
  %2369 = vmatpush1.bf16.xpose.msra.mxu0 0
  %2370 = vmatprep.subr.bf16.mxu0 0
  %2371 = vmatpush1.bf16.xpose.msra.mxu0 0
  %2372 = vmatprep.mubr.bf16.mxu0 0
  %2373 = vmatmul.mubr.bf16.gmra.mrb[0].mxu0 %v2335
  %v2374 = vpop.f32.mrb[0].mxu0
  %v2375 = vadd.f32 0.0, %v2374
  %v2376 = vpop.f32.mrb[0].mxu0
  %v2377 = vpop.f32.mrb[0].mxu0
  %v2378 = vadd.f32 0.0, %v2377
  %v2379 = vpop.f32.mrb[0].mxu0
  %2380 = vdwg.mxu0
  %v2381 = vmul.f32 %v2324, 0.35355338
  %v2382 = vmul.f32 %v2327, 0.35355338
  %v2383 = vmul.f32 %v2375, 0.35355338
  %v2384 = vmul.f32 %v2378, 0.35355338
  %v2385 = vadd.f32 %v2381, %v352
  %v2386 = vadd.f32 %v2382, %v352
  %v2387 = vadd.f32 %v2383, %v356
  %v2388 = vadd.f32 %v2384, %v356
  %v2389 = vsel %vm547, %v2385, -inf
  %2390 = vmax.xlane.f32.xlu0 %v2389
  %v2391 = vpop.xlane.xlu0 %2390
  %v2392 = vsel %vm547, %v2386, -inf
  %2393 = vmax.xlane.f32.xlu0 %v2392
  %v2394 = vpop.xlane.xlu0 %2393
  %v2395 = vsel %vm547, %v2387, -inf
  %2396 = vmax.xlane.f32.xlu0 %v2395
  %v2397 = vpop.xlane.xlu0 %2396
  %v2398 = vsel %vm547, %v2388, -inf
  %2399 = vmax.xlane.f32.xlu0 %v2398
  %v2400 = vpop.xlane.xlu0 %2399
  %v2401 = vsub.f32 %v2385, %v2391
  %v2402 = vsub.f32 %v2386, %v2394
  %v2403 = vsub.f32 %v2387, %v2397
  %v2404 = vsub.f32 %v2388, %v2400
  %v2405 = vmul.f32 %v2401, 1.442695
  %v2406 = vpow.pop %v2405
  %v2407 = vmul.f32 %v2402, 1.442695
  %v2408 = vpow.pop %v2407
  %v2409 = vmul.f32 %v2403, 1.442695
  %v2410 = vpow.pop %v2409
  %v2411 = vmul.f32 %v2404, 1.442695
  %v2412 = vpow.pop %v2411
  %v2413 = vsel %vm547, %v2406, 0.0
  %2414 = vadd.xlane.f32.xlu0 %v2413
  %v2415 = vpop.xlane.xlu0 %2414
  %v2416 = vsel %vm547, %v2408, 0.0
  %2417 = vadd.xlane.f32.xlu0 %v2416
  %v2418 = vpop.xlane.xlu0 %2417
  %v2419 = vsel %vm547, %v2410, 0.0
  %2420 = vadd.xlane.f32.xlu0 %v2419
  %v2421 = vpop.xlane.xlu0 %2420
  %v2422 = vsel %vm547, %v2412, 0.0
  %2423 = vadd.xlane.f32.xlu0 %v2422
  %v2424 = vpop.xlane.xlu0 %2423
  %v2425 = vrcp.pop %v2415
  %v2426 = vmul.f32 %v2406, %v2425
  %v2427 = vrcp.pop %v2418
  %v2428 = vmul.f32 %v2408, %v2427
  %v2429 = vrcp.pop %v2421
  %v2430 = vmul.f32 %v2410, %v2429
  %v2431 = vrcp.pop %v2424
  %v2432 = vmul.f32 %v2412, %v2431
  %v2433 = vpack.c.bf16 %v2428, %v2426
  %v2434 = vpack.c.bf16 %v2432, %v2430
  %2435 = vrot.lane.b32.xlu0 %v2029, 56
  %v2436 = vpop.permute.xlu0 %2435
  %v2439 = vsel %vm547, %v2433, 0
  %2441 = vmatprep.subr.bf16.mxu0 0
  %2442 = vmatpush1.bf16.msra.mxu0 %v2436
  %2443 = vmatprep.subr.bf16.mxu0 0
  %2444 = vmatpush1.bf16.msra.mxu0 0
  %2445 = vmatprep.subr.bf16.mxu0 0
  %2446 = vmatpush1.bf16.msra.mxu0 0
  %2447 = vmatprep.subr.bf16.mxu0 0
  %2448 = vmatpush1.bf16.msra.mxu0 0
  %2449 = vmatprep.subr.bf16.mxu0 0
  %2450 = vmatpush1.bf16.msra.mxu0 0
  %2451 = vmatprep.subr.bf16.mxu0 0
  %2452 = vmatpush1.bf16.msra.mxu0 0
  %2453 = vmatprep.subr.bf16.mxu0 0
  %2454 = vmatpush1.bf16.msra.mxu0 0
  %2455 = vmatprep.subr.bf16.mxu0 0
  %2456 = vmatpush1.bf16.msra.mxu0 0
  %2457 = vmatprep.subr.bf16.mxu0 0
  %2458 = vmatpush1.bf16.msra.mxu0 0
  %2459 = vmatprep.subr.bf16.mxu0 0
  %2460 = vmatpush1.bf16.msra.mxu0 0
  %2461 = vmatprep.subr.bf16.mxu0 0
  %2462 = vmatpush1.bf16.msra.mxu0 0
  %2463 = vmatprep.subr.bf16.mxu0 0
  %2464 = vmatpush1.bf16.msra.mxu0 0
  %2465 = vmatprep.subr.bf16.mxu0 0
  %2466 = vmatpush1.bf16.msra.mxu0 0
  %2467 = vmatprep.subr.bf16.mxu0 0
  %2468 = vmatpush1.bf16.msra.mxu0 0
  %2469 = vmatprep.subr.bf16.mxu0 0
  %2470 = vmatpush1.bf16.msra.mxu0 0
  %2471 = vmatprep.subr.bf16.mxu0 0
  %2472 = vmatpush1.bf16.msra.mxu0 0
  %2473 = vmatprep.mubr.bf16.mxu0 0
  %2474 = vmatmul.mubr.bf16.gmra.mrb[0].mxu0 %v2439
  %v2475 = vpop.f32.mrb[0].mxu0
  %v2476 = vadd.f32 0.0, %v2475
  %v2477 = vpop.f32.mrb[0].mxu0
  %v2478 = vpop.f32.mrb[0].mxu0
  %v2479 = vadd.f32 0.0, %v2478
  %v2480 = vpop.f32.mrb[0].mxu0
  %2481 = vdwg.mxu0
  %2482 = vrot.lane.b32.xlu0 %v2030, 56
  %v2483 = vpop.permute.xlu0 %2482
  %v2486 = vsel %vm547, %v2434, 0
  %2488 = vmatprep.subr.bf16.mxu0 0
  %2489 = vmatpush1.bf16.msra.mxu0 %v2483
  %2490 = vmatprep.subr.bf16.mxu0 0
  %2491 = vmatpush1.bf16.msra.mxu0 0
  %2492 = vmatprep.subr.bf16.mxu0 0
  %2493 = vmatpush1.bf16.msra.mxu0 0
  %2494 = vmatprep.subr.bf16.mxu0 0
  %2495 = vmatpush1.bf16.msra.mxu0 0
  %2496 = vmatprep.subr.bf16.mxu0 0
  %2497 = vmatpush1.bf16.msra.mxu0 0
  %2498 = vmatprep.subr.bf16.mxu0 0
  %2499 = vmatpush1.bf16.msra.mxu0 0
  %2500 = vmatprep.subr.bf16.mxu0 0
  %2501 = vmatpush1.bf16.msra.mxu0 0
  %2502 = vmatprep.subr.bf16.mxu0 0
  %2503 = vmatpush1.bf16.msra.mxu0 0
  %2504 = vmatprep.subr.bf16.mxu0 0
  %2505 = vmatpush1.bf16.msra.mxu0 0
  %2506 = vmatprep.subr.bf16.mxu0 0
  %2507 = vmatpush1.bf16.msra.mxu0 0
  %2508 = vmatprep.subr.bf16.mxu0 0
  %2509 = vmatpush1.bf16.msra.mxu0 0
  %2510 = vmatprep.subr.bf16.mxu0 0
  %2511 = vmatpush1.bf16.msra.mxu0 0
  %2512 = vmatprep.subr.bf16.mxu0 0
  %2513 = vmatpush1.bf16.msra.mxu0 0
  %2514 = vmatprep.subr.bf16.mxu0 0
  %2515 = vmatpush1.bf16.msra.mxu0 0
  %2516 = vmatprep.subr.bf16.mxu0 0
  %2517 = vmatpush1.bf16.msra.mxu0 0
  %2518 = vmatprep.subr.bf16.mxu0 0
  %2519 = vmatpush1.bf16.msra.mxu0 0
  %2520 = vmatprep.mubr.bf16.mxu0 0
  %2521 = vmatmul.mubr.bf16.gmra.mrb[0].mxu0 %v2486
  %v2522 = vpop.f32.mrb[0].mxu0
  %v2523 = vadd.f32 0.0, %v2522
  %v2524 = vpop.f32.mrb[0].mxu0
  %v2525 = vpop.f32.mrb[0].mxu0
  %v2526 = vadd.f32 0.0, %v2525
  %v2527 = vpop.f32.mrb[0].mxu0
  %2528 = vdwg.mxu0
  %2529 = vrot.lane.b32.xlu0 %v2029, 112
  %v2530 = vpop.permute.xlu0 %2529
  %2531 = vrot.lane.b32.xlu0 %v2029, 80
  %v2532 = vpop.permute.xlu0 %2531
  %v2534 = vsel %vm441, %v2530, 0
  %v2537 = vsel %vm441, %v2532, 0
  %2539 = vmatprep.subr.bf16.mxu0 0
  %2540 = vmatpush1.bf16.xpose.msra.mxu0 %v2537
  %2541 = vmatprep.subr.bf16.mxu0 0
  %2542 = vmatpush1.bf16.xpose.msra.mxu0 0
  %2543 = vmatprep.subr.bf16.mxu0 0
  %2544 = vmatpush1.bf16.xpose.msra.mxu0 0
  %2545 = vmatprep.subr.bf16.mxu0 0
  %2546 = vmatpush1.bf16.xpose.msra.mxu0 0
  %2547 = vmatprep.subr.bf16.mxu0 0
  %2548 = vmatpush1.bf16.xpose.msra.mxu0 0
  %2549 = vmatprep.subr.bf16.mxu0 0
  %2550 = vmatpush1.bf16.xpose.msra.mxu0 0
  %2551 = vmatprep.subr.bf16.mxu0 0
  %2552 = vmatpush1.bf16.xpose.msra.mxu0 0
  %2553 = vmatprep.subr.bf16.mxu0 0
  %2554 = vmatpush1.bf16.xpose.msra.mxu0 0
  %2555 = vmatprep.subr.bf16.mxu0 0
  %2556 = vmatpush1.bf16.xpose.msra.mxu0 0
  %2557 = vmatprep.subr.bf16.mxu0 0
  %2558 = vmatpush1.bf16.xpose.msra.mxu0 0
  %2559 = vmatprep.subr.bf16.mxu0 0
  %2560 = vmatpush1.bf16.xpose.msra.mxu0 0
  %2561 = vmatprep.subr.bf16.mxu0 0
  %2562 = vmatpush1.bf16.xpose.msra.mxu0 0
  %2563 = vmatprep.subr.bf16.mxu0 0
  %2564 = vmatpush1.bf16.xpose.msra.mxu0 0
  %2565 = vmatprep.subr.bf16.mxu0 0
  %2566 = vmatpush1.bf16.xpose.msra.mxu0 0
  %2567 = vmatprep.subr.bf16.mxu0 0
  %2568 = vmatpush1.bf16.xpose.msra.mxu0 0
  %2569 = vmatprep.subr.bf16.mxu0 0
  %2570 = vmatpush1.bf16.xpose.msra.mxu0 0
  %2571 = vmatprep.mubr.bf16.mxu0 0
  %2572 = vmatmul.mubr.bf16.gmra.mrb[0].mxu0 %v2534
  %v2573 = vpop.f32.mrb[0].mxu0
  %v2574 = vadd.f32 0.0, %v2573
  %v2575 = vpop.f32.mrb[0].mxu0
  %v2576 = vpop.f32.mrb[0].mxu0
  %v2577 = vadd.f32 0.0, %v2576
  %v2578 = vpop.f32.mrb[0].mxu0
  %2579 = vdwg.mxu0
  %2580 = vrot.lane.b32.xlu0 %v2030, 112
  %v2581 = vpop.permute.xlu0 %2580
  %2582 = vrot.lane.b32.xlu0 %v2030, 80
  %v2583 = vpop.permute.xlu0 %2582
  %v2585 = vsel %vm441, %v2581, 0
  %v2588 = vsel %vm441, %v2583, 0
  %2590 = vmatprep.subr.bf16.mxu0 0
  %2591 = vmatpush1.bf16.xpose.msra.mxu0 %v2588
  %2592 = vmatprep.subr.bf16.mxu0 0
  %2593 = vmatpush1.bf16.xpose.msra.mxu0 0
  %2594 = vmatprep.subr.bf16.mxu0 0
  %2595 = vmatpush1.bf16.xpose.msra.mxu0 0
  %2596 = vmatprep.subr.bf16.mxu0 0
  %2597 = vmatpush1.bf16.xpose.msra.mxu0 0
  %2598 = vmatprep.subr.bf16.mxu0 0
  %2599 = vmatpush1.bf16.xpose.msra.mxu0 0
  %2600 = vmatprep.subr.bf16.mxu0 0
  %2601 = vmatpush1.bf16.xpose.msra.mxu0 0
  %2602 = vmatprep.subr.bf16.mxu0 0
  %2603 = vmatpush1.bf16.xpose.msra.mxu0 0
  %2604 = vmatprep.subr.bf16.mxu0 0
  %2605 = vmatpush1.bf16.xpose.msra.mxu0 0
  %2606 = vmatprep.subr.bf16.mxu0 0
  %2607 = vmatpush1.bf16.xpose.msra.mxu0 0
  %2608 = vmatprep.subr.bf16.mxu0 0
  %2609 = vmatpush1.bf16.xpose.msra.mxu0 0
  %2610 = vmatprep.subr.bf16.mxu0 0
  %2611 = vmatpush1.bf16.xpose.msra.mxu0 0
  %2612 = vmatprep.subr.bf16.mxu0 0
  %2613 = vmatpush1.bf16.xpose.msra.mxu0 0
  %2614 = vmatprep.subr.bf16.mxu0 0
  %2615 = vmatpush1.bf16.xpose.msra.mxu0 0
  %2616 = vmatprep.subr.bf16.mxu0 0
  %2617 = vmatpush1.bf16.xpose.msra.mxu0 0
  %2618 = vmatprep.subr.bf16.mxu0 0
  %2619 = vmatpush1.bf16.xpose.msra.mxu0 0
  %2620 = vmatprep.subr.bf16.mxu0 0
  %2621 = vmatpush1.bf16.xpose.msra.mxu0 0
  %2622 = vmatprep.mubr.bf16.mxu0 0
  %2623 = vmatmul.mubr.bf16.gmra.mrb[0].mxu0 %v2585
  %v2624 = vpop.f32.mrb[0].mxu0
  %v2625 = vadd.f32 0.0, %v2624
  %v2626 = vpop.f32.mrb[0].mxu0
  %v2627 = vpop.f32.mrb[0].mxu0
  %v2628 = vadd.f32 0.0, %v2627
  %v2629 = vpop.f32.mrb[0].mxu0
  %2630 = vdwg.mxu0
  %v2631 = vmul.f32 %v2574, 0.35355338
  %v2632 = vmul.f32 %v2577, 0.35355338
  %v2633 = vmul.f32 %v2625, 0.35355338
  %v2634 = vmul.f32 %v2628, 0.35355338
  %v2635 = vadd.f32 %v2631, %v352
  %v2636 = vadd.f32 %v2632, %v352
  %v2637 = vadd.f32 %v2633, %v356
  %v2638 = vadd.f32 %v2634, %v356
  %v2639 = vsel %vm547, %v2635, -inf
  %2640 = vmax.xlane.f32.xlu0 %v2639
  %v2641 = vpop.xlane.xlu0 %2640
  %v2642 = vsel %vm547, %v2636, -inf
  %2643 = vmax.xlane.f32.xlu0 %v2642
  %v2644 = vpop.xlane.xlu0 %2643
  %v2645 = vsel %vm547, %v2637, -inf
  %2646 = vmax.xlane.f32.xlu0 %v2645
  %v2647 = vpop.xlane.xlu0 %2646
  %v2648 = vsel %vm547, %v2638, -inf
  %2649 = vmax.xlane.f32.xlu0 %v2648
  %v2650 = vpop.xlane.xlu0 %2649
  %v2651 = vsub.f32 %v2635, %v2641
  %v2652 = vsub.f32 %v2636, %v2644
  %v2653 = vsub.f32 %v2637, %v2647
  %v2654 = vsub.f32 %v2638, %v2650
  %v2655 = vmul.f32 %v2651, 1.442695
  %v2656 = vpow.pop %v2655
  %v2657 = vmul.f32 %v2652, 1.442695
  %v2658 = vpow.pop %v2657
  %v2659 = vmul.f32 %v2653, 1.442695
  %v2660 = vpow.pop %v2659
  %v2661 = vmul.f32 %v2654, 1.442695
  %v2662 = vpow.pop %v2661
  %v2663 = vsel %vm547, %v2656, 0.0
  %2664 = vadd.xlane.f32.xlu0 %v2663
  %v2665 = vpop.xlane.xlu0 %2664
  %v2666 = vsel %vm547, %v2658, 0.0
  %2667 = vadd.xlane.f32.xlu0 %v2666
  %v2668 = vpop.xlane.xlu0 %2667
  %v2669 = vsel %vm547, %v2660, 0.0
  %2670 = vadd.xlane.f32.xlu0 %v2669
  %v2671 = vpop.xlane.xlu0 %2670
  %v2672 = vsel %vm547, %v2662, 0.0
  %2673 = vadd.xlane.f32.xlu0 %v2672
  %v2674 = vpop.xlane.xlu0 %2673
  %v2675 = vrcp.pop %v2665
  %v2676 = vmul.f32 %v2656, %v2675
  %v2677 = vrcp.pop %v2668
  %v2678 = vmul.f32 %v2658, %v2677
  %v2679 = vrcp.pop %v2671
  %v2680 = vmul.f32 %v2660, %v2679
  %v2681 = vrcp.pop %v2674
  %v2682 = vmul.f32 %v2662, %v2681
  %v2683 = vpack.c.bf16 %v2678, %v2676
  %v2684 = vpack.c.bf16 %v2682, %v2680
  %2685 = vrot.lane.b32.xlu0 %v2029, 48
  %v2686 = vpop.permute.xlu0 %2685
  %v2689 = vsel %vm547, %v2683, 0
  %2691 = vmatprep.subr.bf16.mxu0 0
  %2692 = vmatpush1.bf16.msra.mxu0 %v2686
  %2693 = vmatprep.subr.bf16.mxu0 0
  %2694 = vmatpush1.bf16.msra.mxu0 0
  %2695 = vmatprep.subr.bf16.mxu0 0
  %2696 = vmatpush1.bf16.msra.mxu0 0
  %2697 = vmatprep.subr.bf16.mxu0 0
  %2698 = vmatpush1.bf16.msra.mxu0 0
  %2699 = vmatprep.subr.bf16.mxu0 0
  %2700 = vmatpush1.bf16.msra.mxu0 0
  %2701 = vmatprep.subr.bf16.mxu0 0
  %2702 = vmatpush1.bf16.msra.mxu0 0
  %2703 = vmatprep.subr.bf16.mxu0 0
  %2704 = vmatpush1.bf16.msra.mxu0 0
  %2705 = vmatprep.subr.bf16.mxu0 0
  %2706 = vmatpush1.bf16.msra.mxu0 0
  %2707 = vmatprep.subr.bf16.mxu0 0
  %2708 = vmatpush1.bf16.msra.mxu0 0
  %2709 = vmatprep.subr.bf16.mxu0 0
  %2710 = vmatpush1.bf16.msra.mxu0 0
  %2711 = vmatprep.subr.bf16.mxu0 0
  %2712 = vmatpush1.bf16.msra.mxu0 0
  %2713 = vmatprep.subr.bf16.mxu0 0
  %2714 = vmatpush1.bf16.msra.mxu0 0
  %2715 = vmatprep.subr.bf16.mxu0 0
  %2716 = vmatpush1.bf16.msra.mxu0 0
  %2717 = vmatprep.subr.bf16.mxu0 0
  %2718 = vmatpush1.bf16.msra.mxu0 0
  %2719 = vmatprep.subr.bf16.mxu0 0
  %2720 = vmatpush1.bf16.msra.mxu0 0
  %2721 = vmatprep.subr.bf16.mxu0 0
  %2722 = vmatpush1.bf16.msra.mxu0 0
  %2723 = vmatprep.mubr.bf16.mxu0 0
  %2724 = vmatmul.mubr.bf16.gmra.mrb[0].mxu0 %v2689
  %v2725 = vpop.f32.mrb[0].mxu0
  %v2726 = vadd.f32 0.0, %v2725
  %v2727 = vpop.f32.mrb[0].mxu0
  %v2728 = vpop.f32.mrb[0].mxu0
  %v2729 = vadd.f32 0.0, %v2728
  %v2730 = vpop.f32.mrb[0].mxu0
  %2731 = vdwg.mxu0
  %2732 = vrot.lane.b32.xlu0 %v2030, 48
  %v2733 = vpop.permute.xlu0 %2732
  %v2736 = vsel %vm547, %v2684, 0
  %2738 = vmatprep.subr.bf16.mxu0 0
  %2739 = vmatpush1.bf16.msra.mxu0 %v2733
  %2740 = vmatprep.subr.bf16.mxu0 0
  %2741 = vmatpush1.bf16.msra.mxu0 0
  %2742 = vmatprep.subr.bf16.mxu0 0
  %2743 = vmatpush1.bf16.msra.mxu0 0
  %2744 = vmatprep.subr.bf16.mxu0 0
  %2745 = vmatpush1.bf16.msra.mxu0 0
  %2746 = vmatprep.subr.bf16.mxu0 0
  %2747 = vmatpush1.bf16.msra.mxu0 0
  %2748 = vmatprep.subr.bf16.mxu0 0
  %2749 = vmatpush1.bf16.msra.mxu0 0
  %2750 = vmatprep.subr.bf16.mxu0 0
  %2751 = vmatpush1.bf16.msra.mxu0 0
  %2752 = vmatprep.subr.bf16.mxu0 0
  %2753 = vmatpush1.bf16.msra.mxu0 0
  %2754 = vmatprep.subr.bf16.mxu0 0
  %2755 = vmatpush1.bf16.msra.mxu0 0
  %2756 = vmatprep.subr.bf16.mxu0 0
  %2757 = vmatpush1.bf16.msra.mxu0 0
  %2758 = vmatprep.subr.bf16.mxu0 0
  %2759 = vmatpush1.bf16.msra.mxu0 0
  %2760 = vmatprep.subr.bf16.mxu0 0
  %2761 = vmatpush1.bf16.msra.mxu0 0
  %2762 = vmatprep.subr.bf16.mxu0 0
  %2763 = vmatpush1.bf16.msra.mxu0 0
  %2764 = vmatprep.subr.bf16.mxu0 0
  %2765 = vmatpush1.bf16.msra.mxu0 0
  %2766 = vmatprep.subr.bf16.mxu0 0
  %2767 = vmatpush1.bf16.msra.mxu0 0
  %2768 = vmatprep.subr.bf16.mxu0 0
  %2769 = vmatpush1.bf16.msra.mxu0 0
  %2770 = vmatprep.mubr.bf16.mxu0 0
  %2771 = vmatmul.mubr.bf16.gmra.mrb[0].mxu0 %v2736
  %v2772 = vpop.f32.mrb[0].mxu0
  %v2773 = vadd.f32 0.0, %v2772
  %v2774 = vpop.f32.mrb[0].mxu0
  %v2775 = vpop.f32.mrb[0].mxu0
  %v2776 = vadd.f32 0.0, %v2775
  %v2777 = vpop.f32.mrb[0].mxu0
  %2778 = vdwg.mxu0
  %2779 = vrot.lane.b32.xlu0 %v2029, 104
  %v2780 = vpop.permute.xlu0 %2779
  %2781 = vrot.lane.b32.xlu0 %v2029, 72
  %v2782 = vpop.permute.xlu0 %2781
  %v2784 = vsel %vm441, %v2780, 0
  %v2787 = vsel %vm441, %v2782, 0
  %2789 = vmatprep.subr.bf16.mxu0 0
  %2790 = vmatpush1.bf16.xpose.msra.mxu0 %v2787
  %2791 = vmatprep.subr.bf16.mxu0 0
  %2792 = vmatpush1.bf16.xpose.msra.mxu0 0
  %2793 = vmatprep.subr.bf16.mxu0 0
  %2794 = vmatpush1.bf16.xpose.msra.mxu0 0
  %2795 = vmatprep.subr.bf16.mxu0 0
  %2796 = vmatpush1.bf16.xpose.msra.mxu0 0
  %2797 = vmatprep.subr.bf16.mxu0 0
  %2798 = vmatpush1.bf16.xpose.msra.mxu0 0
  %2799 = vmatprep.subr.bf16.mxu0 0
  %2800 = vmatpush1.bf16.xpose.msra.mxu0 0
  %2801 = vmatprep.subr.bf16.mxu0 0
  %2802 = vmatpush1.bf16.xpose.msra.mxu0 0
  %2803 = vmatprep.subr.bf16.mxu0 0
  %2804 = vmatpush1.bf16.xpose.msra.mxu0 0
  %2805 = vmatprep.subr.bf16.mxu0 0
  %2806 = vmatpush1.bf16.xpose.msra.mxu0 0
  %2807 = vmatprep.subr.bf16.mxu0 0
  %2808 = vmatpush1.bf16.xpose.msra.mxu0 0
  %2809 = vmatprep.subr.bf16.mxu0 0
  %2810 = vmatpush1.bf16.xpose.msra.mxu0 0
  %2811 = vmatprep.subr.bf16.mxu0 0
  %2812 = vmatpush1.bf16.xpose.msra.mxu0 0
  %2813 = vmatprep.subr.bf16.mxu0 0
  %2814 = vmatpush1.bf16.xpose.msra.mxu0 0
  %2815 = vmatprep.subr.bf16.mxu0 0
  %2816 = vmatpush1.bf16.xpose.msra.mxu0 0
  %2817 = vmatprep.subr.bf16.mxu0 0
  %2818 = vmatpush1.bf16.xpose.msra.mxu0 0
  %2819 = vmatprep.subr.bf16.mxu0 0
  %2820 = vmatpush1.bf16.xpose.msra.mxu0 0
  %2821 = vmatprep.mubr.bf16.mxu0 0
  %2822 = vmatmul.mubr.bf16.gmra.mrb[0].mxu0 %v2784
  %v2823 = vpop.f32.mrb[0].mxu0
  %v2824 = vadd.f32 0.0, %v2823
  %v2825 = vpop.f32.mrb[0].mxu0
  %v2826 = vpop.f32.mrb[0].mxu0
  %v2827 = vadd.f32 0.0, %v2826
  %v2828 = vpop.f32.mrb[0].mxu0
  %2829 = vdwg.mxu0
  %2830 = vrot.lane.b32.xlu0 %v2030, 104
  %v2831 = vpop.permute.xlu0 %2830
  %2832 = vrot.lane.b32.xlu0 %v2030, 72
  %v2833 = vpop.permute.xlu0 %2832
  %v2835 = vsel %vm441, %v2831, 0
  %v2838 = vsel %vm441, %v2833, 0
  %2840 = vmatprep.subr.bf16.mxu0 0
  %2841 = vmatpush1.bf16.xpose.msra.mxu0 %v2838
  %2842 = vmatprep.subr.bf16.mxu0 0
  %2843 = vmatpush1.bf16.xpose.msra.mxu0 0
  %2844 = vmatprep.subr.bf16.mxu0 0
  %2845 = vmatpush1.bf16.xpose.msra.mxu0 0
  %2846 = vmatprep.subr.bf16.mxu0 0
  %2847 = vmatpush1.bf16.xpose.msra.mxu0 0
  %2848 = vmatprep.subr.bf16.mxu0 0
  %2849 = vmatpush1.bf16.xpose.msra.mxu0 0
  %2850 = vmatprep.subr.bf16.mxu0 0
  %2851 = vmatpush1.bf16.xpose.msra.mxu0 0
  %2852 = vmatprep.subr.bf16.mxu0 0
  %2853 = vmatpush1.bf16.xpose.msra.mxu0 0
  %2854 = vmatprep.subr.bf16.mxu0 0
  %2855 = vmatpush1.bf16.xpose.msra.mxu0 0
  %2856 = vmatprep.subr.bf16.mxu0 0
  %2857 = vmatpush1.bf16.xpose.msra.mxu0 0
  %2858 = vmatprep.subr.bf16.mxu0 0
  %2859 = vmatpush1.bf16.xpose.msra.mxu0 0
  %2860 = vmatprep.subr.bf16.mxu0 0
  %2861 = vmatpush1.bf16.xpose.msra.mxu0 0
  %2862 = vmatprep.subr.bf16.mxu0 0
  %2863 = vmatpush1.bf16.xpose.msra.mxu0 0
  %2864 = vmatprep.subr.bf16.mxu0 0
  %2865 = vmatpush1.bf16.xpose.msra.mxu0 0
  %2866 = vmatprep.subr.bf16.mxu0 0
  %2867 = vmatpush1.bf16.xpose.msra.mxu0 0
  %2868 = vmatprep.subr.bf16.mxu0 0
  %2869 = vmatpush1.bf16.xpose.msra.mxu0 0
  %2870 = vmatprep.subr.bf16.mxu0 0
  %2871 = vmatpush1.bf16.xpose.msra.mxu0 0
  %2872 = vmatprep.mubr.bf16.mxu0 0
  %2873 = vmatmul.mubr.bf16.gmra.mrb[0].mxu0 %v2835
  %v2874 = vpop.f32.mrb[0].mxu0
  %v2875 = vadd.f32 0.0, %v2874
  %v2876 = vpop.f32.mrb[0].mxu0
  %v2877 = vpop.f32.mrb[0].mxu0
  %v2878 = vadd.f32 0.0, %v2877
  %v2879 = vpop.f32.mrb[0].mxu0
  %2880 = vdwg.mxu0
  %v2881 = vmul.f32 %v2824, 0.35355338
  %v2882 = vmul.f32 %v2827, 0.35355338
  %v2883 = vmul.f32 %v2875, 0.35355338
  %v2884 = vmul.f32 %v2878, 0.35355338
  %v2885 = vadd.f32 %v2881, %v352
  %v2886 = vadd.f32 %v2882, %v352
  %v2887 = vadd.f32 %v2883, %v356
  %v2888 = vadd.f32 %v2884, %v356
  %v2889 = vsel %vm547, %v2885, -inf
  %2890 = vmax.xlane.f32.xlu0 %v2889
  %v2891 = vpop.xlane.xlu0 %2890
  %v2892 = vsel %vm547, %v2886, -inf
  %2893 = vmax.xlane.f32.xlu0 %v2892
  %v2894 = vpop.xlane.xlu0 %2893
  %v2895 = vsel %vm547, %v2887, -inf
  %2896 = vmax.xlane.f32.xlu0 %v2895
  %v2897 = vpop.xlane.xlu0 %2896
  %v2898 = vsel %vm547, %v2888, -inf
  %2899 = vmax.xlane.f32.xlu0 %v2898
  %v2900 = vpop.xlane.xlu0 %2899
  %v2901 = vsub.f32 %v2885, %v2891
  %v2902 = vsub.f32 %v2886, %v2894
  %v2903 = vsub.f32 %v2887, %v2897
  %v2904 = vsub.f32 %v2888, %v2900
  %v2905 = vmul.f32 %v2901, 1.442695
  %v2906 = vpow.pop %v2905
  %v2907 = vmul.f32 %v2902, 1.442695
  %v2908 = vpow.pop %v2907
  %v2909 = vmul.f32 %v2903, 1.442695
  %v2910 = vpow.pop %v2909
  %v2911 = vmul.f32 %v2904, 1.442695
  %v2912 = vpow.pop %v2911
  %v2913 = vsel %vm547, %v2906, 0.0
  %2914 = vadd.xlane.f32.xlu0 %v2913
  %v2915 = vpop.xlane.xlu0 %2914
  %v2916 = vsel %vm547, %v2908, 0.0
  %2917 = vadd.xlane.f32.xlu0 %v2916
  %v2918 = vpop.xlane.xlu0 %2917
  %v2919 = vsel %vm547, %v2910, 0.0
  %2920 = vadd.xlane.f32.xlu0 %v2919
  %v2921 = vpop.xlane.xlu0 %2920
  %v2922 = vsel %vm547, %v2912, 0.0
  %2923 = vadd.xlane.f32.xlu0 %v2922
  %v2924 = vpop.xlane.xlu0 %2923
  %v2925 = vrcp.pop %v2915
  %v2926 = vmul.f32 %v2906, %v2925
  %v2927 = vrcp.pop %v2918
  %v2928 = vmul.f32 %v2908, %v2927
  %v2929 = vrcp.pop %v2921
  %v2930 = vmul.f32 %v2910, %v2929
  %v2931 = vrcp.pop %v2924
  %v2932 = vmul.f32 %v2912, %v2931
  %v2933 = vpack.c.bf16 %v2928, %v2926
  %v2934 = vpack.c.bf16 %v2932, %v2930
  %2935 = vrot.lane.b32.xlu0 %v2029, 40
  %v2936 = vpop.permute.xlu0 %2935
  %v2939 = vsel %vm547, %v2933, 0
  %2941 = vmatprep.subr.bf16.mxu0 0
  %2942 = vmatpush1.bf16.msra.mxu0 %v2936
  %2943 = vmatprep.subr.bf16.mxu0 0
  %2944 = vmatpush1.bf16.msra.mxu0 0
  %2945 = vmatprep.subr.bf16.mxu0 0
  %2946 = vmatpush1.bf16.msra.mxu0 0
  %2947 = vmatprep.subr.bf16.mxu0 0
  %2948 = vmatpush1.bf16.msra.mxu0 0
  %2949 = vmatprep.subr.bf16.mxu0 0
  %2950 = vmatpush1.bf16.msra.mxu0 0
  %2951 = vmatprep.subr.bf16.mxu0 0
  %2952 = vmatpush1.bf16.msra.mxu0 0
  %2953 = vmatprep.subr.bf16.mxu0 0
  %2954 = vmatpush1.bf16.msra.mxu0 0
  %2955 = vmatprep.subr.bf16.mxu0 0
  %2956 = vmatpush1.bf16.msra.mxu0 0
  %2957 = vmatprep.subr.bf16.mxu0 0
  %2958 = vmatpush1.bf16.msra.mxu0 0
  %2959 = vmatprep.subr.bf16.mxu0 0
  %2960 = vmatpush1.bf16.msra.mxu0 0
  %2961 = vmatprep.subr.bf16.mxu0 0
  %2962 = vmatpush1.bf16.msra.mxu0 0
  %2963 = vmatprep.subr.bf16.mxu0 0
  %2964 = vmatpush1.bf16.msra.mxu0 0
  %2965 = vmatprep.subr.bf16.mxu0 0
  %2966 = vmatpush1.bf16.msra.mxu0 0
  %2967 = vmatprep.subr.bf16.mxu0 0
  %2968 = vmatpush1.bf16.msra.mxu0 0
  %2969 = vmatprep.subr.bf16.mxu0 0
  %2970 = vmatpush1.bf16.msra.mxu0 0
  %2971 = vmatprep.subr.bf16.mxu0 0
  %2972 = vmatpush1.bf16.msra.mxu0 0
  %2973 = vmatprep.mubr.bf16.mxu0 0
  %2974 = vmatmul.mubr.bf16.gmra.mrb[0].mxu0 %v2939
  %v2975 = vpop.f32.mrb[0].mxu0
  %v2976 = vadd.f32 0.0, %v2975
  %v2977 = vpop.f32.mrb[0].mxu0
  %v2978 = vpop.f32.mrb[0].mxu0
  %v2979 = vadd.f32 0.0, %v2978
  %v2980 = vpop.f32.mrb[0].mxu0
  %2981 = vdwg.mxu0
  %2982 = vrot.lane.b32.xlu0 %v2030, 40
  %v2983 = vpop.permute.xlu0 %2982
  %v2986 = vsel %vm547, %v2934, 0
  %2988 = vmatprep.subr.bf16.mxu0 0
  %2989 = vmatpush1.bf16.msra.mxu0 %v2983
  %2990 = vmatprep.subr.bf16.mxu0 0
  %2991 = vmatpush1.bf16.msra.mxu0 0
  %2992 = vmatprep.subr.bf16.mxu0 0
  %2993 = vmatpush1.bf16.msra.mxu0 0
  %2994 = vmatprep.subr.bf16.mxu0 0
  %2995 = vmatpush1.bf16.msra.mxu0 0
  %2996 = vmatprep.subr.bf16.mxu0 0
  %2997 = vmatpush1.bf16.msra.mxu0 0
  %2998 = vmatprep.subr.bf16.mxu0 0
  %2999 = vmatpush1.bf16.msra.mxu0 0
  %3000 = vmatprep.subr.bf16.mxu0 0
  %3001 = vmatpush1.bf16.msra.mxu0 0
  %3002 = vmatprep.subr.bf16.mxu0 0
  %3003 = vmatpush1.bf16.msra.mxu0 0
  %3004 = vmatprep.subr.bf16.mxu0 0
  %3005 = vmatpush1.bf16.msra.mxu0 0
  %3006 = vmatprep.subr.bf16.mxu0 0
  %3007 = vmatpush1.bf16.msra.mxu0 0
  %3008 = vmatprep.subr.bf16.mxu0 0
  %3009 = vmatpush1.bf16.msra.mxu0 0
  %3010 = vmatprep.subr.bf16.mxu0 0
  %3011 = vmatpush1.bf16.msra.mxu0 0
  %3012 = vmatprep.subr.bf16.mxu0 0
  %3013 = vmatpush1.bf16.msra.mxu0 0
  %3014 = vmatprep.subr.bf16.mxu0 0
  %3015 = vmatpush1.bf16.msra.mxu0 0
  %3016 = vmatprep.subr.bf16.mxu0 0
  %3017 = vmatpush1.bf16.msra.mxu0 0
  %3018 = vmatprep.subr.bf16.mxu0 0
  %3019 = vmatpush1.bf16.msra.mxu0 0
  %3020 = vmatprep.mubr.bf16.mxu0 0
  %3021 = vmatmul.mubr.bf16.gmra.mrb[0].mxu0 %v2986
  %v3022 = vpop.f32.mrb[0].mxu0
  %v3023 = vadd.f32 0.0, %v3022
  %v3024 = vpop.f32.mrb[0].mxu0
  %v3025 = vpop.f32.mrb[0].mxu0
  %v3026 = vadd.f32 0.0, %v3025
  %v3027 = vpop.f32.mrb[0].mxu0
  %3028 = vdwg.mxu0
  %3033 = vrot.lane.b32.xlu0 %v2476, 8
  %v3034 = vpop.permute.xlu0 %3033
  %3035 = vrot.lane.b32.xlu0 %v2479, 8
  %v3036 = vpop.permute.xlu0 %3035
  %3037 = vrot.lane.b32.xlu0 %v2523, 8
  %v3038 = vpop.permute.xlu0 %3037
  %3039 = vrot.lane.b32.xlu0 %v2526, 8
  %v3040 = vpop.permute.xlu0 %3039
  %3049 = vrot.lane.b32.xlu0 %v2726, 16
  %v3050 = vpop.permute.xlu0 %3049
  %3051 = vrot.lane.b32.xlu0 %v2729, 16
  %v3052 = vpop.permute.xlu0 %3051
  %3053 = vrot.lane.b32.xlu0 %v2773, 16
  %v3054 = vpop.permute.xlu0 %3053
  %3055 = vrot.lane.b32.xlu0 %v2776, 16
  %v3056 = vpop.permute.xlu0 %3055
  %3065 = vrot.lane.b32.xlu0 %v2976, 24
  %v3066 = vpop.permute.xlu0 %3065
  %3067 = vrot.lane.b32.xlu0 %v2979, 24
  %v3068 = vpop.permute.xlu0 %3067
  %3069 = vrot.lane.b32.xlu0 %v3023, 24
  %v3070 = vpop.permute.xlu0 %3069
  %3071 = vrot.lane.b32.xlu0 %v3026, 24
  %v3072 = vpop.permute.xlu0 %3071
  %v3077 = vsel %vm441, %v2226, %v3034
  %v3078 = vsel %vm441, %v2229, %v3036
  %v3079 = vsel %vm441, %v2273, %v3038
  %v3080 = vsel %vm441, %v2276, %v3040
  %v3081 = vsel %vm547, %v3077, %v3050
  %v3082 = vsel %vm547, %v3078, %v3052
  %v3083 = vsel %vm547, %v3079, %v3054
  %v3084 = vsel %vm547, %v3080, %v3056
  %v3085 = vsel %vm1494, %v3081, %v3066
  %v3086 = vsel %vm1494, %v3082, %v3068
  %v3087 = vsel %vm1494, %v3083, %v3070
  %v3088 = vsel %vm1494, %v3084, %v3072
  %v3089 = vpack.c.bf16 %v3086, %v3085
  %v3090 = vpack.c.bf16 %v3088, %v3087
  %v3091 = vld [vmem:[%s6 + $0x10] sm:$0xf]
  %v3092 = vld [vmem:[%s6 + $0x14] sm:$0xf]
  %v3093 = vld [vmem:[%s6 + $0x18] sm:$0xf]
  %v3094 = vld [vmem:[%s6 + $0x1c] sm:$0xf]
  %v3095 = vlaneseq
  %v3096 = vshrl.u32 %v3095, 7
  %v3097 = vsub.s32 7, %v3096
  %v3098 = vrot.slane %v28, %v3097
  %v3103 = vunpack.c.l.b16 %v3091
  %v3104 = vunpack.c.l.b16 %v3092
  %v3105 = vunpack.c.l.b16 %v3093
  %v3106 = vunpack.c.l.b16 %v3094
  %v3107 = vpack.c.b16 %v3104, %v3103
  %v3108 = vpack.c.b16 %v3106, %v3105
  %v3112 = vsel %vm253, %v3089, 0
  %v3115 = vsel %vm253, %v3090, 0
  %3117 = vmatprep.subr.bf16.mxu0 0
  %3118 = vmatpush1.bf16.msra.mxu0 %v3107
  %3119 = vmatprep.subr.bf16.mxu0 0
  %3120 = vmatpush1.bf16.msra.mxu0 %v3108
  %3121 = vmatprep.subr.bf16.mxu0 0
  %3122 = vmatpush1.bf16.msra.mxu0 0
  %3123 = vmatprep.subr.bf16.mxu0 0
  %3124 = vmatpush1.bf16.msra.mxu0 0
  %3125 = vmatprep.subr.bf16.mxu0 0
  %3126 = vmatpush1.bf16.msra.mxu0 0
  %3127 = vmatprep.subr.bf16.mxu0 0
  %3128 = vmatpush1.bf16.msra.mxu0 0
  %3129 = vmatprep.subr.bf16.mxu0 0
  %3130 = vmatpush1.bf16.msra.mxu0 0
  %3131 = vmatprep.subr.bf16.mxu0 0
  %3132 = vmatpush1.bf16.msra.mxu0 0
  %3133 = vmatprep.subr.bf16.mxu0 0
  %3134 = vmatpush1.bf16.msra.mxu0 0
  %3135 = vmatprep.subr.bf16.mxu0 0
  %3136 = vmatpush1.bf16.msra.mxu0 0
  %3137 = vmatprep.subr.bf16.mxu0 0
  %3138 = vmatpush1.bf16.msra.mxu0 0
  %3139 = vmatprep.subr.bf16.mxu0 0
  %3140 = vmatpush1.bf16.msra.mxu0 0
  %3141 = vmatprep.subr.bf16.mxu0 0
  %3142 = vmatpush1.bf16.msra.mxu0 0
  %3143 = vmatprep.subr.bf16.mxu0 0
  %3144 = vmatpush1.bf16.msra.mxu0 0
  %3145 = vmatprep.subr.bf16.mxu0 0
  %3146 = vmatpush1.bf16.msra.mxu0 0
  %3147 = vmatprep.subr.bf16.mxu0 0
  %3148 = vmatpush1.bf16.msra.mxu0 0
  %3149 = vmatprep.mubr.bf16.mxu0 0
  %3150 = vmatmul.mubr.bf16.gmra.mrb[0].mxu0 %v3112
  %v3151 = vpop.f32.mrb[0].mxu0
  %v3152 = vadd.f32 %v3098, %v3151
  %v3153 = vpop.f32.mrb[0].mxu0
  %v3154 = vpop.f32.mrb[0].mxu0
  %v3155 = vadd.f32 %v3098, %v3154
  %v3156 = vpop.f32.mrb[0].mxu0
  %3157 = vmatprep.mubr.bf16.mxu0 0
  %3158 = vmatmul.mubr.bf16.gmra.mrb[0].mxu0 %v3115
  %v3159 = vpop.f32.mrb[0].mxu0
  %v3160 = vadd.f32 %v3098, %v3159
  %v3161 = vpop.f32.mrb[0].mxu0
  %v3162 = vpop.f32.mrb[0].mxu0
  %v3163 = vadd.f32 %v3098, %v3162
  %v3164 = vpop.f32.mrb[0].mxu0
  %3165 = vdwg.mxu0
  %v3166 = vadd.f32 %v1948, %v3152
  %v3167 = vadd.f32 %v1949, %v3155
  %v3168 = vadd.f32 %v1950, %v3160
  %v3169 = vadd.f32 %v1951, %v3163
  %v3170 = vsel %vm253, %v3166, 0.0
  %3171 = vadd.xlane.f32.xlu0 %v3170
  %v3172 = vpop.xlane.xlu0 %3171
  %v3173 = vsel %vm253, %v3167, 0.0
  %3174 = vadd.xlane.f32.xlu0 %v3173
  %v3175 = vpop.xlane.xlu0 %3174
  %v3176 = vsel %vm253, %v3168, 0.0
  %3177 = vadd.xlane.f32.xlu0 %v3176
  %v3178 = vpop.xlane.xlu0 %3177
  %v3179 = vsel %vm253, %v3169, 0.0
  %3180 = vadd.xlane.f32.xlu0 %v3179
  %v3181 = vpop.xlane.xlu0 %3180
  %v3182 = vmul.f32 %v3172, %v266
  %v3183 = vmul.f32 %v3175, %v266
  %v3184 = vmul.f32 %v3178, %v266
  %v3185 = vmul.f32 %v3181, %v266
  %v3186 = vsub.f32 %v3166, %v3182
  %v3187 = vsub.f32 %v3167, %v3183
  %v3188 = vsub.f32 %v3168, %v3184
  %v3189 = vsub.f32 %v3169, %v3185
  %v3190 = vmul.f32 %v3186, %v3186
  %v3191 = vmul.f32 %v3187, %v3187
  %v3192 = vmul.f32 %v3188, %v3188
  %v3193 = vmul.f32 %v3189, %v3189
  %v3194 = vsel %vm253, %v3190, 0.0
  %3195 = vadd.xlane.f32.xlu0 %v3194
  %v3196 = vpop.xlane.xlu0 %3195
  %v3197 = vsel %vm253, %v3191, 0.0
  %3198 = vadd.xlane.f32.xlu0 %v3197
  %v3199 = vpop.xlane.xlu0 %3198
  %v3200 = vsel %vm253, %v3192, 0.0
  %3201 = vadd.xlane.f32.xlu0 %v3200
  %v3202 = vpop.xlane.xlu0 %3201
  %v3203 = vsel %vm253, %v3193, 0.0
  %3204 = vadd.xlane.f32.xlu0 %v3203
  %v3205 = vpop.xlane.xlu0 %3204
  %v3206 = vmul.f32 %v3196, %v266
  %v3207 = vmul.f32 %v3199, %v266
  %v3208 = vmul.f32 %v3202, %v266
  %v3209 = vmul.f32 %v3205, %v266
  %v3210 = vadd.f32 %v3206, 1e-12
  %v3211 = vadd.f32 %v3207, 1e-12
  %v3212 = vadd.f32 %v3208, 1e-12
  %v3213 = vadd.f32 %v3209, 1e-12
  %v3214 = vrsqrt.pop %v3210
  %v3215 = vrsqrt.pop %v3211
  %v3216 = vrsqrt.pop %v3212
  %v3217 = vrsqrt.pop %v3213
  %v3218 = vmul.f32 %v3186, %v3214
  %v3219 = vmul.f32 %v3187, %v3215
  %v3220 = vmul.f32 %v3188, %v3216
  %v3221 = vmul.f32 %v3189, %v3217
  %v3222 = vlaneseq
  %v3223 = vshrl.u32 %v3222, 7
  %v3224 = vsub.s32 0, %v3223
  %v3225 = vrot.slane %v29, %v3224
  %v3226 = vmul.f32 %v3218, %v3225
  %v3227 = vmul.f32 %v3219, %v3225
  %v3228 = vmul.f32 %v3220, %v3225
  %v3229 = vmul.f32 %v3221, %v3225
  %v3230 = vlaneseq
  %v3231 = vshrl.u32 %v3230, 7
  %v3232 = vsub.s32 1, %v3231
  %v3233 = vrot.slane %v29, %v3232
  %v3234 = vadd.f32 %v3226, %v3233
  %v3235 = vadd.f32 %v3227, %v3233
  %v3236 = vadd.f32 %v3228, %v3233
  %v3237 = vadd.f32 %v3229, %v3233
  %v3238 = vpack.c.bf16 %v3235, %v3234
  %v3239 = vpack.c.bf16 %v3237, %v3236
  %v3240 = vld [vmem:[%s5 + $0x10] sm:$0xf]
  %v3241 = vld [vmem:[%s5 + $0x14] sm:$0xf]
  %v3242 = vld [vmem:[%s5 + $0x18] sm:$0xf]
  %v3243 = vld [vmem:[%s5 + $0x1c] sm:$0xf]
  %v3244 = vlaneseq
  %v3245 = vshrl.u32 %v3244, 7
  %v3246 = vsub.s32 6, %v3245
  %v3247 = vrot.slane %v28, %v3246
  %v3252 = vunpack.c.l.b16 %v3240
  %v3253 = vunpack.c.l.b16 %v3241
  %v3254 = vunpack.c.l.b16 %v3242
  %v3255 = vunpack.c.l.b16 %v3243
  %v3256 = vpack.c.b16 %v3253, %v3252
  %v3257 = vpack.c.b16 %v3255, %v3254
  %v3261 = vsel %vm253, %v3238, 0
  %v3264 = vsel %vm253, %v3239, 0
  %3266 = vmatprep.subr.bf16.mxu0 0
  %3267 = vmatpush1.bf16.msra.mxu0 %v3256
  %3268 = vmatprep.subr.bf16.mxu0 0
  %3269 = vmatpush1.bf16.msra.mxu0 %v3257
  %3270 = vmatprep.subr.bf16.mxu0 0
  %3271 = vmatpush1.bf16.msra.mxu0 0
  %3272 = vmatprep.subr.bf16.mxu0 0
  %3273 = vmatpush1.bf16.msra.mxu0 0
  %3274 = vmatprep.subr.bf16.mxu0 0
  %3275 = vmatpush1.bf16.msra.mxu0 0
  %3276 = vmatprep.subr.bf16.mxu0 0
  %3277 = vmatpush1.bf16.msra.mxu0 0
  %3278 = vmatprep.subr.bf16.mxu0 0
  %3279 = vmatpush1.bf16.msra.mxu0 0
  %3280 = vmatprep.subr.bf16.mxu0 0
  %3281 = vmatpush1.bf16.msra.mxu0 0
  %3282 = vmatprep.subr.bf16.mxu0 0
  %3283 = vmatpush1.bf16.msra.mxu0 0
  %3284 = vmatprep.subr.bf16.mxu0 0
  %3285 = vmatpush1.bf16.msra.mxu0 0
  %3286 = vmatprep.subr.bf16.mxu0 0
  %3287 = vmatpush1.bf16.msra.mxu0 0
  %3288 = vmatprep.subr.bf16.mxu0 0
  %3289 = vmatpush1.bf16.msra.mxu0 0
  %3290 = vmatprep.subr.bf16.mxu0 0
  %3291 = vmatpush1.bf16.msra.mxu0 0
  %3292 = vmatprep.subr.bf16.mxu0 0
  %3293 = vmatpush1.bf16.msra.mxu0 0
  %3294 = vmatprep.subr.bf16.mxu0 0
  %3295 = vmatpush1.bf16.msra.mxu0 0
  %3296 = vmatprep.subr.bf16.mxu0 0
  %3297 = vmatpush1.bf16.msra.mxu0 0
  %3298 = vmatprep.mubr.bf16.mxu0 0
  %3299 = vmatmul.mubr.bf16.gmra.mrb[0].mxu0 %v3261
  %v3300 = vpop.f32.mrb[0].mxu0
  %v3301 = vadd.f32 %v3247, %v3300
  %v3302 = vpop.f32.mrb[0].mxu0
  %v3303 = vpop.f32.mrb[0].mxu0
  %v3304 = vadd.f32 %v3247, %v3303
  %v3305 = vpop.f32.mrb[0].mxu0
  %3306 = vmatprep.mubr.bf16.mxu0 0
  %3307 = vmatmul.mubr.bf16.gmra.mrb[0].mxu0 %v3264
  %v3308 = vpop.f32.mrb[0].mxu0
  %v3309 = vadd.f32 %v3247, %v3308
  %v3310 = vpop.f32.mrb[0].mxu0
  %v3311 = vpop.f32.mrb[0].mxu0
  %v3312 = vadd.f32 %v3247, %v3311
  %v3313 = vpop.f32.mrb[0].mxu0
  %3314 = vdwg.mxu0
  %v3315 = vmul.f32 %v3301, %v3301
  %v3316 = vmul.f32 %v3304, %v3304
  %v3317 = vmul.f32 %v3309, %v3309
  %v3318 = vmul.f32 %v3312, %v3312
  %v3319 = vmul.f32 %v3301, %v3315
  %v3320 = vmul.f32 %v3304, %v3316
  %v3321 = vmul.f32 %v3309, %v3317
  %v3322 = vmul.f32 %v3312, %v3318
  %v3323 = vmul.f32 %v3319, 0.044715
  %v3324 = vmul.f32 %v3320, 0.044715
  %v3325 = vmul.f32 %v3321, 0.044715
  %v3326 = vmul.f32 %v3322, 0.044715
  %v3327 = vadd.f32 %v3301, %v3323
  %v3328 = vadd.f32 %v3304, %v3324
  %v3329 = vadd.f32 %v3309, %v3325
  %v3330 = vadd.f32 %v3312, %v3326
  %v3331 = vmul.f32 %v3327, 0.7978846
  %v3332 = vmul.f32 %v3328, 0.7978846
  %v3333 = vmul.f32 %v3329, 0.7978846
  %v3334 = vmul.f32 %v3330, 0.7978846
  %v3335 = vtanh.pop %v3331
  %v3336 = vtanh.pop %v3332
  %v3337 = vtanh.pop %v3333
  %v3338 = vtanh.pop %v3334
  %v3339 = vadd.f32 %v3335, 1.0
  %v3340 = vadd.f32 %v3336, 1.0
  %v3341 = vadd.f32 %v3337, 1.0
  %v3342 = vadd.f32 %v3338, 1.0
  %v3343 = vmul.f32 %v3339, 0.5
  %v3344 = vmul.f32 %v3340, 0.5
  %v3345 = vmul.f32 %v3341, 0.5
  %v3346 = vmul.f32 %v3342, 0.5
  %v3347 = vmul.f32 %v3301, %v3343
  %v3348 = vmul.f32 %v3304, %v3344
  %v3349 = vmul.f32 %v3309, %v3345
  %v3350 = vmul.f32 %v3312, %v3346
  %v3351 = vpack.c.bf16 %v3348, %v3347
  %v3352 = vpack.c.bf16 %v3350, %v3349
  %v3353 = vld [vmem:[%s6 + $0x60] sm:$0xf]
  %v3354 = vld [vmem:[%s6 + $0x64] sm:$0xf]
  %v3355 = vld [vmem:[%s6 + $0x68] sm:$0xf]
  %v3356 = vld [vmem:[%s6 + $0x6c] sm:$0xf]
  %v3357 = vld [vmem:[%s6 + $0x70] sm:$0xf]
  %v3358 = vld [vmem:[%s6 + $0x74] sm:$0xf]
  %v3359 = vld [vmem:[%s6 + $0x78] sm:$0xf]
  %v3360 = vld [vmem:[%s6 + $0x7c] sm:$0xf]
  %v3361 = vld [vmem:[%s6 + $0x80] sm:$0xf]
  %v3362 = vld [vmem:[%s6 + $0x84] sm:$0xf]
  %v3363 = vld [vmem:[%s6 + $0x88] sm:$0xf]
  %v3364 = vld [vmem:[%s6 + $0x8c] sm:$0xf]
  %v3365 = vld [vmem:[%s6 + $0x90] sm:$0xf]
  %v3366 = vld [vmem:[%s6 + $0x94] sm:$0xf]
  %v3367 = vld [vmem:[%s6 + $0x98] sm:$0xf]
  %v3368 = vld [vmem:[%s6 + $0x9c] sm:$0xf]
  %v3369 = vlaneseq
  %v3370 = vshrl.u32 %v3369, 7
  %v3371 = vsub.s32 2, %v3370
  %v3372 = vrot.slane %v29, %v3371
  %v3389 = vunpack.c.l.b16 %v3353
  %v3390 = vunpack.c.l.b16 %v3354
  %v3391 = vunpack.c.l.b16 %v3355
  %v3392 = vunpack.c.l.b16 %v3356
  %v3393 = vunpack.c.l.b16 %v3357
  %v3394 = vunpack.c.l.b16 %v3358
  %v3395 = vunpack.c.l.b16 %v3359
  %v3396 = vunpack.c.l.b16 %v3360
  %v3397 = vunpack.c.l.b16 %v3361
  %v3398 = vunpack.c.l.b16 %v3362
  %v3399 = vunpack.c.l.b16 %v3363
  %v3400 = vunpack.c.l.b16 %v3364
  %v3401 = vunpack.c.l.b16 %v3365
  %v3402 = vunpack.c.l.b16 %v3366
  %v3403 = vunpack.c.l.b16 %v3367
  %v3404 = vunpack.c.l.b16 %v3368
  %v3405 = vpack.c.b16 %v3390, %v3389
  %v3406 = vpack.c.b16 %v3392, %v3391
  %v3407 = vpack.c.b16 %v3394, %v3393
  %v3408 = vpack.c.b16 %v3396, %v3395
  %v3409 = vpack.c.b16 %v3398, %v3397
  %v3410 = vpack.c.b16 %v3400, %v3399
  %v3411 = vpack.c.b16 %v3402, %v3401
  %v3412 = vpack.c.b16 %v3404, %v3403
  %3421 = vmatprep.subr.bf16.mxu0 0
  %3422 = vmatpush1.bf16.msra.mxu0 %v3405
  %3423 = vmatprep.subr.bf16.mxu0 0
  %3424 = vmatpush1.bf16.msra.mxu0 %v3406
  %3425 = vmatprep.subr.bf16.mxu0 0
  %3426 = vmatpush1.bf16.msra.mxu0 %v3407
  %3427 = vmatprep.subr.bf16.mxu0 0
  %3428 = vmatpush1.bf16.msra.mxu0 %v3408
  %3429 = vmatprep.subr.bf16.mxu0 0
  %3430 = vmatpush1.bf16.msra.mxu0 %v3409
  %3431 = vmatprep.subr.bf16.mxu0 0
  %3432 = vmatpush1.bf16.msra.mxu0 %v3410
  %3433 = vmatprep.subr.bf16.mxu0 0
  %3434 = vmatpush1.bf16.msra.mxu0 %v3411
  %3435 = vmatprep.subr.bf16.mxu0 0
  %3436 = vmatpush1.bf16.msra.mxu0 %v3412
  %3437 = vmatprep.subr.bf16.mxu0 0
  %3438 = vmatpush1.bf16.msra.mxu0 0
  %3439 = vmatprep.subr.bf16.mxu0 0
  %3440 = vmatpush1.bf16.msra.mxu0 0
  %3441 = vmatprep.subr.bf16.mxu0 0
  %3442 = vmatpush1.bf16.msra.mxu0 0
  %3443 = vmatprep.subr.bf16.mxu0 0
  %3444 = vmatpush1.bf16.msra.mxu0 0
  %3445 = vmatprep.subr.bf16.mxu0 0
  %3446 = vmatpush1.bf16.msra.mxu0 0
  %3447 = vmatprep.subr.bf16.mxu0 0
  %3448 = vmatpush1.bf16.msra.mxu0 0
  %3449 = vmatprep.subr.bf16.mxu0 0
  %3450 = vmatpush1.bf16.msra.mxu0 0
  %3451 = vmatprep.subr.bf16.mxu0 0
  %3452 = vmatpush1.bf16.msra.mxu0 0
  %3453 = vmatprep.mubr.bf16.mxu0 0
  %3454 = vmatmul.mubr.bf16.gmra.mrb[0].mxu0 %v3351
  %v3455 = vpop.f32.mrb[0].mxu0
  %v3456 = vadd.f32 %v3372, %v3455
  %v3457 = vpop.f32.mrb[0].mxu0
  %v3458 = vpop.f32.mrb[0].mxu0
  %v3459 = vadd.f32 %v3372, %v3458
  %v3460 = vpop.f32.mrb[0].mxu0
  %3461 = vmatprep.mubr.bf16.mxu0 0
  %3462 = vmatmul.mubr.bf16.gmra.mrb[0].mxu0 %v3352
  %v3463 = vpop.f32.mrb[0].mxu0
  %v3464 = vadd.f32 %v3372, %v3463
  %v3465 = vpop.f32.mrb[0].mxu0
  %v3466 = vpop.f32.mrb[0].mxu0
  %v3467 = vadd.f32 %v3372, %v3466
  %v3468 = vpop.f32.mrb[0].mxu0
  %3469 = vdwg.mxu0
  %v3470 = vadd.f32 %v3234, %v3456
  %v3471 = vadd.f32 %v3235, %v3459
  %v3472 = vadd.f32 %v3236, %v3464
  %v3473 = vadd.f32 %v3237, %v3467
  %v3474 = vsel %vm253, %v3470, 0.0
  %3475 = vadd.xlane.f32.xlu0 %v3474
  %v3476 = vpop.xlane.xlu0 %3475
  %v3477 = vsel %vm253, %v3471, 0.0
  %3478 = vadd.xlane.f32.xlu0 %v3477
  %v3479 = vpop.xlane.xlu0 %3478
  %v3480 = vsel %vm253, %v3472, 0.0
  %3481 = vadd.xlane.f32.xlu0 %v3480
  %v3482 = vpop.xlane.xlu0 %3481
  %v3483 = vsel %vm253, %v3473, 0.0
  %3484 = vadd.xlane.f32.xlu0 %v3483
  %v3485 = vpop.xlane.xlu0 %3484
  %v3486 = vmul.f32 %v3476, %v266
  %v3487 = vmul.f32 %v3479, %v266
  %v3488 = vmul.f32 %v3482, %v266
  %v3489 = vmul.f32 %v3485, %v266
  %v3490 = vsub.f32 %v3470, %v3486
  %v3491 = vsub.f32 %v3471, %v3487
  %v3492 = vsub.f32 %v3472, %v3488
  %v3493 = vsub.f32 %v3473, %v3489
  %v3494 = vmul.f32 %v3490, %v3490
  %v3495 = vmul.f32 %v3491, %v3491
  %v3496 = vmul.f32 %v3492, %v3492
  %v3497 = vmul.f32 %v3493, %v3493
  %v3498 = vsel %vm253, %v3494, 0.0
  %3499 = vadd.xlane.f32.xlu0 %v3498
  %v3500 = vpop.xlane.xlu0 %3499
  %v3501 = vsel %vm253, %v3495, 0.0
  %3502 = vadd.xlane.f32.xlu0 %v3501
  %v3503 = vpop.xlane.xlu0 %3502
  %v3504 = vsel %vm253, %v3496, 0.0
  %3505 = vadd.xlane.f32.xlu0 %v3504
  %v3506 = vpop.xlane.xlu0 %3505
  %v3507 = vsel %vm253, %v3497, 0.0
  %3508 = vadd.xlane.f32.xlu0 %v3507
  %v3509 = vpop.xlane.xlu0 %3508
  %v3510 = vmul.f32 %v3500, %v266
  %v3511 = vmul.f32 %v3503, %v266
  %v3512 = vmul.f32 %v3506, %v266
  %v3513 = vmul.f32 %v3509, %v266
  %v3514 = vadd.f32 %v3510, 1e-12
  %v3515 = vadd.f32 %v3511, 1e-12
  %v3516 = vadd.f32 %v3512, 1e-12
  %v3517 = vadd.f32 %v3513, 1e-12
  %v3518 = vrsqrt.pop %v3514
  %v3519 = vrsqrt.pop %v3515
  %v3520 = vrsqrt.pop %v3516
  %v3521 = vrsqrt.pop %v3517
  %v3522 = vmul.f32 %v3490, %v3518
  %v3523 = vmul.f32 %v3491, %v3519
  %v3524 = vmul.f32 %v3492, %v3520
  %v3525 = vmul.f32 %v3493, %v3521
  %v3526 = vlaneseq
  %v3527 = vshrl.u32 %v3526, 7
  %v3528 = vsub.s32 3, %v3527
  %v3529 = vrot.slane %v29, %v3528
  %v3530 = vmul.f32 %v3522, %v3529
  %v3531 = vmul.f32 %v3523, %v3529
  %v3532 = vmul.f32 %v3524, %v3529
  %v3533 = vmul.f32 %v3525, %v3529
  %v3534 = vlaneseq
  %v3535 = vshrl.u32 %v3534, 7
  %v3536 = vsub.s32 4, %v3535
  %v3537 = vrot.slane %v29, %v3536
  %v3538 = vadd.f32 %v3530, %v3537
  %v3539 = vadd.f32 %v3531, %v3537
  %v3540 = vadd.f32 %v3532, %v3537
  %v3541 = vadd.f32 %v3533, %v3537
  %v3542 = vpack.c.bf16 %v3539, %v3538
  %v3543 = vpack.c.bf16 %v3541, %v3540
  %v3544 = vld [vmem:[%s4 + $0x20] sm:$0xf]
  %v3545 = vld [vmem:[%s4 + $0x24] sm:$0xf]
  %v3546 = vld [vmem:[%s4 + $0x28] sm:$0xf]
  %v3547 = vld [vmem:[%s4 + $0x2c] sm:$0xf]
  %v3548 = vlaneseq
  %v3549 = vshrl.u32 %v3548, 7
  %v3550 = vsub.s32 3, %v3549
  %v3551 = vrot.slane %v27, %v3550
  %v3556 = vunpack.c.l.b16 %v3544
  %v3557 = vunpack.c.l.b16 %v3545
  %v3558 = vunpack.c.l.b16 %v3546
  %v3559 = vunpack.c.l.b16 %v3547
  %v3560 = vpack.c.b16 %v3557, %v3556
  %v3561 = vpack.c.b16 %v3559, %v3558
  %v3565 = vsel %vm253, %v3542, 0
  %v3568 = vsel %vm253, %v3543, 0
  %3570 = vmatprep.subr.bf16.mxu0 0
  %3571 = vmatpush1.bf16.msra.mxu0 %v3560
  %3572 = vmatprep.subr.bf16.mxu0 0
  %3573 = vmatpush1.bf16.msra.mxu0 %v3561
  %3574 = vmatprep.subr.bf16.mxu0 0
  %3575 = vmatpush1.bf16.msra.mxu0 0
  %3576 = vmatprep.subr.bf16.mxu0 0
  %3577 = vmatpush1.bf16.msra.mxu0 0
  %3578 = vmatprep.subr.bf16.mxu0 0
  %3579 = vmatpush1.bf16.msra.mxu0 0
  %3580 = vmatprep.subr.bf16.mxu0 0
  %3581 = vmatpush1.bf16.msra.mxu0 0
  %3582 = vmatprep.subr.bf16.mxu0 0
  %3583 = vmatpush1.bf16.msra.mxu0 0
  %3584 = vmatprep.subr.bf16.mxu0 0
  %3585 = vmatpush1.bf16.msra.mxu0 0
  %3586 = vmatprep.subr.bf16.mxu0 0
  %3587 = vmatpush1.bf16.msra.mxu0 0
  %3588 = vmatprep.subr.bf16.mxu0 0
  %3589 = vmatpush1.bf16.msra.mxu0 0
  %3590 = vmatprep.subr.bf16.mxu0 0
  %3591 = vmatpush1.bf16.msra.mxu0 0
  %3592 = vmatprep.subr.bf16.mxu0 0
  %3593 = vmatpush1.bf16.msra.mxu0 0
  %3594 = vmatprep.subr.bf16.mxu0 0
  %3595 = vmatpush1.bf16.msra.mxu0 0
  %3596 = vmatprep.subr.bf16.mxu0 0
  %3597 = vmatpush1.bf16.msra.mxu0 0
  %3598 = vmatprep.subr.bf16.mxu0 0
  %3599 = vmatpush1.bf16.msra.mxu0 0
  %3600 = vmatprep.subr.bf16.mxu0 0
  %3601 = vmatpush1.bf16.msra.mxu0 0
  %3602 = vmatprep.mubr.bf16.mxu0 0
  %3603 = vmatmul.mubr.bf16.gmra.mrb[0].mxu0 %v3565
  %v3604 = vpop.f32.mrb[0].mxu0
  %v3605 = vadd.f32 %v3551, %v3604
  %v3606 = vpop.f32.mrb[0].mxu0
  %v3607 = vpop.f32.mrb[0].mxu0
  %v3608 = vadd.f32 %v3551, %v3607
  %v3609 = vpop.f32.mrb[0].mxu0
  %3610 = vmatprep.mubr.bf16.mxu0 0
  %3611 = vmatmul.mubr.bf16.gmra.mrb[0].mxu0 %v3568
  %v3612 = vpop.f32.mrb[0].mxu0
  %v3613 = vadd.f32 %v3551, %v3612
  %v3614 = vpop.f32.mrb[0].mxu0
  %v3615 = vpop.f32.mrb[0].mxu0
  %v3616 = vadd.f32 %v3551, %v3615
  %v3617 = vpop.f32.mrb[0].mxu0
  %3618 = vdwg.mxu0
  %v3619 = vtanh.pop %v3605
  %v3620 = vtanh.pop %v3608
  %v3621 = vtanh.pop %v3613
  %v3622 = vtanh.pop %v3616
  %v3623 = vmax.f32 %v3605, 0.0
  %v3624 = vmax.f32 %v3608, 0.0
  %v3625 = vmax.f32 %v3613, 0.0
  %v3626 = vmax.f32 %v3616, 0.0
  %v3627 = vpack.c.bf16 %v3620, %v3619
  %v3628 = vpack.c.bf16 %v3622, %v3621
  %v3629 = vld [vmem:[%s6 + $0xa0] sm:$0xf]
  %v3630 = vld [vmem:[%s6 + $0xa4] sm:$0xf]
  %v3631 = vld [vmem:[%s6 + $0xa8] sm:$0xf]
  %v3632 = vld [vmem:[%s6 + $0xac] sm:$0xf]
  %v3633 = vlaneseq
  %v3634 = vshrl.u32 %v3633, 7
  %v3635 = vsub.s32 4, %v3634
  %v3636 = vrot.slane %v27, %v3635
  %v3641 = vunpack.c.l.b16 %v3629
  %v3642 = vunpack.c.l.b16 %v3630
  %v3643 = vunpack.c.l.b16 %v3631
  %v3644 = vunpack.c.l.b16 %v3632
  %v3645 = vpack.c.b16 %v3642, %v3641
  %v3646 = vpack.c.b16 %v3644, %v3643
  %v3650 = vsel %vm253, %v3627, 0
  %v3653 = vsel %vm253, %v3628, 0
  %3655 = vmatprep.subr.bf16.mxu0 0
  %3656 = vmatpush1.bf16.msra.mxu0 %v3645
  %3657 = vmatprep.subr.bf16.mxu0 0
  %3658 = vmatpush1.bf16.msra.mxu0 %v3646
  %3659 = vmatprep.subr.bf16.mxu0 0
  %3660 = vmatpush1.bf16.msra.mxu0 0
  %3661 = vmatprep.subr.bf16.mxu0 0
  %3662 = vmatpush1.bf16.msra.mxu0 0
  %3663 = vmatprep.subr.bf16.mxu0 0
  %3664 = vmatpush1.bf16.msra.mxu0 0
  %3665 = vmatprep.subr.bf16.mxu0 0
  %3666 = vmatpush1.bf16.msra.mxu0 0
  %3667 = vmatprep.subr.bf16.mxu0 0
  %3668 = vmatpush1.bf16.msra.mxu0 0
  %3669 = vmatprep.subr.bf16.mxu0 0
  %3670 = vmatpush1.bf16.msra.mxu0 0
  %3671 = vmatprep.subr.bf16.mxu0 0
  %3672 = vmatpush1.bf16.msra.mxu0 0
  %3673 = vmatprep.subr.bf16.mxu0 0
  %3674 = vmatpush1.bf16.msra.mxu0 0
  %3675 = vmatprep.subr.bf16.mxu0 0
  %3676 = vmatpush1.bf16.msra.mxu0 0
  %3677 = vmatprep.subr.bf16.mxu0 0
  %3678 = vmatpush1.bf16.msra.mxu0 0
  %3679 = vmatprep.subr.bf16.mxu0 0
  %3680 = vmatpush1.bf16.msra.mxu0 0
  %3681 = vmatprep.subr.bf16.mxu0 0
  %3682 = vmatpush1.bf16.msra.mxu0 0
  %3683 = vmatprep.subr.bf16.mxu0 0
  %3684 = vmatpush1.bf16.msra.mxu0 0
  %3685 = vmatprep.subr.bf16.mxu0 0
  %3686 = vmatpush1.bf16.msra.mxu0 0
  %3687 = vmatprep.mubr.bf16.mxu0 0
  %3688 = vmatmul.mubr.bf16.gmra.mrb[0].mxu0 %v3650
  %v3689 = vpop.f32.mrb[0].mxu0
  %v3690 = vadd.f32 %v3636, %v3689
  %v3691 = vpop.f32.mrb[0].mxu0
  %v3692 = vpop.f32.mrb[0].mxu0
  %v3693 = vadd.f32 %v3636, %v3692
  %v3694 = vpop.f32.mrb[0].mxu0
  %3695 = vmatprep.mubr.bf16.mxu0 0
  %3696 = vmatmul.mubr.bf16.gmra.mrb[0].mxu0 %v3653
  %v3697 = vpop.f32.mrb[0].mxu0
  %v3698 = vadd.f32 %v3636, %v3697
  %v3699 = vpop.f32.mrb[0].mxu0
  %v3700 = vpop.f32.mrb[0].mxu0
  %v3701 = vadd.f32 %v3636, %v3700
  %v3702 = vpop.f32.mrb[0].mxu0
  %3703 = vdwg.mxu0
  %v3704 = vmax.f32 %v3690, 0.0
  %v3705 = vmax.f32 %v3693, 0.0
  %v3706 = vmax.f32 %v3698, 0.0
  %v3707 = vmax.f32 %v3701, 0.0
  %v3708 = vpack.c.bf16 %v3624, %v3623
  %v3709 = vpack.c.bf16 %v3626, %v3625
  %v3710 = vld [vmem:[%s5 + $0x20] sm:$0xf]
  %v3711 = vld [vmem:[%s5 + $0x24] sm:$0xf]
  %v3712 = vld [vmem:[%s5 + $0x28] sm:$0xf]
  %v3713 = vld [vmem:[%s5 + $0x2c] sm:$0xf]
  %v3714 = vld [vmem:[%s5 + $0x30] sm:$0xf]
  %v3715 = vld [vmem:[%s5 + $0x34] sm:$0xf]
  %v3716 = vld [vmem:[%s5 + $0x38] sm:$0xf]
  %v3717 = vld [vmem:[%s5 + $0x3c] sm:$0xf]
  %v3718 = vpack.c.bf16 %v3705, %v3704
  %v3719 = vpack.c.bf16 %v3707, %v3706
  %v3720 = vld [vmem:[%s5 + $0x40] sm:$0xf]
  %v3721 = vld [vmem:[%s5 + $0x44] sm:$0xf]
  %v3722 = vld [vmem:[%s5 + $0x48] sm:$0xf]
  %v3723 = vld [vmem:[%s5 + $0x4c] sm:$0xf]
  %v3728 = vunpack.c.l.b16 %v3720
  %v3729 = vunpack.c.l.b16 %v3721
  %v3730 = vunpack.c.l.b16 %v3722
  %v3731 = vunpack.c.l.b16 %v3723
  %v3732 = vpack.c.b16 %v3729, %v3728
  %v3733 = vpack.c.b16 %v3731, %v3730
  %v3737 = vsel %vm253, %v3718, 0
  %v3740 = vsel %vm253, %v3719, 0
  %3742 = vmatprep.subr.bf16.mxu0 0
  %3743 = vmatpush1.bf16.msra.mxu0 %v3732
  %3744 = vmatprep.subr.bf16.mxu0 0
  %3745 = vmatpush1.bf16.msra.mxu0 %v3733
  %3746 = vmatprep.subr.bf16.mxu0 0
  %3747 = vmatpush1.bf16.msra.mxu0 0
  %3748 = vmatprep.subr.bf16.mxu0 0
  %3749 = vmatpush1.bf16.msra.mxu0 0
  %3750 = vmatprep.subr.bf16.mxu0 0
  %3751 = vmatpush1.bf16.msra.mxu0 0
  %3752 = vmatprep.subr.bf16.mxu0 0
  %3753 = vmatpush1.bf16.msra.mxu0 0
  %3754 = vmatprep.subr.bf16.mxu0 0
  %3755 = vmatpush1.bf16.msra.mxu0 0
  %3756 = vmatprep.subr.bf16.mxu0 0
  %3757 = vmatpush1.bf16.msra.mxu0 0
  %3758 = vmatprep.subr.bf16.mxu0 0
  %3759 = vmatpush1.bf16.msra.mxu0 0
  %3760 = vmatprep.subr.bf16.mxu0 0
  %3761 = vmatpush1.bf16.msra.mxu0 0
  %3762 = vmatprep.subr.bf16.mxu0 0
  %3763 = vmatpush1.bf16.msra.mxu0 0
  %3764 = vmatprep.subr.bf16.mxu0 0
  %3765 = vmatpush1.bf16.msra.mxu0 0
  %3766 = vmatprep.subr.bf16.mxu0 0
  %3767 = vmatpush1.bf16.msra.mxu0 0
  %3768 = vmatprep.subr.bf16.mxu0 0
  %3769 = vmatpush1.bf16.msra.mxu0 0
  %3770 = vmatprep.subr.bf16.mxu0 0
  %3771 = vmatpush1.bf16.msra.mxu0 0
  %3772 = vmatprep.subr.bf16.mxu0 0
  %3773 = vmatpush1.bf16.msra.mxu0 0
  %3774 = vmatprep.mubr.bf16.mxu0 0
  %3775 = vmatmul.mubr.bf16.gmra.mrb[0].mxu0 %v3737
  %v3776 = vpop.f32.mrb[0].mxu0
  %v3777 = vadd.f32 0.0, %v3776
  %v3778 = vpop.f32.mrb[0].mxu0
  %v3779 = vpop.f32.mrb[0].mxu0
  %v3780 = vadd.f32 0.0, %v3779
  %v3781 = vpop.f32.mrb[0].mxu0
  %3782 = vmatprep.mubr.bf16.mxu0 0
  %3783 = vmatmul.mubr.bf16.gmra.mrb[0].mxu0 %v3740
  %v3784 = vpop.f32.mrb[0].mxu0
  %v3785 = vadd.f32 0.0, %v3784
  %v3786 = vpop.f32.mrb[0].mxu0
  %v3787 = vpop.f32.mrb[0].mxu0
  %v3788 = vadd.f32 0.0, %v3787
  %v3789 = vpop.f32.mrb[0].mxu0
  %3790 = vdwg.mxu0
  %3793 = vrot.lane.b32.xlu0 %v3708, 96
  %v3794 = vpop.permute.xlu0 %3793
  %3795 = vrot.lane.b32.xlu0 %v3709, 96
  %v3796 = vpop.permute.xlu0 %3795
  %v3805 = vunpack.c.l.b16 %v3710
  %v3806 = vunpack.c.l.b16 %v3711
  %v3807 = vunpack.c.l.b16 %v3712
  %v3808 = vunpack.c.l.b16 %v3713
  %v3809 = vunpack.c.l.b16 %v3714
  %v3810 = vunpack.c.l.b16 %v3715
  %v3811 = vunpack.c.l.b16 %v3716
  %v3812 = vunpack.c.l.b16 %v3717
  %v3813 = vpack.c.b16 %v3806, %v3805
  %v3814 = vpack.c.b16 %v3808, %v3807
  %v3815 = vpack.c.b16 %v3810, %v3809
  %v3816 = vpack.c.b16 %v3812, %v3811
  %vm3821 = vcmask 523264
  %v3823 = vsel %vm3821, %v3794, 0
  %v3826 = vsel %vm3821, %v3796, 0
  %3828 = vmatprep.subr.bf16.mxu0 0
  %3829 = vmatpush1.bf16.msra.mxu0 %v3813
  %3830 = vmatprep.subr.bf16.mxu0 0
  %3831 = vmatpush1.bf16.msra.mxu0 %v3814
  %3832 = vmatprep.subr.bf16.mxu0 0
  %3833 = vmatpush1.bf16.msra.mxu0 %v3815
  %3834 = vmatprep.subr.bf16.mxu0 0
  %3835 = vmatpush1.bf16.msra.mxu0 %v3816
  %3836 = vmatprep.subr.bf16.mxu0 0
  %3837 = vmatpush1.bf16.msra.mxu0 0
  %3838 = vmatprep.subr.bf16.mxu0 0
  %3839 = vmatpush1.bf16.msra.mxu0 0
  %3840 = vmatprep.subr.bf16.mxu0 0
  %3841 = vmatpush1.bf16.msra.mxu0 0
  %3842 = vmatprep.subr.bf16.mxu0 0
  %3843 = vmatpush1.bf16.msra.mxu0 0
  %3844 = vmatprep.subr.bf16.mxu0 0
  %3845 = vmatpush1.bf16.msra.mxu0 0
  %3846 = vmatprep.subr.bf16.mxu0 0
  %3847 = vmatpush1.bf16.msra.mxu0 0
  %3848 = vmatprep.subr.bf16.mxu0 0
  %3849 = vmatpush1.bf16.msra.mxu0 0
  %3850 = vmatprep.subr.bf16.mxu0 0
  %3851 = vmatpush1.bf16.msra.mxu0 0
  %3852 = vmatprep.subr.bf16.mxu0 0
  %3853 = vmatpush1.bf16.msra.mxu0 0
  %3854 = vmatprep.subr.bf16.mxu0 0
  %3855 = vmatpush1.bf16.msra.mxu0 0
  %3856 = vmatprep.subr.bf16.mxu0 0
  %3857 = vmatpush1.bf16.msra.mxu0 0
  %3858 = vmatprep.subr.bf16.mxu0 0
  %3859 = vmatpush1.bf16.msra.mxu0 0
  %3860 = vmatprep.mubr.bf16.mxu0 0
  %3861 = vmatmul.mubr.bf16.gmra.mrb[0].mxu0 %v3823
  %v3862 = vpop.f32.mrb[0].mxu0
  %v3863 = vadd.f32 %v3777, %v3862
  %v3864 = vpop.f32.mrb[0].mxu0
  %v3865 = vpop.f32.mrb[0].mxu0
  %v3866 = vadd.f32 %v3780, %v3865
  %v3867 = vpop.f32.mrb[0].mxu0
  %3868 = vmatprep.mubr.bf16.mxu0 0
  %3869 = vmatmul.mubr.bf16.gmra.mrb[0].mxu0 %v3826
  %v3870 = vpop.f32.mrb[0].mxu0
  %v3871 = vadd.f32 %v3785, %v3870
  %v3872 = vpop.f32.mrb[0].mxu0
  %v3873 = vpop.f32.mrb[0].mxu0
  %v3874 = vadd.f32 %v3788, %v3873
  %v3875 = vpop.f32.mrb[0].mxu0
  %3876 = vdwg.mxu0
  %v3877 = vlaneseq
  %v3878 = vshrl.u32 %v3877, 7
  %v3879 = vsub.s32 2, %v3878
  %v3880 = vrot.slane %v27, %v3879
  %v3881 = vadd.f32 %v3863, %v3880
  %v3882 = vadd.f32 %v3866, %v3880
  %v3883 = vadd.f32 %v3871, %v3880
  %v3884 = vadd.f32 %v3874, %v3880
  %3885 = vst [vmem:[%s7] sm:$0xff] %v3881
  %3886 = vst [vmem:[%s7 + $0x8] sm:$0xff] %v3882
  %3887 = vst [vmem:[%s7 + $0x10] sm:$0xff] %v3883
  %3888 = vst [vmem:[%s7 + $0x18] sm:$0xff] %v3884
  // Predicated region
  $region30: #{forward.1} parent=0 // pred_check
    _
  $region31: #{forward.1} parent=0 // pred_check_branch
    %3890 = sbr.rel (0) target = $region33
  $region32: #{forward.1} parent=0 // pred_region
    _
  $region33: #{forward.1} parent=0 // pred_fallthru
    _
  // Predicated region
  $region34: #{forward.1} parent=0 // pred_check
    _
  $region35: #{forward.1} parent=0 // pred_check_branch
    %3892 = sbr.rel (0) target = $region37
  $region36: #{forward.1} parent=0 // pred_region
    _
  $region37: #{forward.1} parent=0 // pred_fallthru
    _

</llo_original>
